<compile_context>
chip_gen: v6e
topology: v6e:2x2x1
jax: 0.10.0
libtpu: 0.0.40
codegen_flags: <defaults>
</compile_context>

<pallas_src>
import jax
import jax.numpy as jnp
from jax import lax
from jax.experimental import pallas as pl
from jax.experimental.pallas import tpu as pltpu

# ----------------------------- synthetic config ------------------------------
BATCH = 2
T_LEN = 8            # time frames   (conv "H", sublane axis)
F_BINS = 96          # frequency bins (conv "W", lane axis)
FP = 128             # padded lane width
K1 = K2 = 3          # filter_size1 / filter_size2 (padding 1, "same")
PAD1 = PAD2 = 1
NF1, NF2 = 4, 4      # num_features1 / num_features2
NF3, NF4 = 16, 16    # num_features3 / num_features4
N_NOTE = 12
F_POOL1 = F_BINS // 2          # 48 after pool1
F_POOL2 = F_BINS // 4          # 24 after pool2
LSTM3_CIN = NF2 * F_POOL2      # 96
G3 = 4 * NF3
G4 = 4 * NF4

# SMEM conv-parameter pack (flat scalar offsets)
W1_OFF = 0
B1_OFF = W1_OFF + K1 * K1 * 1 * NF1       # 36
W2_OFF = B1_OFF + NF1                     # 40
B2_OFF = W2_OFF + K2 * K2 * NF1 * NF2     # 184
CW_LEN = B2_OFF + NF2                     # 188

# VMEM packed-parameter row offsets (every section starts on an 8-row boundary)
R_WX3 = 0                    # NF2*FP rows, cols 0:G3 (sparse-lane expanded lstm3 wx)
R_WH3 = NF2 * FP             # 512: NF3 rows, cols 0:G3
R_B3 = R_WH3 + NF3           # 528: 1 row, cols 0:G3
R_W34 = 536                  # NF3+NF4 rows, cols 0:G4 ([wx4; wh4])
R_B4 = R_W34 + NF3 + NF4     # 568: 1 row, cols 0:G4
R_W5 = 576                   # NF4 rows, full 128 cols (cols 0:N_NOTE used)
R_B5 = R_W5 + NF4            # 592: 1 row
PK_ROWS = 600


# ----------------------------- fused Pallas kernel ---------------------------
def fused_net_kernel(x_ref, cw_ref, pk_ref, o_ref, h34_sc, h4_sc):
    B, T, F = x_ref.shape                                  # F == FP == 128
    x = x_ref[...]                                         # (B, T, FP) f32

    # ---- boundary masks, computed once and reused by every tap ----
    t_idx = lax.broadcasted_iota(jnp.int32, (B, T, F), 1)
    f_idx = lax.broadcasted_iota(jnp.int32, (B, T, F), 2)
    thi = t_idx < T - 1          # valid for +1 time shift
    tlo = t_idx >= 1             # valid for -1 time shift
    fval = f_idx < F_BINS        # real frequency lanes (0..95)

    def tshift(a, s):
        # result[..., t, :] = a[..., t+s, :] with zero padding at the time boundary
        r = pltpu.roll(a, (-s) % T, 1)
        return jnp.where(thi, r, 0.0) if s > 0 else jnp.where(tlo, r, 0.0)

    def fshift(a, lanes):
        # result[..., f] = a[..., f+lanes]; no mask needed: pad lanes/wraparound are zero
        return pltpu.roll(a, (-lanes) % F, 2) if lanes else a

    def elu(a):
        return jnp.where(a > 0.0, a, jnp.exp(a) - 1.0)

    # -------- conv1 (1 -> NF1, 3x3 "same") + ELU + fused freq maxpool (x2) --------
    acc1 = [jnp.zeros((B, T, F), jnp.float32) for _ in range(NF1)]
    for kh in range(K1):
        xt = x if kh == 1 else tshift(x, kh - 1)
        for kw in range(K1):
            xf = fshift(xt, kw - 1)
            for co in range(NF1):
                w = cw_ref[W1_OFF + (kh * K1 + kw) * NF1 + co]
                acc1[co] = acc1[co] + xf * w

    q1 = []   # pooled conv1 output per channel; valid entries live on lanes f = 2*f'
    for co in range(NF1):
        a = elu(acc1[co] + cw_ref[B1_OFF + co])
        p = jnp.maximum(a, pltpu.roll(a, F - 1, 2))        # max over adjacent freq pairs
        q1.append(jnp.where(fval, p, 0.0))                 # zero pad lanes (>=96)

    # -------- conv2 (NF1 -> NF2, 3x3 "same" in pooled coords) + ELU + second pool ----
    acc2 = [jnp.zeros((B, T, F), jnp.float32) for _ in range(NF2)]
    for ci in range(NF1):
        for kh in range(K2):
            qt = q1[ci] if kh == 1 else tshift(q1[ci], kh - 1)
            for kw in range(K2):
                qf = fshift(qt, 2 * (kw - 1))              # +-1 pooled freq == +-2 lanes
                for co in range(NF2):
                    w = cw_ref[W2_OFF + ((kh * K2 + kw) * NF1 + ci) * NF2 + co]
                    acc2[co] = acc2[co] + qf * w

    q2 = []   # pooled conv2 output; valid entries on lanes f = 4*f''  (shape (B*T, FP))
    for co in range(NF2):
        a = elu(acc2[co] + cw_ref[B2_OFF + co])
        q2.append(jnp.maximum(a, pltpu.roll(a, F - 2, 2)).reshape(B * T, F))

    # -------- lstm3 x-gate contribution, hoisted and batched over all time steps ------
    b3 = pk_ref[R_B3:R_B3 + 1, 0:G3]                       # (1, 64)
    xg = jnp.zeros((B * T, G3), jnp.float32)
    for ci in range(NF2):
        wx = pk_ref[R_WX3 + ci * FP:R_WX3 + (ci + 1) * FP, 0:G3]    # (128, 64)
        xg = xg + jnp.dot(q2[ci], wx, preferred_element_type=jnp.float32)
    xg3 = (xg + b3).reshape(B, T, G3)                      # (B, T, 64)

    wh3 = pk_ref[R_WH3:R_WH3 + NF3, 0:G3]                  # (16, 64)
    w34 = pk_ref[R_W34:R_W34 + NF3 + NF4, 0:G4]            # (32, 64) = [wx4; wh4]
    b4 = pk_ref[R_B4:R_B4 + 1, 0:G4]                       # (1, 64)

    def lstm_cell(g, c_prev, hid):
        # one full-width sigmoid + one full-width tanh, then slice (i, f, o, g)
        sg = jax.nn.sigmoid(g)
        th = jnp.tanh(g)
        c_new = sg[:, hid:2 * hid] * c_prev + sg[:, 0:hid] * th[:, 3 * hid:4 * hid]
        return sg[:, 2 * hid:3 * hid] * jnp.tanh(c_new), c_new

    h3 = jnp.zeros((B, NF3), jnp.float32)
    c3 = jnp.zeros((B, NF3), jnp.float32)
    h4 = jnp.zeros((B, NF4), jnp.float32)
    c4 = jnp.zeros((B, NF4), jnp.float32)

    for t in range(T):
        # lstm3: precomputed x-gate rows + single recurrent dot
        g3 = xg3[:, t, :] + jnp.dot(h3, wh3, preferred_element_type=jnp.float32)
        h3, c3 = lstm_cell(g3, c3, NF3)

        # lstm4: one fused dot on [h3 | h4]
        h34_sc[:, 0:NF3] = h3
        h34_sc[:, NF3:NF3 + NF4] = h4
        g4 = b4 + jnp.dot(h34_sc[...], w34, preferred_element_type=jnp.float32)
        h4, c4 = lstm_cell(g4, c4, NF4)

        h4_sc[t * B:(t + 1) * B, :] = h4                   # stash for the batched conv5

    # -------- conv5 (1x1 conv) as one batched matmul + one lane-dense store ----------
    w5 = pk_ref[R_W5:R_W5 + NF4, :]                        # (16, 128), cols 0:12 used
    b5 = pk_ref[R_B5:R_B5 + 1, :]                          # (1, 128)
    o_ref[...] = jnp.dot(h4_sc[...], w5, preferred_element_type=jnp.float32) + b5


# ----------------------------- wrapper ---------------------------------------
def net_forward(x_nchw, params):
    # x_nchw: (B, 1, T, F) float32, PyTorch layout.
    B, _, T, F = x_nchw.shape
    x3 = jnp.pad(x_nchw[:, 0], ((0, 0), (0, 0), (0, FP - F)))       # (B, T, 128)
    vmem = pl.BlockSpec(memory_space=pltpu.MemorySpace.VMEM)
    smem = pl.BlockSpec(memory_space=pltpu.MemorySpace.SMEM)
    out = pl.pallas_call(
        fused_net_kernel,
        out_shape=jax.ShapeDtypeStruct((T * B, FP), jnp.float32),
        in_specs=[vmem,     # padded input
                  smem,     # packed conv weights/biases (scalars)
                  vmem],    # packed lstm/conv5 parameters (128-lane padded)
        out_specs=vmem,
        scratch_shapes=[pltpu.VMEM((B, NF3 + NF4), jnp.float32),    # [h3 | h4] assembly
                        pltpu.VMEM((T * B, NF4), jnp.float32)],     # per-step h4 stash
    )(x3, params["cw"], params["pk"])
    y = out[:, :N_NOTE].reshape(T, B, N_NOTE)
    return jnp.transpose(y, (1, 2, 0))[..., None]          # (B, n_note, T, 1)


net_forward = jax.jit(net_forward)


# ----------------------------- deterministic params --------------------------
def make_lstm_params(key, cin, hidden, k=3, scale=0.1):
    kw_, kb_ = jax.random.split(key)
    # PyTorch ConvLSTM cell: Conv2d(cin + hidden, 4*hidden, k, padding=k//2); with a (1,1)
    # spatial grid and zero padding only the centre tap contributes.
    w_full = scale * jax.random.normal(kw_, (4 * hidden, cin + hidden, k, k), jnp.float32)
    b_full = scale * jax.random.normal(kb_, (4 * hidden,), jnp.float32)
    wc = w_full[:, :, k // 2, k // 2]          # (4H, cin+H); gate blocks (i, f, o, g)
    wx = wc[:, :cin].T                         # (cin, 4H)
    wh = wc[:, cin:].T                         # (H, 4H)
    b = b_full.reshape(1, 4 * hidden)          # (1, 4H)
    return wx, wh, b


def make_params(key, scale=0.1):
    ks = jax.random.split(key, 8)
    w1 = scale * jax.random.normal(ks[0], (K1, K1, 1, NF1), jnp.float32)
    b1 = scale * jax.random.normal(ks[1], (NF1,), jnp.float32)
    w2 = scale * jax.random.normal(ks[2], (K2, K2, NF1, NF2), jnp.float32)
    b2 = scale * jax.random.normal(ks[3], (NF2,), jnp.float32)
    wx3, wh3, b3 = make_lstm_params(ks[4], LSTM3_CIN, NF3, K1)
    wx4, wh4, b4 = make_lstm_params(ks[5], NF3, NF4, K1)
    w5 = scale * jax.random.normal(ks[6], (NF4, N_NOTE), jnp.float32)
    b5 = scale * jax.random.normal(ks[7], (1, N_NOTE), jnp.float32)

    # single SMEM scalar pack for the two conv layers
    cw = jnp.concatenate([w1.reshape(-1), b1, w2.reshape(-1), b2])
    assert cw.shape[0] == CW_LEN

    # Sparse-lane expansion of the lstm3 input weights (done once at param-prep time):
    # PyTorch feature index (c*24 + f'') lives on lane 4*f'' of conv2/pool2 channel c.
    wx3_blk = jnp.zeros((NF2, FP, G3), jnp.float32)
    wx3_blk = wx3_blk.at[:, 0:4 * F_POOL2:4, :].set(wx3.reshape(NF2, F_POOL2, G3))

    # single 128-lane-padded VMEM parameter pack
    pk = jnp.zeros((PK_ROWS, FP), jnp.float32)
    pk = pk.at[R_WX3:R_WX3 + NF2 * FP, 0:G3].set(wx3_blk.reshape(NF2 * FP, G3))
    pk = pk.at[R_WH3:R_WH3 + NF3, 0:G3].set(wh3)
    pk = pk.at[R_B3, 0:G3].set(b3[0])
    pk = pk.at[R_W34:R_W34 + NF3 + NF4, 0:G4].set(jnp.concatenate([wx4, wh4], axis=0))
    pk = pk.at[R_B4, 0:G4].set(b4[0])
    pk = pk.at[R_W5:R_W5 + NF4, 0:N_NOTE].set(w5)
    pk = pk.at[R_B5, 0:N_NOTE].set(b5[0])

    return {
        "w1": w1, "b1": b1, "w2": w2, "b2": b2,
        "wx3": wx3, "wh3": wh3, "b3": b3,
        "wx4": wx4, "wh4": wh4, "b4": b4,
        "w5": w5, "b5": b5,
        "cw": cw, "pk": pk,
    }


# ----------------------------- plain-JAX reference ---------------------------
def ref_forward(x_nchw, params):
    hp = lax.Precision.HIGHEST
    w1 = jnp.transpose(params["w1"], (3, 2, 0, 1))         # (co, ci, kh, kw)
    w2 = jnp.transpose(params["w2"], (3, 2, 0, 1))
    a = lax.conv_general_dilated(x_nchw, w1, (1, 1), ((PAD1, PAD1), (PAD1, PAD1)),
                                 dimension_numbers=("NCHW", "OIHW", "NCHW"), precision=hp)
    a = jax.nn.elu(a + params["b1"].reshape(1, -1, 1, 1))
    a = jnp.maximum(a[..., 0::2], a[..., 1::2])            # MaxPool3d((1,1,2))
    a = lax.conv_general_dilated(a, w2, (1, 1), ((PAD2, PAD2), (PAD2, PAD2)),
                                 dimension_numbers=("NCHW", "OIHW", "NCHW"), precision=hp)
    a = jax.nn.elu(a + params["b2"].reshape(1, -1, 1, 1))
    a = jnp.maximum(a[..., 0::2], a[..., 1::2])            # (B, NF2, T, 24)
    feat = jnp.transpose(a, (0, 2, 1, 3)).reshape(a.shape[0], a.shape[2], -1)  # (B,T,96)

    def run_lstm(seq, wx, wh, b, hid):
        h = jnp.zeros((seq.shape[0], hid), jnp.float32)
        c = jnp.zeros((seq.shape[0], hid), jnp.float32)
        hs = []
        for t in range(seq.shape[1]):
            g = (jnp.dot(seq[:, t, :], wx, precision=hp)
                 + jnp.dot(h, wh, precision=hp) + b)
            i_g = jax.nn.sigmoid(g[:, :hid])
            f_g = jax.nn.sigmoid(g[:, hid:2 * hid])
            o_g = jax.nn.sigmoid(g[:, 2 * hid:3 * hid])
            g_g = jnp.tanh(g[:, 3 * hid:])
            c = f_g * c + i_g * g_g
            h = o_g * jnp.tanh(c)
            hs.append(h)
        return jnp.stack(hs, axis=1)                        # (B, T, hid)

    h3 = run_lstm(feat, params["wx3"], params["wh3"], params["b3"], NF3)
    h4 = run_lstm(h3, params["wx4"], params["wh4"], params["b4"], NF4)
    y = jnp.einsum("bth,hn->bnt", h4, params["w5"], precision=hp)
    y = y + params["b5"].reshape(1, -1, 1)
    return y[..., None]                                     # (B, n_note, T, 1)


ref_forward = jax.jit(ref_forward)


# ----------------------------- main -------------------------------------------
if __name__ == "__main__":
    key = jax.random.PRNGKey(0)
    kp, kx = jax.random.split(key)
    params = make_params(kp)
    x = jax.random.normal(kx, (BATCH, 1, T_LEN, F_BINS), jnp.float32)   # NCHW input

    y = jax.block_until_ready(net_forward(x, params))
    assert y.shape == (BATCH, N_NOTE, T_LEN, 1), y.shape
    assert bool(jnp.all(jnp.isfinite(y)))

    # sanity-check the fused kernel against a plain-JAX reference of the same network
    y_ref = jax.block_until_ready(ref_forward(x, params))
    err = float(jnp.max(jnp.abs(y - y_ref)))
    assert err < 5e-3, f"kernel/reference mismatch: max abs err = {err}"

    print("KERNEL_OK")
</pallas_src>

<mosaic_0001>
module attributes {stable_mosaic.version = 11 : i64} {
  func.func @fused_net_kernel(%arg0: memref<2x8x128xf32, #tpu.memory_space<vmem>>, %arg1: memref<188xf32, #tpu.memory_space<smem>>, %arg2: memref<600x128xf32, #tpu.memory_space<vmem>>, %arg3: memref<16x128xf32, #tpu.memory_space<vmem>>, %arg4: memref<2x32xf32, #tpu.memory_space<vmem>>, %arg5: memref<16x16xf32, #tpu.memory_space<vmem>>) attributes {dimension_semantics = [], scalar_prefetch = 0 : i64, scratch_operands = 2 : i64, tpu.core_type = #tpu.core_type<tc>} {
    %c0 = arith.constant 0 : index
    %c0_0 = arith.constant 0 : index
    %c0_1 = arith.constant 0 : index
    %0 = vector.load %arg0[%c0, %c0_0, %c0_1] : memref<2x8x128xf32, #tpu.memory_space<vmem>>, vector<2x8x128xf32>
    %1 = tpu.iota {dimensions = array<i32: 1>} : vector<2x8x128xi32>
    %2 = tpu.iota {dimensions = array<i32: 2>} : vector<2x8x128xi32>
    %c7_i32 = arith.constant 7 : i32
    %3 = vector.broadcast %c7_i32 : i32 to vector<2x8x128xi32>
    %4 = arith.cmpi slt, %1, %3 : vector<2x8x128xi32>
    %c1_i32 = arith.constant 1 : i32
    %5 = vector.broadcast %c1_i32 : i32 to vector<2x8x128xi32>
    %6 = arith.cmpi sge, %1, %5 : vector<2x8x128xi32>
    %c96_i32 = arith.constant 96 : i32
    %7 = vector.broadcast %c96_i32 : i32 to vector<2x8x128xi32>
    %8 = arith.cmpi slt, %2, %7 : vector<2x8x128xi32>
    %cst = arith.constant 0.000000e+00 : f32
    %9 = vector.broadcast %cst : f32 to vector<2x8x128xf32>
    %cst_2 = arith.constant 0.000000e+00 : f32
    %10 = vector.broadcast %cst_2 : f32 to vector<2x8x128xf32>
    %cst_3 = arith.constant 0.000000e+00 : f32
    %11 = vector.broadcast %cst_3 : f32 to vector<2x8x128xf32>
    %cst_4 = arith.constant 0.000000e+00 : f32
    %12 = vector.broadcast %cst_4 : f32 to vector<2x8x128xf32>
    %c1_i32_5 = arith.constant 1 : i32
    %13 = tpu.dynamic_rotate %0 by %c1_i32_5 dim 1 : vector<2x8x128xf32>, i32 -> vector<2x8x128xf32>
    %cst_6 = arith.constant 0.000000e+00 : f32
    %14 = vector.broadcast %cst_6 : f32 to vector<2x8x128xf32>
    %15 = arith.select %6, %13, %14 : vector<2x8x128xi1>, vector<2x8x128xf32>
    %c1_i32_7 = arith.constant 1 : i32
    %16 = tpu.dynamic_rotate %15 by %c1_i32_7 dim 2 : vector<2x8x128xf32>, i32 -> vector<2x8x128xf32>
    %c0_8 = arith.constant 0 : index
    %17 = memref.load %arg1[%c0_8] : memref<188xf32, #tpu.memory_space<smem>>
    %18 = vector.broadcast %17 : f32 to vector<2x8x128xf32>
    %19 = arith.mulf %16, %18 : vector<2x8x128xf32>
    %20 = arith.addf %9, %19 : vector<2x8x128xf32>
    %c1 = arith.constant 1 : index
    %21 = memref.load %arg1[%c1] : memref<188xf32, #tpu.memory_space<smem>>
    %22 = vector.broadcast %21 : f32 to vector<2x8x128xf32>
    %23 = arith.mulf %16, %22 : vector<2x8x128xf32>
    %24 = arith.addf %10, %23 : vector<2x8x128xf32>
    %c2 = arith.constant 2 : index
    %25 = memref.load %arg1[%c2] : memref<188xf32, #tpu.memory_space<smem>>
    %26 = vector.broadcast %25 : f32 to vector<2x8x128xf32>
    %27 = arith.mulf %16, %26 : vector<2x8x128xf32>
    %28 = arith.addf %11, %27 : vector<2x8x128xf32>
    %c3 = arith.constant 3 : index
    %29 = memref.load %arg1[%c3] : memref<188xf32, #tpu.memory_space<smem>>
    %30 = vector.broadcast %29 : f32 to vector<2x8x128xf32>
    %31 = arith.mulf %16, %30 : vector<2x8x128xf32>
    %32 = arith.addf %12, %31 : vector<2x8x128xf32>
    %c4 = arith.constant 4 : index
    %33 = memref.load %arg1[%c4] : memref<188xf32, #tpu.memory_space<smem>>
    %34 = vector.broadcast %33 : f32 to vector<2x8x128xf32>
    %35 = arith.mulf %15, %34 : vector<2x8x128xf32>
    %36 = arith.addf %20, %35 : vector<2x8x128xf32>
    %c5 = arith.constant 5 : index
    %37 = memref.load %arg1[%c5] : memref<188xf32, #tpu.memory_space<smem>>
    %38 = vector.broadcast %37 : f32 to vector<2x8x128xf32>
    %39 = arith.mulf %15, %38 : vector<2x8x128xf32>
    %40 = arith.addf %24, %39 : vector<2x8x128xf32>
    %c6 = arith.constant 6 : index
    %41 = memref.load %arg1[%c6] : memref<188xf32, #tpu.memory_space<smem>>
    %42 = vector.broadcast %41 : f32 to vector<2x8x128xf32>
    %43 = arith.mulf %15, %42 : vector<2x8x128xf32>
    %44 = arith.addf %28, %43 : vector<2x8x128xf32>
    %c7 = arith.constant 7 : index
    %45 = memref.load %arg1[%c7] : memref<188xf32, #tpu.memory_space<smem>>
    %46 = vector.broadcast %45 : f32 to vector<2x8x128xf32>
    %47 = arith.mulf %15, %46 : vector<2x8x128xf32>
    %48 = arith.addf %32, %47 : vector<2x8x128xf32>
    %c127_i32 = arith.constant 127 : i32
    %49 = tpu.dynamic_rotate %15 by %c127_i32 dim 2 : vector<2x8x128xf32>, i32 -> vector<2x8x128xf32>
    %c8 = arith.constant 8 : index
    %50 = memref.load %arg1[%c8] : memref<188xf32, #tpu.memory_space<smem>>
    %51 = vector.broadcast %50 : f32 to vector<2x8x128xf32>
    %52 = arith.mulf %49, %51 : vector<2x8x128xf32>
    %53 = arith.addf %36, %52 : vector<2x8x128xf32>
    %c9 = arith.constant 9 : index
    %54 = memref.load %arg1[%c9] : memref<188xf32, #tpu.memory_space<smem>>
    %55 = vector.broadcast %54 : f32 to vector<2x8x128xf32>
    %56 = arith.mulf %49, %55 : vector<2x8x128xf32>
    %57 = arith.addf %40, %56 : vector<2x8x128xf32>
    %c10 = arith.constant 10 : index
    %58 = memref.load %arg1[%c10] : memref<188xf32, #tpu.memory_space<smem>>
    %59 = vector.broadcast %58 : f32 to vector<2x8x128xf32>
    %60 = arith.mulf %49, %59 : vector<2x8x128xf32>
    %61 = arith.addf %44, %60 : vector<2x8x128xf32>
    %c11 = arith.constant 11 : index
    %62 = memref.load %arg1[%c11] : memref<188xf32, #tpu.memory_space<smem>>
    %63 = vector.broadcast %62 : f32 to vector<2x8x128xf32>
    %64 = arith.mulf %49, %63 : vector<2x8x128xf32>
    %65 = arith.addf %48, %64 : vector<2x8x128xf32>
    %c1_i32_9 = arith.constant 1 : i32
    %66 = tpu.dynamic_rotate %0 by %c1_i32_9 dim 2 : vector<2x8x128xf32>, i32 -> vector<2x8x128xf32>
    %c12 = arith.constant 12 : index
    %67 = memref.load %arg1[%c12] : memref<188xf32, #tpu.memory_space<smem>>
    %68 = vector.broadcast %67 : f32 to vector<2x8x128xf32>
    %69 = arith.mulf %66, %68 : vector<2x8x128xf32>
    %70 = arith.addf %53, %69 : vector<2x8x128xf32>
    %c13 = arith.constant 13 : index
    %71 = memref.load %arg1[%c13] : memref<188xf32, #tpu.memory_space<smem>>
    %72 = vector.broadcast %71 : f32 to vector<2x8x128xf32>
    %73 = arith.mulf %66, %72 : vector<2x8x128xf32>
    %74 = arith.addf %57, %73 : vector<2x8x128xf32>
    %c14 = arith.constant 14 : index
    %75 = memref.load %arg1[%c14] : memref<188xf32, #tpu.memory_space<smem>>
    %76 = vector.broadcast %75 : f32 to vector<2x8x128xf32>
    %77 = arith.mulf %66, %76 : vector<2x8x128xf32>
    %78 = arith.addf %61, %77 : vector<2x8x128xf32>
    %c15 = arith.constant 15 : index
    %79 = memref.load %arg1[%c15] : memref<188xf32, #tpu.memory_space<smem>>
    %80 = vector.broadcast %79 : f32 to vector<2x8x128xf32>
    %81 = arith.mulf %66, %80 : vector<2x8x128xf32>
    %82 = arith.addf %65, %81 : vector<2x8x128xf32>
    %c16 = arith.constant 16 : index
    %83 = memref.load %arg1[%c16] : memref<188xf32, #tpu.memory_space<smem>>
    %84 = vector.broadcast %83 : f32 to vector<2x8x128xf32>
    %85 = arith.mulf %0, %84 : vector<2x8x128xf32>
    %86 = arith.addf %70, %85 : vector<2x8x128xf32>
    %c17 = arith.constant 17 : index
    %87 = memref.load %arg1[%c17] : memref<188xf32, #tpu.memory_space<smem>>
    %88 = vector.broadcast %87 : f32 to vector<2x8x128xf32>
    %89 = arith.mulf %0, %88 : vector<2x8x128xf32>
    %90 = arith.addf %74, %89 : vector<2x8x128xf32>
    %c18 = arith.constant 18 : index
    %91 = memref.load %arg1[%c18] : memref<188xf32, #tpu.memory_space<smem>>
    %92 = vector.broadcast %91 : f32 to vector<2x8x128xf32>
    %93 = arith.mulf %0, %92 : vector<2x8x128xf32>
    %94 = arith.addf %78, %93 : vector<2x8x128xf32>
    %c19 = arith.constant 19 : index
    %95 = memref.load %arg1[%c19] : memref<188xf32, #tpu.memory_space<smem>>
    %96 = vector.broadcast %95 : f32 to vector<2x8x128xf32>
    %97 = arith.mulf %0, %96 : vector<2x8x128xf32>
    %98 = arith.addf %82, %97 : vector<2x8x128xf32>
    %c127_i32_10 = arith.constant 127 : i32
    %99 = tpu.dynamic_rotate %0 by %c127_i32_10 dim 2 : vector<2x8x128xf32>, i32 -> vector<2x8x128xf32>
    %c20 = arith.constant 20 : index
    %100 = memref.load %arg1[%c20] : memref<188xf32, #tpu.memory_space<smem>>
    %101 = vector.broadcast %100 : f32 to vector<2x8x128xf32>
    %102 = arith.mulf %99, %101 : vector<2x8x128xf32>
    %103 = arith.addf %86, %102 : vector<2x8x128xf32>
    %c21 = arith.constant 21 : index
    %104 = memref.load %arg1[%c21] : memref<188xf32, #tpu.memory_space<smem>>
    %105 = vector.broadcast %104 : f32 to vector<2x8x128xf32>
    %106 = arith.mulf %99, %105 : vector<2x8x128xf32>
    %107 = arith.addf %90, %106 : vector<2x8x128xf32>
    %c22 = arith.constant 22 : index
    %108 = memref.load %arg1[%c22] : memref<188xf32, #tpu.memory_space<smem>>
    %109 = vector.broadcast %108 : f32 to vector<2x8x128xf32>
    %110 = arith.mulf %99, %109 : vector<2x8x128xf32>
    %111 = arith.addf %94, %110 : vector<2x8x128xf32>
    %c23 = arith.constant 23 : index
    %112 = memref.load %arg1[%c23] : memref<188xf32, #tpu.memory_space<smem>>
    %113 = vector.broadcast %112 : f32 to vector<2x8x128xf32>
    %114 = arith.mulf %99, %113 : vector<2x8x128xf32>
    %115 = arith.addf %98, %114 : vector<2x8x128xf32>
    %c7_i32_11 = arith.constant 7 : i32
    %116 = tpu.dynamic_rotate %0 by %c7_i32_11 dim 1 : vector<2x8x128xf32>, i32 -> vector<2x8x128xf32>
    %cst_12 = arith.constant 0.000000e+00 : f32
    %117 = vector.broadcast %cst_12 : f32 to vector<2x8x128xf32>
    %118 = arith.select %4, %116, %117 : vector<2x8x128xi1>, vector<2x8x128xf32>
    %c1_i32_13 = arith.constant 1 : i32
    %119 = tpu.dynamic_rotate %118 by %c1_i32_13 dim 2 : vector<2x8x128xf32>, i32 -> vector<2x8x128xf32>
    %c24 = arith.constant 24 : index
    %120 = memref.load %arg1[%c24] : memref<188xf32, #tpu.memory_space<smem>>
    %121 = vector.broadcast %120 : f32 to vector<2x8x128xf32>
    %122 = arith.mulf %119, %121 : vector<2x8x128xf32>
    %123 = arith.addf %103, %122 : vector<2x8x128xf32>
    %c25 = arith.constant 25 : index
    %124 = memref.load %arg1[%c25] : memref<188xf32, #tpu.memory_space<smem>>
    %125 = vector.broadcast %124 : f32 to vector<2x8x128xf32>
    %126 = arith.mulf %119, %125 : vector<2x8x128xf32>
    %127 = arith.addf %107, %126 : vector<2x8x128xf32>
    %c26 = arith.constant 26 : index
    %128 = memref.load %arg1[%c26] : memref<188xf32, #tpu.memory_space<smem>>
    %129 = vector.broadcast %128 : f32 to vector<2x8x128xf32>
    %130 = arith.mulf %119, %129 : vector<2x8x128xf32>
    %131 = arith.addf %111, %130 : vector<2x8x128xf32>
    %c27 = arith.constant 27 : index
    %132 = memref.load %arg1[%c27] : memref<188xf32, #tpu.memory_space<smem>>
    %133 = vector.broadcast %132 : f32 to vector<2x8x128xf32>
    %134 = arith.mulf %119, %133 : vector<2x8x128xf32>
    %135 = arith.addf %115, %134 : vector<2x8x128xf32>
    %c28 = arith.constant 28 : index
    %136 = memref.load %arg1[%c28] : memref<188xf32, #tpu.memory_space<smem>>
    %137 = vector.broadcast %136 : f32 to vector<2x8x128xf32>
    %138 = arith.mulf %118, %137 : vector<2x8x128xf32>
    %139 = arith.addf %123, %138 : vector<2x8x128xf32>
    %c29 = arith.constant 29 : index
    %140 = memref.load %arg1[%c29] : memref<188xf32, #tpu.memory_space<smem>>
    %141 = vector.broadcast %140 : f32 to vector<2x8x128xf32>
    %142 = arith.mulf %118, %141 : vector<2x8x128xf32>
    %143 = arith.addf %127, %142 : vector<2x8x128xf32>
    %c30 = arith.constant 30 : index
    %144 = memref.load %arg1[%c30] : memref<188xf32, #tpu.memory_space<smem>>
    %145 = vector.broadcast %144 : f32 to vector<2x8x128xf32>
    %146 = arith.mulf %118, %145 : vector<2x8x128xf32>
    %147 = arith.addf %131, %146 : vector<2x8x128xf32>
    %c31 = arith.constant 31 : index
    %148 = memref.load %arg1[%c31] : memref<188xf32, #tpu.memory_space<smem>>
    %149 = vector.broadcast %148 : f32 to vector<2x8x128xf32>
    %150 = arith.mulf %118, %149 : vector<2x8x128xf32>
    %151 = arith.addf %135, %150 : vector<2x8x128xf32>
    %c127_i32_14 = arith.constant 127 : i32
    %152 = tpu.dynamic_rotate %118 by %c127_i32_14 dim 2 : vector<2x8x128xf32>, i32 -> vector<2x8x128xf32>
    %c32 = arith.constant 32 : index
    %153 = memref.load %arg1[%c32] : memref<188xf32, #tpu.memory_space<smem>>
    %154 = vector.broadcast %153 : f32 to vector<2x8x128xf32>
    %155 = arith.mulf %152, %154 : vector<2x8x128xf32>
    %156 = arith.addf %139, %155 : vector<2x8x128xf32>
    %c33 = arith.constant 33 : index
    %157 = memref.load %arg1[%c33] : memref<188xf32, #tpu.memory_space<smem>>
    %158 = vector.broadcast %157 : f32 to vector<2x8x128xf32>
    %159 = arith.mulf %152, %158 : vector<2x8x128xf32>
    %160 = arith.addf %143, %159 : vector<2x8x128xf32>
    %c34 = arith.constant 34 : index
    %161 = memref.load %arg1[%c34] : memref<188xf32, #tpu.memory_space<smem>>
    %162 = vector.broadcast %161 : f32 to vector<2x8x128xf32>
    %163 = arith.mulf %152, %162 : vector<2x8x128xf32>
    %164 = arith.addf %147, %163 : vector<2x8x128xf32>
    %c35 = arith.constant 35 : index
    %165 = memref.load %arg1[%c35] : memref<188xf32, #tpu.memory_space<smem>>
    %166 = vector.broadcast %165 : f32 to vector<2x8x128xf32>
    %167 = arith.mulf %152, %166 : vector<2x8x128xf32>
    %168 = arith.addf %151, %167 : vector<2x8x128xf32>
    %c36 = arith.constant 36 : index
    %169 = memref.load %arg1[%c36] : memref<188xf32, #tpu.memory_space<smem>>
    %170 = vector.broadcast %169 : f32 to vector<2x8x128xf32>
    %171 = arith.addf %156, %170 : vector<2x8x128xf32>
    %cst_15 = arith.constant 0.000000e+00 : f32
    %172 = vector.broadcast %cst_15 : f32 to vector<2x8x128xf32>
    %173 = arith.cmpf ogt, %171, %172 : vector<2x8x128xf32>
    %174 = math.exp %171 : vector<2x8x128xf32>
    %cst_16 = arith.constant 1.000000e+00 : f32
    %175 = vector.broadcast %cst_16 : f32 to vector<2x8x128xf32>
    %176 = arith.subf %174, %175 : vector<2x8x128xf32>
    %177 = arith.select %173, %171, %176 : vector<2x8x128xi1>, vector<2x8x128xf32>
    %c127_i32_17 = arith.constant 127 : i32
    %178 = tpu.dynamic_rotate %177 by %c127_i32_17 dim 2 : vector<2x8x128xf32>, i32 -> vector<2x8x128xf32>
    %179 = arith.maximumf %177, %178 : vector<2x8x128xf32>
    %cst_18 = arith.constant 0.000000e+00 : f32
    %180 = vector.broadcast %cst_18 : f32 to vector<2x8x128xf32>
    %181 = arith.select %8, %179, %180 : vector<2x8x128xi1>, vector<2x8x128xf32>
    %c37 = arith.constant 37 : index
    %182 = memref.load %arg1[%c37] : memref<188xf32, #tpu.memory_space<smem>>
    %183 = vector.broadcast %182 : f32 to vector<2x8x128xf32>
    %184 = arith.addf %160, %183 : vector<2x8x128xf32>
    %cst_19 = arith.constant 0.000000e+00 : f32
    %185 = vector.broadcast %cst_19 : f32 to vector<2x8x128xf32>
    %186 = arith.cmpf ogt, %184, %185 : vector<2x8x128xf32>
    %187 = math.exp %184 : vector<2x8x128xf32>
    %cst_20 = arith.constant 1.000000e+00 : f32
    %188 = vector.broadcast %cst_20 : f32 to vector<2x8x128xf32>
    %189 = arith.subf %187, %188 : vector<2x8x128xf32>
    %190 = arith.select %186, %184, %189 : vector<2x8x128xi1>, vector<2x8x128xf32>
    %c127_i32_21 = arith.constant 127 : i32
    %191 = tpu.dynamic_rotate %190 by %c127_i32_21 dim 2 : vector<2x8x128xf32>, i32 -> vector<2x8x128xf32>
    %192 = arith.maximumf %190, %191 : vector<2x8x128xf32>
    %cst_22 = arith.constant 0.000000e+00 : f32
    %193 = vector.broadcast %cst_22 : f32 to vector<2x8x128xf32>
    %194 = arith.select %8, %192, %193 : vector<2x8x128xi1>, vector<2x8x128xf32>
    %c38 = arith.constant 38 : index
    %195 = memref.load %arg1[%c38] : memref<188xf32, #tpu.memory_space<smem>>
    %196 = vector.broadcast %195 : f32 to vector<2x8x128xf32>
    %197 = arith.addf %164, %196 : vector<2x8x128xf32>
    %cst_23 = arith.constant 0.000000e+00 : f32
    %198 = vector.broadcast %cst_23 : f32 to vector<2x8x128xf32>
    %199 = arith.cmpf ogt, %197, %198 : vector<2x8x128xf32>
    %200 = math.exp %197 : vector<2x8x128xf32>
    %cst_24 = arith.constant 1.000000e+00 : f32
    %201 = vector.broadcast %cst_24 : f32 to vector<2x8x128xf32>
    %202 = arith.subf %200, %201 : vector<2x8x128xf32>
    %203 = arith.select %199, %197, %202 : vector<2x8x128xi1>, vector<2x8x128xf32>
    %c127_i32_25 = arith.constant 127 : i32
    %204 = tpu.dynamic_rotate %203 by %c127_i32_25 dim 2 : vector<2x8x128xf32>, i32 -> vector<2x8x128xf32>
    %205 = arith.maximumf %203, %204 : vector<2x8x128xf32>
    %cst_26 = arith.constant 0.000000e+00 : f32
    %206 = vector.broadcast %cst_26 : f32 to vector<2x8x128xf32>
    %207 = arith.select %8, %205, %206 : vector<2x8x128xi1>, vector<2x8x128xf32>
    %c39 = arith.constant 39 : index
    %208 = memref.load %arg1[%c39] : memref<188xf32, #tpu.memory_space<smem>>
    %209 = vector.broadcast %208 : f32 to vector<2x8x128xf32>
    %210 = arith.addf %168, %209 : vector<2x8x128xf32>
    %cst_27 = arith.constant 0.000000e+00 : f32
    %211 = vector.broadcast %cst_27 : f32 to vector<2x8x128xf32>
    %212 = arith.cmpf ogt, %210, %211 : vector<2x8x128xf32>
    %213 = math.exp %210 : vector<2x8x128xf32>
    %cst_28 = arith.constant 1.000000e+00 : f32
    %214 = vector.broadcast %cst_28 : f32 to vector<2x8x128xf32>
    %215 = arith.subf %213, %214 : vector<2x8x128xf32>
    %216 = arith.select %212, %210, %215 : vector<2x8x128xi1>, vector<2x8x128xf32>
    %c127_i32_29 = arith.constant 127 : i32
    %217 = tpu.dynamic_rotate %216 by %c127_i32_29 dim 2 : vector<2x8x128xf32>, i32 -> vector<2x8x128xf32>
    %218 = arith.maximumf %216, %217 : vector<2x8x128xf32>
    %cst_30 = arith.constant 0.000000e+00 : f32
    %219 = vector.broadcast %cst_30 : f32 to vector<2x8x128xf32>
    %220 = arith.select %8, %218, %219 : vector<2x8x128xi1>, vector<2x8x128xf32>
    %cst_31 = arith.constant 0.000000e+00 : f32
    %221 = vector.broadcast %cst_31 : f32 to vector<2x8x128xf32>
    %cst_32 = arith.constant 0.000000e+00 : f32
    %222 = vector.broadcast %cst_32 : f32 to vector<2x8x128xf32>
    %cst_33 = arith.constant 0.000000e+00 : f32
    %223 = vector.broadcast %cst_33 : f32 to vector<2x8x128xf32>
    %cst_34 = arith.constant 0.000000e+00 : f32
    %224 = vector.broadcast %cst_34 : f32 to vector<2x8x128xf32>
    %c1_i32_35 = arith.constant 1 : i32
    %225 = tpu.dynamic_rotate %181 by %c1_i32_35 dim 1 : vector<2x8x128xf32>, i32 -> vector<2x8x128xf32>
    %cst_36 = arith.constant 0.000000e+00 : f32
    %226 = vector.broadcast %cst_36 : f32 to vector<2x8x128xf32>
    %227 = arith.select %6, %225, %226 : vector<2x8x128xi1>, vector<2x8x128xf32>
    %c2_i32 = arith.constant 2 : i32
    %228 = tpu.dynamic_rotate %227 by %c2_i32 dim 2 : vector<2x8x128xf32>, i32 -> vector<2x8x128xf32>
    %c40 = arith.constant 40 : index
    %229 = memref.load %arg1[%c40] : memref<188xf32, #tpu.memory_space<smem>>
    %230 = vector.broadcast %229 : f32 to vector<2x8x128xf32>
    %231 = arith.mulf %228, %230 : vector<2x8x128xf32>
    %232 = arith.addf %221, %231 : vector<2x8x128xf32>
    %c41 = arith.constant 41 : index
    %233 = memref.load %arg1[%c41] : memref<188xf32, #tpu.memory_space<smem>>
    %234 = vector.broadcast %233 : f32 to vector<2x8x128xf32>
    %235 = arith.mulf %228, %234 : vector<2x8x128xf32>
    %236 = arith.addf %222, %235 : vector<2x8x128xf32>
    %c42 = arith.constant 42 : index
    %237 = memref.load %arg1[%c42] : memref<188xf32, #tpu.memory_space<smem>>
    %238 = vector.broadcast %237 : f32 to vector<2x8x128xf32>
    %239 = arith.mulf %228, %238 : vector<2x8x128xf32>
    %240 = arith.addf %223, %239 : vector<2x8x128xf32>
    %c43 = arith.constant 43 : index
    %241 = memref.load %arg1[%c43] : memref<188xf32, #tpu.memory_space<smem>>
    %242 = vector.broadcast %241 : f32 to vector<2x8x128xf32>
    %243 = arith.mulf %228, %242 : vector<2x8x128xf32>
    %244 = arith.addf %224, %243 : vector<2x8x128xf32>
    %c56 = arith.constant 56 : index
    %245 = memref.load %arg1[%c56] : memref<188xf32, #tpu.memory_space<smem>>
    %246 = vector.broadcast %245 : f32 to vector<2x8x128xf32>
    %247 = arith.mulf %227, %246 : vector<2x8x128xf32>
    %248 = arith.addf %232, %247 : vector<2x8x128xf32>
    %c57 = arith.constant 57 : index
    %249 = memref.load %arg1[%c57] : memref<188xf32, #tpu.memory_space<smem>>
    %250 = vector.broadcast %249 : f32 to vector<2x8x128xf32>
    %251 = arith.mulf %227, %250 : vector<2x8x128xf32>
    %252 = arith.addf %236, %251 : vector<2x8x128xf32>
    %c58 = arith.constant 58 : index
    %253 = memref.load %arg1[%c58] : memref<188xf32, #tpu.memory_space<smem>>
    %254 = vector.broadcast %253 : f32 to vector<2x8x128xf32>
    %255 = arith.mulf %227, %254 : vector<2x8x128xf32>
    %256 = arith.addf %240, %255 : vector<2x8x128xf32>
    %c59 = arith.constant 59 : index
    %257 = memref.load %arg1[%c59] : memref<188xf32, #tpu.memory_space<smem>>
    %258 = vector.broadcast %257 : f32 to vector<2x8x128xf32>
    %259 = arith.mulf %227, %258 : vector<2x8x128xf32>
    %260 = arith.addf %244, %259 : vector<2x8x128xf32>
    %c126_i32 = arith.constant 126 : i32
    %261 = tpu.dynamic_rotate %227 by %c126_i32 dim 2 : vector<2x8x128xf32>, i32 -> vector<2x8x128xf32>
    %c72 = arith.constant 72 : index
    %262 = memref.load %arg1[%c72] : memref<188xf32, #tpu.memory_space<smem>>
    %263 = vector.broadcast %262 : f32 to vector<2x8x128xf32>
    %264 = arith.mulf %261, %263 : vector<2x8x128xf32>
    %265 = arith.addf %248, %264 : vector<2x8x128xf32>
    %c73 = arith.constant 73 : index
    %266 = memref.load %arg1[%c73] : memref<188xf32, #tpu.memory_space<smem>>
    %267 = vector.broadcast %266 : f32 to vector<2x8x128xf32>
    %268 = arith.mulf %261, %267 : vector<2x8x128xf32>
    %269 = arith.addf %252, %268 : vector<2x8x128xf32>
    %c74 = arith.constant 74 : index
    %270 = memref.load %arg1[%c74] : memref<188xf32, #tpu.memory_space<smem>>
    %271 = vector.broadcast %270 : f32 to vector<2x8x128xf32>
    %272 = arith.mulf %261, %271 : vector<2x8x128xf32>
    %273 = arith.addf %256, %272 : vector<2x8x128xf32>
    %c75 = arith.constant 75 : index
    %274 = memref.load %arg1[%c75] : memref<188xf32, #tpu.memory_space<smem>>
    %275 = vector.broadcast %274 : f32 to vector<2x8x128xf32>
    %276 = arith.mulf %261, %275 : vector<2x8x128xf32>
    %277 = arith.addf %260, %276 : vector<2x8x128xf32>
    %c2_i32_37 = arith.constant 2 : i32
    %278 = tpu.dynamic_rotate %181 by %c2_i32_37 dim 2 : vector<2x8x128xf32>, i32 -> vector<2x8x128xf32>
    %c88 = arith.constant 88 : index
    %279 = memref.load %arg1[%c88] : memref<188xf32, #tpu.memory_space<smem>>
    %280 = vector.broadcast %279 : f32 to vector<2x8x128xf32>
    %281 = arith.mulf %278, %280 : vector<2x8x128xf32>
    %282 = arith.addf %265, %281 : vector<2x8x128xf32>
    %c89 = arith.constant 89 : index
    %283 = memref.load %arg1[%c89] : memref<188xf32, #tpu.memory_space<smem>>
    %284 = vector.broadcast %283 : f32 to vector<2x8x128xf32>
    %285 = arith.mulf %278, %284 : vector<2x8x128xf32>
    %286 = arith.addf %269, %285 : vector<2x8x128xf32>
    %c90 = arith.constant 90 : index
    %287 = memref.load %arg1[%c90] : memref<188xf32, #tpu.memory_space<smem>>
    %288 = vector.broadcast %287 : f32 to vector<2x8x128xf32>
    %289 = arith.mulf %278, %288 : vector<2x8x128xf32>
    %290 = arith.addf %273, %289 : vector<2x8x128xf32>
    %c91 = arith.constant 91 : index
    %291 = memref.load %arg1[%c91] : memref<188xf32, #tpu.memory_space<smem>>
    %292 = vector.broadcast %291 : f32 to vector<2x8x128xf32>
    %293 = arith.mulf %278, %292 : vector<2x8x128xf32>
    %294 = arith.addf %277, %293 : vector<2x8x128xf32>
    %c104 = arith.constant 104 : index
    %295 = memref.load %arg1[%c104] : memref<188xf32, #tpu.memory_space<smem>>
    %296 = vector.broadcast %295 : f32 to vector<2x8x128xf32>
    %297 = arith.mulf %181, %296 : vector<2x8x128xf32>
    %298 = arith.addf %282, %297 : vector<2x8x128xf32>
    %c105 = arith.constant 105 : index
    %299 = memref.load %arg1[%c105] : memref<188xf32, #tpu.memory_space<smem>>
    %300 = vector.broadcast %299 : f32 to vector<2x8x128xf32>
    %301 = arith.mulf %181, %300 : vector<2x8x128xf32>
    %302 = arith.addf %286, %301 : vector<2x8x128xf32>
    %c106 = arith.constant 106 : index
    %303 = memref.load %arg1[%c106] : memref<188xf32, #tpu.memory_space<smem>>
    %304 = vector.broadcast %303 : f32 to vector<2x8x128xf32>
    %305 = arith.mulf %181, %304 : vector<2x8x128xf32>
    %306 = arith.addf %290, %305 : vector<2x8x128xf32>
    %c107 = arith.constant 107 : index
    %307 = memref.load %arg1[%c107] : memref<188xf32, #tpu.memory_space<smem>>
    %308 = vector.broadcast %307 : f32 to vector<2x8x128xf32>
    %309 = arith.mulf %181, %308 : vector<2x8x128xf32>
    %310 = arith.addf %294, %309 : vector<2x8x128xf32>
    %c126_i32_38 = arith.constant 126 : i32
    %311 = tpu.dynamic_rotate %181 by %c126_i32_38 dim 2 : vector<2x8x128xf32>, i32 -> vector<2x8x128xf32>
    %c120 = arith.constant 120 : index
    %312 = memref.load %arg1[%c120] : memref<188xf32, #tpu.memory_space<smem>>
    %313 = vector.broadcast %312 : f32 to vector<2x8x128xf32>
    %314 = arith.mulf %311, %313 : vector<2x8x128xf32>
    %315 = arith.addf %298, %314 : vector<2x8x128xf32>
    %c121 = arith.constant 121 : index
    %316 = memref.load %arg1[%c121] : memref<188xf32, #tpu.memory_space<smem>>
    %317 = vector.broadcast %316 : f32 to vector<2x8x128xf32>
    %318 = arith.mulf %311, %317 : vector<2x8x128xf32>
    %319 = arith.addf %302, %318 : vector<2x8x128xf32>
    %c122 = arith.constant 122 : index
    %320 = memref.load %arg1[%c122] : memref<188xf32, #tpu.memory_space<smem>>
    %321 = vector.broadcast %320 : f32 to vector<2x8x128xf32>
    %322 = arith.mulf %311, %321 : vector<2x8x128xf32>
    %323 = arith.addf %306, %322 : vector<2x8x128xf32>
    %c123 = arith.constant 123 : index
    %324 = memref.load %arg1[%c123] : memref<188xf32, #tpu.memory_space<smem>>
    %325 = vector.broadcast %324 : f32 to vector<2x8x128xf32>
    %326 = arith.mulf %311, %325 : vector<2x8x128xf32>
    %327 = arith.addf %310, %326 : vector<2x8x128xf32>
    %c7_i32_39 = arith.constant 7 : i32
    %328 = tpu.dynamic_rotate %181 by %c7_i32_39 dim 1 : vector<2x8x128xf32>, i32 -> vector<2x8x128xf32>
    %cst_40 = arith.constant 0.000000e+00 : f32
    %329 = vector.broadcast %cst_40 : f32 to vector<2x8x128xf32>
    %330 = arith.select %4, %328, %329 : vector<2x8x128xi1>, vector<2x8x128xf32>
    %c2_i32_41 = arith.constant 2 : i32
    %331 = tpu.dynamic_rotate %330 by %c2_i32_41 dim 2 : vector<2x8x128xf32>, i32 -> vector<2x8x128xf32>
    %c136 = arith.constant 136 : index
    %332 = memref.load %arg1[%c136] : memref<188xf32, #tpu.memory_space<smem>>
    %333 = vector.broadcast %332 : f32 to vector<2x8x128xf32>
    %334 = arith.mulf %331, %333 : vector<2x8x128xf32>
    %335 = arith.addf %315, %334 : vector<2x8x128xf32>
    %c137 = arith.constant 137 : index
    %336 = memref.load %arg1[%c137] : memref<188xf32, #tpu.memory_space<smem>>
    %337 = vector.broadcast %336 : f32 to vector<2x8x128xf32>
    %338 = arith.mulf %331, %337 : vector<2x8x128xf32>
    %339 = arith.addf %319, %338 : vector<2x8x128xf32>
    %c138 = arith.constant 138 : index
    %340 = memref.load %arg1[%c138] : memref<188xf32, #tpu.memory_space<smem>>
    %341 = vector.broadcast %340 : f32 to vector<2x8x128xf32>
    %342 = arith.mulf %331, %341 : vector<2x8x128xf32>
    %343 = arith.addf %323, %342 : vector<2x8x128xf32>
    %c139 = arith.constant 139 : index
    %344 = memref.load %arg1[%c139] : memref<188xf32, #tpu.memory_space<smem>>
    %345 = vector.broadcast %344 : f32 to vector<2x8x128xf32>
    %346 = arith.mulf %331, %345 : vector<2x8x128xf32>
    %347 = arith.addf %327, %346 : vector<2x8x128xf32>
    %c152 = arith.constant 152 : index
    %348 = memref.load %arg1[%c152] : memref<188xf32, #tpu.memory_space<smem>>
    %349 = vector.broadcast %348 : f32 to vector<2x8x128xf32>
    %350 = arith.mulf %330, %349 : vector<2x8x128xf32>
    %351 = arith.addf %335, %350 : vector<2x8x128xf32>
    %c153 = arith.constant 153 : index
    %352 = memref.load %arg1[%c153] : memref<188xf32, #tpu.memory_space<smem>>
    %353 = vector.broadcast %352 : f32 to vector<2x8x128xf32>
    %354 = arith.mulf %330, %353 : vector<2x8x128xf32>
    %355 = arith.addf %339, %354 : vector<2x8x128xf32>
    %c154 = arith.constant 154 : index
    %356 = memref.load %arg1[%c154] : memref<188xf32, #tpu.memory_space<smem>>
    %357 = vector.broadcast %356 : f32 to vector<2x8x128xf32>
    %358 = arith.mulf %330, %357 : vector<2x8x128xf32>
    %359 = arith.addf %343, %358 : vector<2x8x128xf32>
    %c155 = arith.constant 155 : index
    %360 = memref.load %arg1[%c155] : memref<188xf32, #tpu.memory_space<smem>>
    %361 = vector.broadcast %360 : f32 to vector<2x8x128xf32>
    %362 = arith.mulf %330, %361 : vector<2x8x128xf32>
    %363 = arith.addf %347, %362 : vector<2x8x128xf32>
    %c126_i32_42 = arith.constant 126 : i32
    %364 = tpu.dynamic_rotate %330 by %c126_i32_42 dim 2 : vector<2x8x128xf32>, i32 -> vector<2x8x128xf32>
    %c168 = arith.constant 168 : index
    %365 = memref.load %arg1[%c168] : memref<188xf32, #tpu.memory_space<smem>>
    %366 = vector.broadcast %365 : f32 to vector<2x8x128xf32>
    %367 = arith.mulf %364, %366 : vector<2x8x128xf32>
    %368 = arith.addf %351, %367 : vector<2x8x128xf32>
    %c169 = arith.constant 169 : index
    %369 = memref.load %arg1[%c169] : memref<188xf32, #tpu.memory_space<smem>>
    %370 = vector.broadcast %369 : f32 to vector<2x8x128xf32>
    %371 = arith.mulf %364, %370 : vector<2x8x128xf32>
    %372 = arith.addf %355, %371 : vector<2x8x128xf32>
    %c170 = arith.constant 170 : index
    %373 = memref.load %arg1[%c170] : memref<188xf32, #tpu.memory_space<smem>>
    %374 = vector.broadcast %373 : f32 to vector<2x8x128xf32>
    %375 = arith.mulf %364, %374 : vector<2x8x128xf32>
    %376 = arith.addf %359, %375 : vector<2x8x128xf32>
    %c171 = arith.constant 171 : index
    %377 = memref.load %arg1[%c171] : memref<188xf32, #tpu.memory_space<smem>>
    %378 = vector.broadcast %377 : f32 to vector<2x8x128xf32>
    %379 = arith.mulf %364, %378 : vector<2x8x128xf32>
    %380 = arith.addf %363, %379 : vector<2x8x128xf32>
    %c1_i32_43 = arith.constant 1 : i32
    %381 = tpu.dynamic_rotate %194 by %c1_i32_43 dim 1 : vector<2x8x128xf32>, i32 -> vector<2x8x128xf32>
    %cst_44 = arith.constant 0.000000e+00 : f32
    %382 = vector.broadcast %cst_44 : f32 to vector<2x8x128xf32>
    %383 = arith.select %6, %381, %382 : vector<2x8x128xi1>, vector<2x8x128xf32>
    %c2_i32_45 = arith.constant 2 : i32
    %384 = tpu.dynamic_rotate %383 by %c2_i32_45 dim 2 : vector<2x8x128xf32>, i32 -> vector<2x8x128xf32>
    %c44 = arith.constant 44 : index
    %385 = memref.load %arg1[%c44] : memref<188xf32, #tpu.memory_space<smem>>
    %386 = vector.broadcast %385 : f32 to vector<2x8x128xf32>
    %387 = arith.mulf %384, %386 : vector<2x8x128xf32>
    %388 = arith.addf %368, %387 : vector<2x8x128xf32>
    %c45 = arith.constant 45 : index
    %389 = memref.load %arg1[%c45] : memref<188xf32, #tpu.memory_space<smem>>
    %390 = vector.broadcast %389 : f32 to vector<2x8x128xf32>
    %391 = arith.mulf %384, %390 : vector<2x8x128xf32>
    %392 = arith.addf %372, %391 : vector<2x8x128xf32>
    %c46 = arith.constant 46 : index
    %393 = memref.load %arg1[%c46] : memref<188xf32, #tpu.memory_space<smem>>
    %394 = vector.broadcast %393 : f32 to vector<2x8x128xf32>
    %395 = arith.mulf %384, %394 : vector<2x8x128xf32>
    %396 = arith.addf %376, %395 : vector<2x8x128xf32>
    %c47 = arith.constant 47 : index
    %397 = memref.load %arg1[%c47] : memref<188xf32, #tpu.memory_space<smem>>
    %398 = vector.broadcast %397 : f32 to vector<2x8x128xf32>
    %399 = arith.mulf %384, %398 : vector<2x8x128xf32>
    %400 = arith.addf %380, %399 : vector<2x8x128xf32>
    %c60 = arith.constant 60 : index
    %401 = memref.load %arg1[%c60] : memref<188xf32, #tpu.memory_space<smem>>
    %402 = vector.broadcast %401 : f32 to vector<2x8x128xf32>
    %403 = arith.mulf %383, %402 : vector<2x8x128xf32>
    %404 = arith.addf %388, %403 : vector<2x8x128xf32>
    %c61 = arith.constant 61 : index
    %405 = memref.load %arg1[%c61] : memref<188xf32, #tpu.memory_space<smem>>
    %406 = vector.broadcast %405 : f32 to vector<2x8x128xf32>
    %407 = arith.mulf %383, %406 : vector<2x8x128xf32>
    %408 = arith.addf %392, %407 : vector<2x8x128xf32>
    %c62 = arith.constant 62 : index
    %409 = memref.load %arg1[%c62] : memref<188xf32, #tpu.memory_space<smem>>
    %410 = vector.broadcast %409 : f32 to vector<2x8x128xf32>
    %411 = arith.mulf %383, %410 : vector<2x8x128xf32>
    %412 = arith.addf %396, %411 : vector<2x8x128xf32>
    %c63 = arith.constant 63 : index
    %413 = memref.load %arg1[%c63] : memref<188xf32, #tpu.memory_space<smem>>
    %414 = vector.broadcast %413 : f32 to vector<2x8x128xf32>
    %415 = arith.mulf %383, %414 : vector<2x8x128xf32>
    %416 = arith.addf %400, %415 : vector<2x8x128xf32>
    %c126_i32_46 = arith.constant 126 : i32
    %417 = tpu.dynamic_rotate %383 by %c126_i32_46 dim 2 : vector<2x8x128xf32>, i32 -> vector<2x8x128xf32>
    %c76 = arith.constant 76 : index
    %418 = memref.load %arg1[%c76] : memref<188xf32, #tpu.memory_space<smem>>
    %419 = vector.broadcast %418 : f32 to vector<2x8x128xf32>
    %420 = arith.mulf %417, %419 : vector<2x8x128xf32>
    %421 = arith.addf %404, %420 : vector<2x8x128xf32>
    %c77 = arith.constant 77 : index
    %422 = memref.load %arg1[%c77] : memref<188xf32, #tpu.memory_space<smem>>
    %423 = vector.broadcast %422 : f32 to vector<2x8x128xf32>
    %424 = arith.mulf %417, %423 : vector<2x8x128xf32>
    %425 = arith.addf %408, %424 : vector<2x8x128xf32>
    %c78 = arith.constant 78 : index
    %426 = memref.load %arg1[%c78] : memref<188xf32, #tpu.memory_space<smem>>
    %427 = vector.broadcast %426 : f32 to vector<2x8x128xf32>
    %428 = arith.mulf %417, %427 : vector<2x8x128xf32>
    %429 = arith.addf %412, %428 : vector<2x8x128xf32>
    %c79 = arith.constant 79 : index
    %430 = memref.load %arg1[%c79] : memref<188xf32, #tpu.memory_space<smem>>
    %431 = vector.broadcast %430 : f32 to vector<2x8x128xf32>
    %432 = arith.mulf %417, %431 : vector<2x8x128xf32>
    %433 = arith.addf %416, %432 : vector<2x8x128xf32>
    %c2_i32_47 = arith.constant 2 : i32
    %434 = tpu.dynamic_rotate %194 by %c2_i32_47 dim 2 : vector<2x8x128xf32>, i32 -> vector<2x8x128xf32>
    %c92 = arith.constant 92 : index
    %435 = memref.load %arg1[%c92] : memref<188xf32, #tpu.memory_space<smem>>
    %436 = vector.broadcast %435 : f32 to vector<2x8x128xf32>
    %437 = arith.mulf %434, %436 : vector<2x8x128xf32>
    %438 = arith.addf %421, %437 : vector<2x8x128xf32>
    %c93 = arith.constant 93 : index
    %439 = memref.load %arg1[%c93] : memref<188xf32, #tpu.memory_space<smem>>
    %440 = vector.broadcast %439 : f32 to vector<2x8x128xf32>
    %441 = arith.mulf %434, %440 : vector<2x8x128xf32>
    %442 = arith.addf %425, %441 : vector<2x8x128xf32>
    %c94 = arith.constant 94 : index
    %443 = memref.load %arg1[%c94] : memref<188xf32, #tpu.memory_space<smem>>
    %444 = vector.broadcast %443 : f32 to vector<2x8x128xf32>
    %445 = arith.mulf %434, %444 : vector<2x8x128xf32>
    %446 = arith.addf %429, %445 : vector<2x8x128xf32>
    %c95 = arith.constant 95 : index
    %447 = memref.load %arg1[%c95] : memref<188xf32, #tpu.memory_space<smem>>
    %448 = vector.broadcast %447 : f32 to vector<2x8x128xf32>
    %449 = arith.mulf %434, %448 : vector<2x8x128xf32>
    %450 = arith.addf %433, %449 : vector<2x8x128xf32>
    %c108 = arith.constant 108 : index
    %451 = memref.load %arg1[%c108] : memref<188xf32, #tpu.memory_space<smem>>
    %452 = vector.broadcast %451 : f32 to vector<2x8x128xf32>
    %453 = arith.mulf %194, %452 : vector<2x8x128xf32>
    %454 = arith.addf %438, %453 : vector<2x8x128xf32>
    %c109 = arith.constant 109 : index
    %455 = memref.load %arg1[%c109] : memref<188xf32, #tpu.memory_space<smem>>
    %456 = vector.broadcast %455 : f32 to vector<2x8x128xf32>
    %457 = arith.mulf %194, %456 : vector<2x8x128xf32>
    %458 = arith.addf %442, %457 : vector<2x8x128xf32>
    %c110 = arith.constant 110 : index
    %459 = memref.load %arg1[%c110] : memref<188xf32, #tpu.memory_space<smem>>
    %460 = vector.broadcast %459 : f32 to vector<2x8x128xf32>
    %461 = arith.mulf %194, %460 : vector<2x8x128xf32>
    %462 = arith.addf %446, %461 : vector<2x8x128xf32>
    %c111 = arith.constant 111 : index
    %463 = memref.load %arg1[%c111] : memref<188xf32, #tpu.memory_space<smem>>
    %464 = vector.broadcast %463 : f32 to vector<2x8x128xf32>
    %465 = arith.mulf %194, %464 : vector<2x8x128xf32>
    %466 = arith.addf %450, %465 : vector<2x8x128xf32>
    %c126_i32_48 = arith.constant 126 : i32
    %467 = tpu.dynamic_rotate %194 by %c126_i32_48 dim 2 : vector<2x8x128xf32>, i32 -> vector<2x8x128xf32>
    %c124 = arith.constant 124 : index
    %468 = memref.load %arg1[%c124] : memref<188xf32, #tpu.memory_space<smem>>
    %469 = vector.broadcast %468 : f32 to vector<2x8x128xf32>
    %470 = arith.mulf %467, %469 : vector<2x8x128xf32>
    %471 = arith.addf %454, %470 : vector<2x8x128xf32>
    %c125 = arith.constant 125 : index
    %472 = memref.load %arg1[%c125] : memref<188xf32, #tpu.memory_space<smem>>
    %473 = vector.broadcast %472 : f32 to vector<2x8x128xf32>
    %474 = arith.mulf %467, %473 : vector<2x8x128xf32>
    %475 = arith.addf %458, %474 : vector<2x8x128xf32>
    %c126 = arith.constant 126 : index
    %476 = memref.load %arg1[%c126] : memref<188xf32, #tpu.memory_space<smem>>
    %477 = vector.broadcast %476 : f32 to vector<2x8x128xf32>
    %478 = arith.mulf %467, %477 : vector<2x8x128xf32>
    %479 = arith.addf %462, %478 : vector<2x8x128xf32>
    %c127 = arith.constant 127 : index
    %480 = memref.load %arg1[%c127] : memref<188xf32, #tpu.memory_space<smem>>
    %481 = vector.broadcast %480 : f32 to vector<2x8x128xf32>
    %482 = arith.mulf %467, %481 : vector<2x8x128xf32>
    %483 = arith.addf %466, %482 : vector<2x8x128xf32>
    %c7_i32_49 = arith.constant 7 : i32
    %484 = tpu.dynamic_rotate %194 by %c7_i32_49 dim 1 : vector<2x8x128xf32>, i32 -> vector<2x8x128xf32>
    %cst_50 = arith.constant 0.000000e+00 : f32
    %485 = vector.broadcast %cst_50 : f32 to vector<2x8x128xf32>
    %486 = arith.select %4, %484, %485 : vector<2x8x128xi1>, vector<2x8x128xf32>
    %c2_i32_51 = arith.constant 2 : i32
    %487 = tpu.dynamic_rotate %486 by %c2_i32_51 dim 2 : vector<2x8x128xf32>, i32 -> vector<2x8x128xf32>
    %c140 = arith.constant 140 : index
    %488 = memref.load %arg1[%c140] : memref<188xf32, #tpu.memory_space<smem>>
    %489 = vector.broadcast %488 : f32 to vector<2x8x128xf32>
    %490 = arith.mulf %487, %489 : vector<2x8x128xf32>
    %491 = arith.addf %471, %490 : vector<2x8x128xf32>
    %c141 = arith.constant 141 : index
    %492 = memref.load %arg1[%c141] : memref<188xf32, #tpu.memory_space<smem>>
    %493 = vector.broadcast %492 : f32 to vector<2x8x128xf32>
    %494 = arith.mulf %487, %493 : vector<2x8x128xf32>
    %495 = arith.addf %475, %494 : vector<2x8x128xf32>
    %c142 = arith.constant 142 : index
    %496 = memref.load %arg1[%c142] : memref<188xf32, #tpu.memory_space<smem>>
    %497 = vector.broadcast %496 : f32 to vector<2x8x128xf32>
    %498 = arith.mulf %487, %497 : vector<2x8x128xf32>
    %499 = arith.addf %479, %498 : vector<2x8x128xf32>
    %c143 = arith.constant 143 : index
    %500 = memref.load %arg1[%c143] : memref<188xf32, #tpu.memory_space<smem>>
    %501 = vector.broadcast %500 : f32 to vector<2x8x128xf32>
    %502 = arith.mulf %487, %501 : vector<2x8x128xf32>
    %503 = arith.addf %483, %502 : vector<2x8x128xf32>
    %c156 = arith.constant 156 : index
    %504 = memref.load %arg1[%c156] : memref<188xf32, #tpu.memory_space<smem>>
    %505 = vector.broadcast %504 : f32 to vector<2x8x128xf32>
    %506 = arith.mulf %486, %505 : vector<2x8x128xf32>
    %507 = arith.addf %491, %506 : vector<2x8x128xf32>
    %c157 = arith.constant 157 : index
    %508 = memref.load %arg1[%c157] : memref<188xf32, #tpu.memory_space<smem>>
    %509 = vector.broadcast %508 : f32 to vector<2x8x128xf32>
    %510 = arith.mulf %486, %509 : vector<2x8x128xf32>
    %511 = arith.addf %495, %510 : vector<2x8x128xf32>
    %c158 = arith.constant 158 : index
    %512 = memref.load %arg1[%c158] : memref<188xf32, #tpu.memory_space<smem>>
    %513 = vector.broadcast %512 : f32 to vector<2x8x128xf32>
    %514 = arith.mulf %486, %513 : vector<2x8x128xf32>
    %515 = arith.addf %499, %514 : vector<2x8x128xf32>
    %c159 = arith.constant 159 : index
    %516 = memref.load %arg1[%c159] : memref<188xf32, #tpu.memory_space<smem>>
    %517 = vector.broadcast %516 : f32 to vector<2x8x128xf32>
    %518 = arith.mulf %486, %517 : vector<2x8x128xf32>
    %519 = arith.addf %503, %518 : vector<2x8x128xf32>
    %c126_i32_52 = arith.constant 126 : i32
    %520 = tpu.dynamic_rotate %486 by %c126_i32_52 dim 2 : vector<2x8x128xf32>, i32 -> vector<2x8x128xf32>
    %c172 = arith.constant 172 : index
    %521 = memref.load %arg1[%c172] : memref<188xf32, #tpu.memory_space<smem>>
    %522 = vector.broadcast %521 : f32 to vector<2x8x128xf32>
    %523 = arith.mulf %520, %522 : vector<2x8x128xf32>
    %524 = arith.addf %507, %523 : vector<2x8x128xf32>
    %c173 = arith.constant 173 : index
    %525 = memref.load %arg1[%c173] : memref<188xf32, #tpu.memory_space<smem>>
    %526 = vector.broadcast %525 : f32 to vector<2x8x128xf32>
    %527 = arith.mulf %520, %526 : vector<2x8x128xf32>
    %528 = arith.addf %511, %527 : vector<2x8x128xf32>
    %c174 = arith.constant 174 : index
    %529 = memref.load %arg1[%c174] : memref<188xf32, #tpu.memory_space<smem>>
    %530 = vector.broadcast %529 : f32 to vector<2x8x128xf32>
    %531 = arith.mulf %520, %530 : vector<2x8x128xf32>
    %532 = arith.addf %515, %531 : vector<2x8x128xf32>
    %c175 = arith.constant 175 : index
    %533 = memref.load %arg1[%c175] : memref<188xf32, #tpu.memory_space<smem>>
    %534 = vector.broadcast %533 : f32 to vector<2x8x128xf32>
    %535 = arith.mulf %520, %534 : vector<2x8x128xf32>
    %536 = arith.addf %519, %535 : vector<2x8x128xf32>
    %c1_i32_53 = arith.constant 1 : i32
    %537 = tpu.dynamic_rotate %207 by %c1_i32_53 dim 1 : vector<2x8x128xf32>, i32 -> vector<2x8x128xf32>
    %cst_54 = arith.constant 0.000000e+00 : f32
    %538 = vector.broadcast %cst_54 : f32 to vector<2x8x128xf32>
    %539 = arith.select %6, %537, %538 : vector<2x8x128xi1>, vector<2x8x128xf32>
    %c2_i32_55 = arith.constant 2 : i32
    %540 = tpu.dynamic_rotate %539 by %c2_i32_55 dim 2 : vector<2x8x128xf32>, i32 -> vector<2x8x128xf32>
    %c48 = arith.constant 48 : index
    %541 = memref.load %arg1[%c48] : memref<188xf32, #tpu.memory_space<smem>>
    %542 = vector.broadcast %541 : f32 to vector<2x8x128xf32>
    %543 = arith.mulf %540, %542 : vector<2x8x128xf32>
    %544 = arith.addf %524, %543 : vector<2x8x128xf32>
    %c49 = arith.constant 49 : index
    %545 = memref.load %arg1[%c49] : memref<188xf32, #tpu.memory_space<smem>>
    %546 = vector.broadcast %545 : f32 to vector<2x8x128xf32>
    %547 = arith.mulf %540, %546 : vector<2x8x128xf32>
    %548 = arith.addf %528, %547 : vector<2x8x128xf32>
    %c50 = arith.constant 50 : index
    %549 = memref.load %arg1[%c50] : memref<188xf32, #tpu.memory_space<smem>>
    %550 = vector.broadcast %549 : f32 to vector<2x8x128xf32>
    %551 = arith.mulf %540, %550 : vector<2x8x128xf32>
    %552 = arith.addf %532, %551 : vector<2x8x128xf32>
    %c51 = arith.constant 51 : index
    %553 = memref.load %arg1[%c51] : memref<188xf32, #tpu.memory_space<smem>>
    %554 = vector.broadcast %553 : f32 to vector<2x8x128xf32>
    %555 = arith.mulf %540, %554 : vector<2x8x128xf32>
    %556 = arith.addf %536, %555 : vector<2x8x128xf32>
    %c64 = arith.constant 64 : index
    %557 = memref.load %arg1[%c64] : memref<188xf32, #tpu.memory_space<smem>>
    %558 = vector.broadcast %557 : f32 to vector<2x8x128xf32>
    %559 = arith.mulf %539, %558 : vector<2x8x128xf32>
    %560 = arith.addf %544, %559 : vector<2x8x128xf32>
    %c65 = arith.constant 65 : index
    %561 = memref.load %arg1[%c65] : memref<188xf32, #tpu.memory_space<smem>>
    %562 = vector.broadcast %561 : f32 to vector<2x8x128xf32>
    %563 = arith.mulf %539, %562 : vector<2x8x128xf32>
    %564 = arith.addf %548, %563 : vector<2x8x128xf32>
    %c66 = arith.constant 66 : index
    %565 = memref.load %arg1[%c66] : memref<188xf32, #tpu.memory_space<smem>>
    %566 = vector.broadcast %565 : f32 to vector<2x8x128xf32>
    %567 = arith.mulf %539, %566 : vector<2x8x128xf32>
    %568 = arith.addf %552, %567 : vector<2x8x128xf32>
    %c67 = arith.constant 67 : index
    %569 = memref.load %arg1[%c67] : memref<188xf32, #tpu.memory_space<smem>>
    %570 = vector.broadcast %569 : f32 to vector<2x8x128xf32>
    %571 = arith.mulf %539, %570 : vector<2x8x128xf32>
    %572 = arith.addf %556, %571 : vector<2x8x128xf32>
    %c126_i32_56 = arith.constant 126 : i32
    %573 = tpu.dynamic_rotate %539 by %c126_i32_56 dim 2 : vector<2x8x128xf32>, i32 -> vector<2x8x128xf32>
    %c80 = arith.constant 80 : index
    %574 = memref.load %arg1[%c80] : memref<188xf32, #tpu.memory_space<smem>>
    %575 = vector.broadcast %574 : f32 to vector<2x8x128xf32>
    %576 = arith.mulf %573, %575 : vector<2x8x128xf32>
    %577 = arith.addf %560, %576 : vector<2x8x128xf32>
    %c81 = arith.constant 81 : index
    %578 = memref.load %arg1[%c81] : memref<188xf32, #tpu.memory_space<smem>>
    %579 = vector.broadcast %578 : f32 to vector<2x8x128xf32>
    %580 = arith.mulf %573, %579 : vector<2x8x128xf32>
    %581 = arith.addf %564, %580 : vector<2x8x128xf32>
    %c82 = arith.constant 82 : index
    %582 = memref.load %arg1[%c82] : memref<188xf32, #tpu.memory_space<smem>>
    %583 = vector.broadcast %582 : f32 to vector<2x8x128xf32>
    %584 = arith.mulf %573, %583 : vector<2x8x128xf32>
    %585 = arith.addf %568, %584 : vector<2x8x128xf32>
    %c83 = arith.constant 83 : index
    %586 = memref.load %arg1[%c83] : memref<188xf32, #tpu.memory_space<smem>>
    %587 = vector.broadcast %586 : f32 to vector<2x8x128xf32>
    %588 = arith.mulf %573, %587 : vector<2x8x128xf32>
    %589 = arith.addf %572, %588 : vector<2x8x128xf32>
    %c2_i32_57 = arith.constant 2 : i32
    %590 = tpu.dynamic_rotate %207 by %c2_i32_57 dim 2 : vector<2x8x128xf32>, i32 -> vector<2x8x128xf32>
    %c96 = arith.constant 96 : index
    %591 = memref.load %arg1[%c96] : memref<188xf32, #tpu.memory_space<smem>>
    %592 = vector.broadcast %591 : f32 to vector<2x8x128xf32>
    %593 = arith.mulf %590, %592 : vector<2x8x128xf32>
    %594 = arith.addf %577, %593 : vector<2x8x128xf32>
    %c97 = arith.constant 97 : index
    %595 = memref.load %arg1[%c97] : memref<188xf32, #tpu.memory_space<smem>>
    %596 = vector.broadcast %595 : f32 to vector<2x8x128xf32>
    %597 = arith.mulf %590, %596 : vector<2x8x128xf32>
    %598 = arith.addf %581, %597 : vector<2x8x128xf32>
    %c98 = arith.constant 98 : index
    %599 = memref.load %arg1[%c98] : memref<188xf32, #tpu.memory_space<smem>>
    %600 = vector.broadcast %599 : f32 to vector<2x8x128xf32>
    %601 = arith.mulf %590, %600 : vector<2x8x128xf32>
    %602 = arith.addf %585, %601 : vector<2x8x128xf32>
    %c99 = arith.constant 99 : index
    %603 = memref.load %arg1[%c99] : memref<188xf32, #tpu.memory_space<smem>>
    %604 = vector.broadcast %603 : f32 to vector<2x8x128xf32>
    %605 = arith.mulf %590, %604 : vector<2x8x128xf32>
    %606 = arith.addf %589, %605 : vector<2x8x128xf32>
    %c112 = arith.constant 112 : index
    %607 = memref.load %arg1[%c112] : memref<188xf32, #tpu.memory_space<smem>>
    %608 = vector.broadcast %607 : f32 to vector<2x8x128xf32>
    %609 = arith.mulf %207, %608 : vector<2x8x128xf32>
    %610 = arith.addf %594, %609 : vector<2x8x128xf32>
    %c113 = arith.constant 113 : index
    %611 = memref.load %arg1[%c113] : memref<188xf32, #tpu.memory_space<smem>>
    %612 = vector.broadcast %611 : f32 to vector<2x8x128xf32>
    %613 = arith.mulf %207, %612 : vector<2x8x128xf32>
    %614 = arith.addf %598, %613 : vector<2x8x128xf32>
    %c114 = arith.constant 114 : index
    %615 = memref.load %arg1[%c114] : memref<188xf32, #tpu.memory_space<smem>>
    %616 = vector.broadcast %615 : f32 to vector<2x8x128xf32>
    %617 = arith.mulf %207, %616 : vector<2x8x128xf32>
    %618 = arith.addf %602, %617 : vector<2x8x128xf32>
    %c115 = arith.constant 115 : index
    %619 = memref.load %arg1[%c115] : memref<188xf32, #tpu.memory_space<smem>>
    %620 = vector.broadcast %619 : f32 to vector<2x8x128xf32>
    %621 = arith.mulf %207, %620 : vector<2x8x128xf32>
    %622 = arith.addf %606, %621 : vector<2x8x128xf32>
    %c126_i32_58 = arith.constant 126 : i32
    %623 = tpu.dynamic_rotate %207 by %c126_i32_58 dim 2 : vector<2x8x128xf32>, i32 -> vector<2x8x128xf32>
    %c128 = arith.constant 128 : index
    %624 = memref.load %arg1[%c128] : memref<188xf32, #tpu.memory_space<smem>>
    %625 = vector.broadcast %624 : f32 to vector<2x8x128xf32>
    %626 = arith.mulf %623, %625 : vector<2x8x128xf32>
    %627 = arith.addf %610, %626 : vector<2x8x128xf32>
    %c129 = arith.constant 129 : index
    %628 = memref.load %arg1[%c129] : memref<188xf32, #tpu.memory_space<smem>>
    %629 = vector.broadcast %628 : f32 to vector<2x8x128xf32>
    %630 = arith.mulf %623, %629 : vector<2x8x128xf32>
    %631 = arith.addf %614, %630 : vector<2x8x128xf32>
    %c130 = arith.constant 130 : index
    %632 = memref.load %arg1[%c130] : memref<188xf32, #tpu.memory_space<smem>>
    %633 = vector.broadcast %632 : f32 to vector<2x8x128xf32>
    %634 = arith.mulf %623, %633 : vector<2x8x128xf32>
    %635 = arith.addf %618, %634 : vector<2x8x128xf32>
    %c131 = arith.constant 131 : index
    %636 = memref.load %arg1[%c131] : memref<188xf32, #tpu.memory_space<smem>>
    %637 = vector.broadcast %636 : f32 to vector<2x8x128xf32>
    %638 = arith.mulf %623, %637 : vector<2x8x128xf32>
    %639 = arith.addf %622, %638 : vector<2x8x128xf32>
    %c7_i32_59 = arith.constant 7 : i32
    %640 = tpu.dynamic_rotate %207 by %c7_i32_59 dim 1 : vector<2x8x128xf32>, i32 -> vector<2x8x128xf32>
    %cst_60 = arith.constant 0.000000e+00 : f32
    %641 = vector.broadcast %cst_60 : f32 to vector<2x8x128xf32>
    %642 = arith.select %4, %640, %641 : vector<2x8x128xi1>, vector<2x8x128xf32>
    %c2_i32_61 = arith.constant 2 : i32
    %643 = tpu.dynamic_rotate %642 by %c2_i32_61 dim 2 : vector<2x8x128xf32>, i32 -> vector<2x8x128xf32>
    %c144 = arith.constant 144 : index
    %644 = memref.load %arg1[%c144] : memref<188xf32, #tpu.memory_space<smem>>
    %645 = vector.broadcast %644 : f32 to vector<2x8x128xf32>
    %646 = arith.mulf %643, %645 : vector<2x8x128xf32>
    %647 = arith.addf %627, %646 : vector<2x8x128xf32>
    %c145 = arith.constant 145 : index
    %648 = memref.load %arg1[%c145] : memref<188xf32, #tpu.memory_space<smem>>
    %649 = vector.broadcast %648 : f32 to vector<2x8x128xf32>
    %650 = arith.mulf %643, %649 : vector<2x8x128xf32>
    %651 = arith.addf %631, %650 : vector<2x8x128xf32>
    %c146 = arith.constant 146 : index
    %652 = memref.load %arg1[%c146] : memref<188xf32, #tpu.memory_space<smem>>
    %653 = vector.broadcast %652 : f32 to vector<2x8x128xf32>
    %654 = arith.mulf %643, %653 : vector<2x8x128xf32>
    %655 = arith.addf %635, %654 : vector<2x8x128xf32>
    %c147 = arith.constant 147 : index
    %656 = memref.load %arg1[%c147] : memref<188xf32, #tpu.memory_space<smem>>
    %657 = vector.broadcast %656 : f32 to vector<2x8x128xf32>
    %658 = arith.mulf %643, %657 : vector<2x8x128xf32>
    %659 = arith.addf %639, %658 : vector<2x8x128xf32>
    %c160 = arith.constant 160 : index
    %660 = memref.load %arg1[%c160] : memref<188xf32, #tpu.memory_space<smem>>
    %661 = vector.broadcast %660 : f32 to vector<2x8x128xf32>
    %662 = arith.mulf %642, %661 : vector<2x8x128xf32>
    %663 = arith.addf %647, %662 : vector<2x8x128xf32>
    %c161 = arith.constant 161 : index
    %664 = memref.load %arg1[%c161] : memref<188xf32, #tpu.memory_space<smem>>
    %665 = vector.broadcast %664 : f32 to vector<2x8x128xf32>
    %666 = arith.mulf %642, %665 : vector<2x8x128xf32>
    %667 = arith.addf %651, %666 : vector<2x8x128xf32>
    %c162 = arith.constant 162 : index
    %668 = memref.load %arg1[%c162] : memref<188xf32, #tpu.memory_space<smem>>
    %669 = vector.broadcast %668 : f32 to vector<2x8x128xf32>
    %670 = arith.mulf %642, %669 : vector<2x8x128xf32>
    %671 = arith.addf %655, %670 : vector<2x8x128xf32>
    %c163 = arith.constant 163 : index
    %672 = memref.load %arg1[%c163] : memref<188xf32, #tpu.memory_space<smem>>
    %673 = vector.broadcast %672 : f32 to vector<2x8x128xf32>
    %674 = arith.mulf %642, %673 : vector<2x8x128xf32>
    %675 = arith.addf %659, %674 : vector<2x8x128xf32>
    %c126_i32_62 = arith.constant 126 : i32
    %676 = tpu.dynamic_rotate %642 by %c126_i32_62 dim 2 : vector<2x8x128xf32>, i32 -> vector<2x8x128xf32>
    %c176 = arith.constant 176 : index
    %677 = memref.load %arg1[%c176] : memref<188xf32, #tpu.memory_space<smem>>
    %678 = vector.broadcast %677 : f32 to vector<2x8x128xf32>
    %679 = arith.mulf %676, %678 : vector<2x8x128xf32>
    %680 = arith.addf %663, %679 : vector<2x8x128xf32>
    %c177 = arith.constant 177 : index
    %681 = memref.load %arg1[%c177] : memref<188xf32, #tpu.memory_space<smem>>
    %682 = vector.broadcast %681 : f32 to vector<2x8x128xf32>
    %683 = arith.mulf %676, %682 : vector<2x8x128xf32>
    %684 = arith.addf %667, %683 : vector<2x8x128xf32>
    %c178 = arith.constant 178 : index
    %685 = memref.load %arg1[%c178] : memref<188xf32, #tpu.memory_space<smem>>
    %686 = vector.broadcast %685 : f32 to vector<2x8x128xf32>
    %687 = arith.mulf %676, %686 : vector<2x8x128xf32>
    %688 = arith.addf %671, %687 : vector<2x8x128xf32>
    %c179 = arith.constant 179 : index
    %689 = memref.load %arg1[%c179] : memref<188xf32, #tpu.memory_space<smem>>
    %690 = vector.broadcast %689 : f32 to vector<2x8x128xf32>
    %691 = arith.mulf %676, %690 : vector<2x8x128xf32>
    %692 = arith.addf %675, %691 : vector<2x8x128xf32>
    %c1_i32_63 = arith.constant 1 : i32
    %693 = tpu.dynamic_rotate %220 by %c1_i32_63 dim 1 : vector<2x8x128xf32>, i32 -> vector<2x8x128xf32>
    %cst_64 = arith.constant 0.000000e+00 : f32
    %694 = vector.broadcast %cst_64 : f32 to vector<2x8x128xf32>
    %695 = arith.select %6, %693, %694 : vector<2x8x128xi1>, vector<2x8x128xf32>
    %c2_i32_65 = arith.constant 2 : i32
    %696 = tpu.dynamic_rotate %695 by %c2_i32_65 dim 2 : vector<2x8x128xf32>, i32 -> vector<2x8x128xf32>
    %c52 = arith.constant 52 : index
    %697 = memref.load %arg1[%c52] : memref<188xf32, #tpu.memory_space<smem>>
    %698 = vector.broadcast %697 : f32 to vector<2x8x128xf32>
    %699 = arith.mulf %696, %698 : vector<2x8x128xf32>
    %700 = arith.addf %680, %699 : vector<2x8x128xf32>
    %c53 = arith.constant 53 : index
    %701 = memref.load %arg1[%c53] : memref<188xf32, #tpu.memory_space<smem>>
    %702 = vector.broadcast %701 : f32 to vector<2x8x128xf32>
    %703 = arith.mulf %696, %702 : vector<2x8x128xf32>
    %704 = arith.addf %684, %703 : vector<2x8x128xf32>
    %c54 = arith.constant 54 : index
    %705 = memref.load %arg1[%c54] : memref<188xf32, #tpu.memory_space<smem>>
    %706 = vector.broadcast %705 : f32 to vector<2x8x128xf32>
    %707 = arith.mulf %696, %706 : vector<2x8x128xf32>
    %708 = arith.addf %688, %707 : vector<2x8x128xf32>
    %c55 = arith.constant 55 : index
    %709 = memref.load %arg1[%c55] : memref<188xf32, #tpu.memory_space<smem>>
    %710 = vector.broadcast %709 : f32 to vector<2x8x128xf32>
    %711 = arith.mulf %696, %710 : vector<2x8x128xf32>
    %712 = arith.addf %692, %711 : vector<2x8x128xf32>
    %c68 = arith.constant 68 : index
    %713 = memref.load %arg1[%c68] : memref<188xf32, #tpu.memory_space<smem>>
    %714 = vector.broadcast %713 : f32 to vector<2x8x128xf32>
    %715 = arith.mulf %695, %714 : vector<2x8x128xf32>
    %716 = arith.addf %700, %715 : vector<2x8x128xf32>
    %c69 = arith.constant 69 : index
    %717 = memref.load %arg1[%c69] : memref<188xf32, #tpu.memory_space<smem>>
    %718 = vector.broadcast %717 : f32 to vector<2x8x128xf32>
    %719 = arith.mulf %695, %718 : vector<2x8x128xf32>
    %720 = arith.addf %704, %719 : vector<2x8x128xf32>
    %c70 = arith.constant 70 : index
    %721 = memref.load %arg1[%c70] : memref<188xf32, #tpu.memory_space<smem>>
    %722 = vector.broadcast %721 : f32 to vector<2x8x128xf32>
    %723 = arith.mulf %695, %722 : vector<2x8x128xf32>
    %724 = arith.addf %708, %723 : vector<2x8x128xf32>
    %c71 = arith.constant 71 : index
    %725 = memref.load %arg1[%c71] : memref<188xf32, #tpu.memory_space<smem>>
    %726 = vector.broadcast %725 : f32 to vector<2x8x128xf32>
    %727 = arith.mulf %695, %726 : vector<2x8x128xf32>
    %728 = arith.addf %712, %727 : vector<2x8x128xf32>
    %c126_i32_66 = arith.constant 126 : i32
    %729 = tpu.dynamic_rotate %695 by %c126_i32_66 dim 2 : vector<2x8x128xf32>, i32 -> vector<2x8x128xf32>
    %c84 = arith.constant 84 : index
    %730 = memref.load %arg1[%c84] : memref<188xf32, #tpu.memory_space<smem>>
    %731 = vector.broadcast %730 : f32 to vector<2x8x128xf32>
    %732 = arith.mulf %729, %731 : vector<2x8x128xf32>
    %733 = arith.addf %716, %732 : vector<2x8x128xf32>
    %c85 = arith.constant 85 : index
    %734 = memref.load %arg1[%c85] : memref<188xf32, #tpu.memory_space<smem>>
    %735 = vector.broadcast %734 : f32 to vector<2x8x128xf32>
    %736 = arith.mulf %729, %735 : vector<2x8x128xf32>
    %737 = arith.addf %720, %736 : vector<2x8x128xf32>
    %c86 = arith.constant 86 : index
    %738 = memref.load %arg1[%c86] : memref<188xf32, #tpu.memory_space<smem>>
    %739 = vector.broadcast %738 : f32 to vector<2x8x128xf32>
    %740 = arith.mulf %729, %739 : vector<2x8x128xf32>
    %741 = arith.addf %724, %740 : vector<2x8x128xf32>
    %c87 = arith.constant 87 : index
    %742 = memref.load %arg1[%c87] : memref<188xf32, #tpu.memory_space<smem>>
    %743 = vector.broadcast %742 : f32 to vector<2x8x128xf32>
    %744 = arith.mulf %729, %743 : vector<2x8x128xf32>
    %745 = arith.addf %728, %744 : vector<2x8x128xf32>
    %c2_i32_67 = arith.constant 2 : i32
    %746 = tpu.dynamic_rotate %220 by %c2_i32_67 dim 2 : vector<2x8x128xf32>, i32 -> vector<2x8x128xf32>
    %c100 = arith.constant 100 : index
    %747 = memref.load %arg1[%c100] : memref<188xf32, #tpu.memory_space<smem>>
    %748 = vector.broadcast %747 : f32 to vector<2x8x128xf32>
    %749 = arith.mulf %746, %748 : vector<2x8x128xf32>
    %750 = arith.addf %733, %749 : vector<2x8x128xf32>
    %c101 = arith.constant 101 : index
    %751 = memref.load %arg1[%c101] : memref<188xf32, #tpu.memory_space<smem>>
    %752 = vector.broadcast %751 : f32 to vector<2x8x128xf32>
    %753 = arith.mulf %746, %752 : vector<2x8x128xf32>
    %754 = arith.addf %737, %753 : vector<2x8x128xf32>
    %c102 = arith.constant 102 : index
    %755 = memref.load %arg1[%c102] : memref<188xf32, #tpu.memory_space<smem>>
    %756 = vector.broadcast %755 : f32 to vector<2x8x128xf32>
    %757 = arith.mulf %746, %756 : vector<2x8x128xf32>
    %758 = arith.addf %741, %757 : vector<2x8x128xf32>
    %c103 = arith.constant 103 : index
    %759 = memref.load %arg1[%c103] : memref<188xf32, #tpu.memory_space<smem>>
    %760 = vector.broadcast %759 : f32 to vector<2x8x128xf32>
    %761 = arith.mulf %746, %760 : vector<2x8x128xf32>
    %762 = arith.addf %745, %761 : vector<2x8x128xf32>
    %c116 = arith.constant 116 : index
    %763 = memref.load %arg1[%c116] : memref<188xf32, #tpu.memory_space<smem>>
    %764 = vector.broadcast %763 : f32 to vector<2x8x128xf32>
    %765 = arith.mulf %220, %764 : vector<2x8x128xf32>
    %766 = arith.addf %750, %765 : vector<2x8x128xf32>
    %c117 = arith.constant 117 : index
    %767 = memref.load %arg1[%c117] : memref<188xf32, #tpu.memory_space<smem>>
    %768 = vector.broadcast %767 : f32 to vector<2x8x128xf32>
    %769 = arith.mulf %220, %768 : vector<2x8x128xf32>
    %770 = arith.addf %754, %769 : vector<2x8x128xf32>
    %c118 = arith.constant 118 : index
    %771 = memref.load %arg1[%c118] : memref<188xf32, #tpu.memory_space<smem>>
    %772 = vector.broadcast %771 : f32 to vector<2x8x128xf32>
    %773 = arith.mulf %220, %772 : vector<2x8x128xf32>
    %774 = arith.addf %758, %773 : vector<2x8x128xf32>
    %c119 = arith.constant 119 : index
    %775 = memref.load %arg1[%c119] : memref<188xf32, #tpu.memory_space<smem>>
    %776 = vector.broadcast %775 : f32 to vector<2x8x128xf32>
    %777 = arith.mulf %220, %776 : vector<2x8x128xf32>
    %778 = arith.addf %762, %777 : vector<2x8x128xf32>
    %c126_i32_68 = arith.constant 126 : i32
    %779 = tpu.dynamic_rotate %220 by %c126_i32_68 dim 2 : vector<2x8x128xf32>, i32 -> vector<2x8x128xf32>
    %c132 = arith.constant 132 : index
    %780 = memref.load %arg1[%c132] : memref<188xf32, #tpu.memory_space<smem>>
    %781 = vector.broadcast %780 : f32 to vector<2x8x128xf32>
    %782 = arith.mulf %779, %781 : vector<2x8x128xf32>
    %783 = arith.addf %766, %782 : vector<2x8x128xf32>
    %c133 = arith.constant 133 : index
    %784 = memref.load %arg1[%c133] : memref<188xf32, #tpu.memory_space<smem>>
    %785 = vector.broadcast %784 : f32 to vector<2x8x128xf32>
    %786 = arith.mulf %779, %785 : vector<2x8x128xf32>
    %787 = arith.addf %770, %786 : vector<2x8x128xf32>
    %c134 = arith.constant 134 : index
    %788 = memref.load %arg1[%c134] : memref<188xf32, #tpu.memory_space<smem>>
    %789 = vector.broadcast %788 : f32 to vector<2x8x128xf32>
    %790 = arith.mulf %779, %789 : vector<2x8x128xf32>
    %791 = arith.addf %774, %790 : vector<2x8x128xf32>
    %c135 = arith.constant 135 : index
    %792 = memref.load %arg1[%c135] : memref<188xf32, #tpu.memory_space<smem>>
    %793 = vector.broadcast %792 : f32 to vector<2x8x128xf32>
    %794 = arith.mulf %779, %793 : vector<2x8x128xf32>
    %795 = arith.addf %778, %794 : vector<2x8x128xf32>
    %c7_i32_69 = arith.constant 7 : i32
    %796 = tpu.dynamic_rotate %220 by %c7_i32_69 dim 1 : vector<2x8x128xf32>, i32 -> vector<2x8x128xf32>
    %cst_70 = arith.constant 0.000000e+00 : f32
    %797 = vector.broadcast %cst_70 : f32 to vector<2x8x128xf32>
    %798 = arith.select %4, %796, %797 : vector<2x8x128xi1>, vector<2x8x128xf32>
    %c2_i32_71 = arith.constant 2 : i32
    %799 = tpu.dynamic_rotate %798 by %c2_i32_71 dim 2 : vector<2x8x128xf32>, i32 -> vector<2x8x128xf32>
    %c148 = arith.constant 148 : index
    %800 = memref.load %arg1[%c148] : memref<188xf32, #tpu.memory_space<smem>>
    %801 = vector.broadcast %800 : f32 to vector<2x8x128xf32>
    %802 = arith.mulf %799, %801 : vector<2x8x128xf32>
    %803 = arith.addf %783, %802 : vector<2x8x128xf32>
    %c149 = arith.constant 149 : index
    %804 = memref.load %arg1[%c149] : memref<188xf32, #tpu.memory_space<smem>>
    %805 = vector.broadcast %804 : f32 to vector<2x8x128xf32>
    %806 = arith.mulf %799, %805 : vector<2x8x128xf32>
    %807 = arith.addf %787, %806 : vector<2x8x128xf32>
    %c150 = arith.constant 150 : index
    %808 = memref.load %arg1[%c150] : memref<188xf32, #tpu.memory_space<smem>>
    %809 = vector.broadcast %808 : f32 to vector<2x8x128xf32>
    %810 = arith.mulf %799, %809 : vector<2x8x128xf32>
    %811 = arith.addf %791, %810 : vector<2x8x128xf32>
    %c151 = arith.constant 151 : index
    %812 = memref.load %arg1[%c151] : memref<188xf32, #tpu.memory_space<smem>>
    %813 = vector.broadcast %812 : f32 to vector<2x8x128xf32>
    %814 = arith.mulf %799, %813 : vector<2x8x128xf32>
    %815 = arith.addf %795, %814 : vector<2x8x128xf32>
    %c164 = arith.constant 164 : index
    %816 = memref.load %arg1[%c164] : memref<188xf32, #tpu.memory_space<smem>>
    %817 = vector.broadcast %816 : f32 to vector<2x8x128xf32>
    %818 = arith.mulf %798, %817 : vector<2x8x128xf32>
    %819 = arith.addf %803, %818 : vector<2x8x128xf32>
    %c165 = arith.constant 165 : index
    %820 = memref.load %arg1[%c165] : memref<188xf32, #tpu.memory_space<smem>>
    %821 = vector.broadcast %820 : f32 to vector<2x8x128xf32>
    %822 = arith.mulf %798, %821 : vector<2x8x128xf32>
    %823 = arith.addf %807, %822 : vector<2x8x128xf32>
    %c166 = arith.constant 166 : index
    %824 = memref.load %arg1[%c166] : memref<188xf32, #tpu.memory_space<smem>>
    %825 = vector.broadcast %824 : f32 to vector<2x8x128xf32>
    %826 = arith.mulf %798, %825 : vector<2x8x128xf32>
    %827 = arith.addf %811, %826 : vector<2x8x128xf32>
    %c167 = arith.constant 167 : index
    %828 = memref.load %arg1[%c167] : memref<188xf32, #tpu.memory_space<smem>>
    %829 = vector.broadcast %828 : f32 to vector<2x8x128xf32>
    %830 = arith.mulf %798, %829 : vector<2x8x128xf32>
    %831 = arith.addf %815, %830 : vector<2x8x128xf32>
    %c126_i32_72 = arith.constant 126 : i32
    %832 = tpu.dynamic_rotate %798 by %c126_i32_72 dim 2 : vector<2x8x128xf32>, i32 -> vector<2x8x128xf32>
    %c180 = arith.constant 180 : index
    %833 = memref.load %arg1[%c180] : memref<188xf32, #tpu.memory_space<smem>>
    %834 = vector.broadcast %833 : f32 to vector<2x8x128xf32>
    %835 = arith.mulf %832, %834 : vector<2x8x128xf32>
    %836 = arith.addf %819, %835 : vector<2x8x128xf32>
    %c181 = arith.constant 181 : index
    %837 = memref.load %arg1[%c181] : memref<188xf32, #tpu.memory_space<smem>>
    %838 = vector.broadcast %837 : f32 to vector<2x8x128xf32>
    %839 = arith.mulf %832, %838 : vector<2x8x128xf32>
    %840 = arith.addf %823, %839 : vector<2x8x128xf32>
    %c182 = arith.constant 182 : index
    %841 = memref.load %arg1[%c182] : memref<188xf32, #tpu.memory_space<smem>>
    %842 = vector.broadcast %841 : f32 to vector<2x8x128xf32>
    %843 = arith.mulf %832, %842 : vector<2x8x128xf32>
    %844 = arith.addf %827, %843 : vector<2x8x128xf32>
    %c183 = arith.constant 183 : index
    %845 = memref.load %arg1[%c183] : memref<188xf32, #tpu.memory_space<smem>>
    %846 = vector.broadcast %845 : f32 to vector<2x8x128xf32>
    %847 = arith.mulf %832, %846 : vector<2x8x128xf32>
    %848 = arith.addf %831, %847 : vector<2x8x128xf32>
    %c184 = arith.constant 184 : index
    %849 = memref.load %arg1[%c184] : memref<188xf32, #tpu.memory_space<smem>>
    %850 = vector.broadcast %849 : f32 to vector<2x8x128xf32>
    %851 = arith.addf %836, %850 : vector<2x8x128xf32>
    %cst_73 = arith.constant 0.000000e+00 : f32
    %852 = vector.broadcast %cst_73 : f32 to vector<2x8x128xf32>
    %853 = arith.cmpf ogt, %851, %852 : vector<2x8x128xf32>
    %854 = math.exp %851 : vector<2x8x128xf32>
    %cst_74 = arith.constant 1.000000e+00 : f32
    %855 = vector.broadcast %cst_74 : f32 to vector<2x8x128xf32>
    %856 = arith.subf %854, %855 : vector<2x8x128xf32>
    %857 = arith.select %853, %851, %856 : vector<2x8x128xi1>, vector<2x8x128xf32>
    %c126_i32_75 = arith.constant 126 : i32
    %858 = tpu.dynamic_rotate %857 by %c126_i32_75 dim 2 : vector<2x8x128xf32>, i32 -> vector<2x8x128xf32>
    %859 = arith.maximumf %857, %858 : vector<2x8x128xf32>
    %860 = vector.shape_cast %859 : vector<2x8x128xf32> to vector<16x128xf32>
    %c185 = arith.constant 185 : index
    %861 = memref.load %arg1[%c185] : memref<188xf32, #tpu.memory_space<smem>>
    %862 = vector.broadcast %861 : f32 to vector<2x8x128xf32>
    %863 = arith.addf %840, %862 : vector<2x8x128xf32>
    %cst_76 = arith.constant 0.000000e+00 : f32
    %864 = vector.broadcast %cst_76 : f32 to vector<2x8x128xf32>
    %865 = arith.cmpf ogt, %863, %864 : vector<2x8x128xf32>
    %866 = math.exp %863 : vector<2x8x128xf32>
    %cst_77 = arith.constant 1.000000e+00 : f32
    %867 = vector.broadcast %cst_77 : f32 to vector<2x8x128xf32>
    %868 = arith.subf %866, %867 : vector<2x8x128xf32>
    %869 = arith.select %865, %863, %868 : vector<2x8x128xi1>, vector<2x8x128xf32>
    %c126_i32_78 = arith.constant 126 : i32
    %870 = tpu.dynamic_rotate %869 by %c126_i32_78 dim 2 : vector<2x8x128xf32>, i32 -> vector<2x8x128xf32>
    %871 = arith.maximumf %869, %870 : vector<2x8x128xf32>
    %872 = vector.shape_cast %871 : vector<2x8x128xf32> to vector<16x128xf32>
    %c186 = arith.constant 186 : index
    %873 = memref.load %arg1[%c186] : memref<188xf32, #tpu.memory_space<smem>>
    %874 = vector.broadcast %873 : f32 to vector<2x8x128xf32>
    %875 = arith.addf %844, %874 : vector<2x8x128xf32>
    %cst_79 = arith.constant 0.000000e+00 : f32
    %876 = vector.broadcast %cst_79 : f32 to vector<2x8x128xf32>
    %877 = arith.cmpf ogt, %875, %876 : vector<2x8x128xf32>
    %878 = math.exp %875 : vector<2x8x128xf32>
    %cst_80 = arith.constant 1.000000e+00 : f32
    %879 = vector.broadcast %cst_80 : f32 to vector<2x8x128xf32>
    %880 = arith.subf %878, %879 : vector<2x8x128xf32>
    %881 = arith.select %877, %875, %880 : vector<2x8x128xi1>, vector<2x8x128xf32>
    %c126_i32_81 = arith.constant 126 : i32
    %882 = tpu.dynamic_rotate %881 by %c126_i32_81 dim 2 : vector<2x8x128xf32>, i32 -> vector<2x8x128xf32>
    %883 = arith.maximumf %881, %882 : vector<2x8x128xf32>
    %884 = vector.shape_cast %883 : vector<2x8x128xf32> to vector<16x128xf32>
    %c187 = arith.constant 187 : index
    %885 = memref.load %arg1[%c187] : memref<188xf32, #tpu.memory_space<smem>>
    %886 = vector.broadcast %885 : f32 to vector<2x8x128xf32>
    %887 = arith.addf %848, %886 : vector<2x8x128xf32>
    %cst_82 = arith.constant 0.000000e+00 : f32
    %888 = vector.broadcast %cst_82 : f32 to vector<2x8x128xf32>
    %889 = arith.cmpf ogt, %887, %888 : vector<2x8x128xf32>
    %890 = math.exp %887 : vector<2x8x128xf32>
    %cst_83 = arith.constant 1.000000e+00 : f32
    %891 = vector.broadcast %cst_83 : f32 to vector<2x8x128xf32>
    %892 = arith.subf %890, %891 : vector<2x8x128xf32>
    %893 = arith.select %889, %887, %892 : vector<2x8x128xi1>, vector<2x8x128xf32>
    %c126_i32_84 = arith.constant 126 : i32
    %894 = tpu.dynamic_rotate %893 by %c126_i32_84 dim 2 : vector<2x8x128xf32>, i32 -> vector<2x8x128xf32>
    %895 = arith.maximumf %893, %894 : vector<2x8x128xf32>
    %896 = vector.shape_cast %895 : vector<2x8x128xf32> to vector<16x128xf32>
    %c528 = arith.constant 528 : index
    %c0_85 = arith.constant 0 : index
    %897 = vector.load %arg2[%c528, %c0_85] : memref<600x128xf32, #tpu.memory_space<vmem>>, vector<1x64xf32>
    %cst_86 = arith.constant 0.000000e+00 : f32
    %898 = vector.broadcast %cst_86 : f32 to vector<16x64xf32>
    %c0_87 = arith.constant 0 : index
    %c0_88 = arith.constant 0 : index
    %899 = vector.load %arg2[%c0_87, %c0_88] : memref<600x128xf32, #tpu.memory_space<vmem>>, vector<128x64xf32>
    %cst_89 = arith.constant dense<0.000000e+00> : vector<16x64xf32>
    %900 = tpu.matmul %860, %899, %cst_89 {dimension_numbers = #tpu.dot_dimension_numbers<[1], [0], [0], [1], [0, 0, 1, 1], [], []>} : vector<16x128xf32>, vector<128x64xf32>, vector<16x64xf32> -> vector<16x64xf32>
    %901 = arith.addf %898, %900 : vector<16x64xf32>
    %c128_90 = arith.constant 128 : index
    %c0_91 = arith.constant 0 : index
    %902 = vector.load %arg2[%c128_90, %c0_91] : memref<600x128xf32, #tpu.memory_space<vmem>>, vector<128x64xf32>
    %cst_92 = arith.constant dense<0.000000e+00> : vector<16x64xf32>
    %903 = tpu.matmul %872, %902, %cst_92 {dimension_numbers = #tpu.dot_dimension_numbers<[1], [0], [0], [1], [0, 0, 1, 1], [], []>} : vector<16x128xf32>, vector<128x64xf32>, vector<16x64xf32> -> vector<16x64xf32>
    %904 = arith.addf %901, %903 : vector<16x64xf32>
    %c256 = arith.constant 256 : index
    %c0_93 = arith.constant 0 : index
    %905 = vector.load %arg2[%c256, %c0_93] : memref<600x128xf32, #tpu.memory_space<vmem>>, vector<128x64xf32>
    %cst_94 = arith.constant dense<0.000000e+00> : vector<16x64xf32>
    %906 = tpu.matmul %884, %905, %cst_94 {dimension_numbers = #tpu.dot_dimension_numbers<[1], [0], [0], [1], [0, 0, 1, 1], [], []>} : vector<16x128xf32>, vector<128x64xf32>, vector<16x64xf32> -> vector<16x64xf32>
    %907 = arith.addf %904, %906 : vector<16x64xf32>
    %c384 = arith.constant 384 : index
    %c0_95 = arith.constant 0 : index
    %908 = vector.load %arg2[%c384, %c0_95] : memref<600x128xf32, #tpu.memory_space<vmem>>, vector<128x64xf32>
    %cst_96 = arith.constant dense<0.000000e+00> : vector<16x64xf32>
    %909 = tpu.matmul %896, %908, %cst_96 {dimension_numbers = #tpu.dot_dimension_numbers<[1], [0], [0], [1], [0, 0, 1, 1], [], []>} : vector<16x128xf32>, vector<128x64xf32>, vector<16x64xf32> -> vector<16x64xf32>
    %910 = arith.addf %907, %909 : vector<16x64xf32>
    %911 = vector.broadcast %897 : vector<1x64xf32> to vector<16x64xf32>
    %912 = arith.addf %910, %911 : vector<16x64xf32>
    %913 = vector.shape_cast %912 : vector<16x64xf32> to vector<2x8x64xf32>
    %c512 = arith.constant 512 : index
    %c0_97 = arith.constant 0 : index
    %914 = vector.load %arg2[%c512, %c0_97] : memref<600x128xf32, #tpu.memory_space<vmem>>, vector<16x64xf32>
    %c536 = arith.constant 536 : index
    %c0_98 = arith.constant 0 : index
    %915 = vector.load %arg2[%c536, %c0_98] : memref<600x128xf32, #tpu.memory_space<vmem>>, vector<32x64xf32>
    %c568 = arith.constant 568 : index
    %c0_99 = arith.constant 0 : index
    %916 = vector.load %arg2[%c568, %c0_99] : memref<600x128xf32, #tpu.memory_space<vmem>>, vector<1x64xf32>
    %cst_100 = arith.constant 0.000000e+00 : f32
    %917 = vector.broadcast %cst_100 : f32 to vector<2x16xf32>
    %cst_101 = arith.constant 0.000000e+00 : f32
    %918 = vector.broadcast %cst_101 : f32 to vector<2x16xf32>
    %cst_102 = arith.constant 0.000000e+00 : f32
    %919 = vector.broadcast %cst_102 : f32 to vector<2x16xf32>
    %cst_103 = arith.constant 0.000000e+00 : f32
    %920 = vector.broadcast %cst_103 : f32 to vector<2x16xf32>
    %921 = vector.extract_strided_slice %913 {offsets = [0, 0, 0], sizes = [2, 1, 64], strides = [1, 1, 1]} : vector<2x8x64xf32> to vector<2x1x64xf32>
    %922 = vector.shape_cast %921 : vector<2x1x64xf32> to vector<2x64xf32>
    %cst_104 = arith.constant dense<0.000000e+00> : vector<2x64xf32>
    %923 = tpu.matmul %917, %914, %cst_104 {dimension_numbers = #tpu.dot_dimension_numbers<[1], [0], [0], [1], [0, 0, 1, 1], [], []>} : vector<2x16xf32>, vector<16x64xf32>, vector<2x64xf32> -> vector<2x64xf32>
    %924 = arith.addf %922, %923 : vector<2x64xf32>
    %925 = arith.negf %924 : vector<2x64xf32>
    %926 = math.exp %925 : vector<2x64xf32>
    %cst_105 = arith.constant 1.000000e+00 : f32
    %927 = vector.broadcast %cst_105 : f32 to vector<2x64xf32>
    %928 = arith.addf %927, %926 : vector<2x64xf32>
    %929 = arith.divf %927, %928 : vector<2x64xf32>
    %930 = math.tanh %924 : vector<2x64xf32>
    %931 = vector.extract_strided_slice %929 {offsets = [0, 16], sizes = [2, 16], strides = [1, 1]} : vector<2x64xf32> to vector<2x16xf32>
    %932 = arith.mulf %931, %918 : vector<2x16xf32>
    %933 = vector.extract_strided_slice %929 {offsets = [0, 0], sizes = [2, 16], strides = [1, 1]} : vector<2x64xf32> to vector<2x16xf32>
    %934 = vector.extract_strided_slice %930 {offsets = [0, 48], sizes = [2, 16], strides = [1, 1]} : vector<2x64xf32> to vector<2x16xf32>
    %935 = arith.mulf %933, %934 : vector<2x16xf32>
    %936 = arith.addf %932, %935 : vector<2x16xf32>
    %937 = vector.extract_strided_slice %929 {offsets = [0, 32], sizes = [2, 16], strides = [1, 1]} : vector<2x64xf32> to vector<2x16xf32>
    %938 = math.tanh %936 : vector<2x16xf32>
    %939 = arith.mulf %937, %938 : vector<2x16xf32>
    %c0_106 = arith.constant 0 : index
    %c0_107 = arith.constant 0 : index
    %940 = vector.load %arg4[%c0_106, %c0_107] : memref<2x32xf32, #tpu.memory_space<vmem>>, vector<2x16xf32>
    tpu.vector_store %arg4[%c0_106, %c0_107], %939 {strides = array<i32>} : memref<2x32xf32, #tpu.memory_space<vmem>>, vector<2x16xf32>,
    %c0_108 = arith.constant 0 : index
    %c16_109 = arith.constant 16 : index
    %941 = vector.load %arg4[%c0_108, %c16_109] : memref<2x32xf32, #tpu.memory_space<vmem>>, vector<2x16xf32>
    tpu.vector_store %arg4[%c0_108, %c16_109], %919 {strides = array<i32>} : memref<2x32xf32, #tpu.memory_space<vmem>>, vector<2x16xf32>,
    %c0_110 = arith.constant 0 : index
    %c0_111 = arith.constant 0 : index
    %942 = vector.load %arg4[%c0_110, %c0_111] : memref<2x32xf32, #tpu.memory_space<vmem>>, vector<2x32xf32>
    %cst_112 = arith.constant dense<0.000000e+00> : vector<2x64xf32>
    %943 = tpu.matmul %942, %915, %cst_112 {dimension_numbers = #tpu.dot_dimension_numbers<[1], [0], [0], [1], [0, 0, 1, 1], [], []>} : vector<2x32xf32>, vector<32x64xf32>, vector<2x64xf32> -> vector<2x64xf32>
    %944 = vector.broadcast %916 : vector<1x64xf32> to vector<2x64xf32>
    %945 = arith.addf %944, %943 : vector<2x64xf32>
    %946 = arith.negf %945 : vector<2x64xf32>
    %947 = math.exp %946 : vector<2x64xf32>
    %cst_113 = arith.constant 1.000000e+00 : f32
    %948 = vector.broadcast %cst_113 : f32 to vector<2x64xf32>
    %949 = arith.addf %948, %947 : vector<2x64xf32>
    %950 = arith.divf %948, %949 : vector<2x64xf32>
    %951 = math.tanh %945 : vector<2x64xf32>
    %952 = vector.extract_strided_slice %950 {offsets = [0, 16], sizes = [2, 16], strides = [1, 1]} : vector<2x64xf32> to vector<2x16xf32>
    %953 = arith.mulf %952, %920 : vector<2x16xf32>
    %954 = vector.extract_strided_slice %950 {offsets = [0, 0], sizes = [2, 16], strides = [1, 1]} : vector<2x64xf32> to vector<2x16xf32>
    %955 = vector.extract_strided_slice %951 {offsets = [0, 48], sizes = [2, 16], strides = [1, 1]} : vector<2x64xf32> to vector<2x16xf32>
    %956 = arith.mulf %954, %955 : vector<2x16xf32>
    %957 = arith.addf %953, %956 : vector<2x16xf32>
    %958 = vector.extract_strided_slice %950 {offsets = [0, 32], sizes = [2, 16], strides = [1, 1]} : vector<2x64xf32> to vector<2x16xf32>
    %959 = math.tanh %957 : vector<2x16xf32>
    %960 = arith.mulf %958, %959 : vector<2x16xf32>
    %c0_114 = arith.constant 0 : index
    %c0_115 = arith.constant 0 : index
    %961 = vector.load %arg5[%c0_114, %c0_115] : memref<16x16xf32, #tpu.memory_space<vmem>>, vector<2x16xf32>
    tpu.vector_store %arg5[%c0_114, %c0_115], %960 {strides = array<i32>} : memref<16x16xf32, #tpu.memory_space<vmem>>, vector<2x16xf32>,
    %962 = vector.extract_strided_slice %913 {offsets = [0, 1, 0], sizes = [2, 1, 64], strides = [1, 1, 1]} : vector<2x8x64xf32> to vector<2x1x64xf32>
    %963 = vector.shape_cast %962 : vector<2x1x64xf32> to vector<2x64xf32>
    %cst_116 = arith.constant dense<0.000000e+00> : vector<2x64xf32>
    %964 = tpu.matmul %939, %914, %cst_116 {dimension_numbers = #tpu.dot_dimension_numbers<[1], [0], [0], [1], [0, 0, 1, 1], [], []>} : vector<2x16xf32>, vector<16x64xf32>, vector<2x64xf32> -> vector<2x64xf32>
    %965 = arith.addf %963, %964 : vector<2x64xf32>
    %966 = arith.negf %965 : vector<2x64xf32>
    %967 = math.exp %966 : vector<2x64xf32>
    %cst_117 = arith.constant 1.000000e+00 : f32
    %968 = vector.broadcast %cst_117 : f32 to vector<2x64xf32>
    %969 = arith.addf %968, %967 : vector<2x64xf32>
    %970 = arith.divf %968, %969 : vector<2x64xf32>
    %971 = math.tanh %965 : vector<2x64xf32>
    %972 = vector.extract_strided_slice %970 {offsets = [0, 16], sizes = [2, 16], strides = [1, 1]} : vector<2x64xf32> to vector<2x16xf32>
    %973 = arith.mulf %972, %936 : vector<2x16xf32>
    %974 = vector.extract_strided_slice %970 {offsets = [0, 0], sizes = [2, 16], strides = [1, 1]} : vector<2x64xf32> to vector<2x16xf32>
    %975 = vector.extract_strided_slice %971 {offsets = [0, 48], sizes = [2, 16], strides = [1, 1]} : vector<2x64xf32> to vector<2x16xf32>
    %976 = arith.mulf %974, %975 : vector<2x16xf32>
    %977 = arith.addf %973, %976 : vector<2x16xf32>
    %978 = vector.extract_strided_slice %970 {offsets = [0, 32], sizes = [2, 16], strides = [1, 1]} : vector<2x64xf32> to vector<2x16xf32>
    %979 = math.tanh %977 : vector<2x16xf32>
    %980 = arith.mulf %978, %979 : vector<2x16xf32>
    %c0_118 = arith.constant 0 : index
    %c0_119 = arith.constant 0 : index
    %981 = vector.load %arg4[%c0_118, %c0_119] : memref<2x32xf32, #tpu.memory_space<vmem>>, vector<2x16xf32>
    tpu.vector_store %arg4[%c0_118, %c0_119], %980 {strides = array<i32>} : memref<2x32xf32, #tpu.memory_space<vmem>>, vector<2x16xf32>,
    %c0_120 = arith.constant 0 : index
    %c16_121 = arith.constant 16 : index
    %982 = vector.load %arg4[%c0_120, %c16_121] : memref<2x32xf32, #tpu.memory_space<vmem>>, vector<2x16xf32>
    tpu.vector_store %arg4[%c0_120, %c16_121], %960 {strides = array<i32>} : memref<2x32xf32, #tpu.memory_space<vmem>>, vector<2x16xf32>,
    %c0_122 = arith.constant 0 : index
    %c0_123 = arith.constant 0 : index
    %983 = vector.load %arg4[%c0_122, %c0_123] : memref<2x32xf32, #tpu.memory_space<vmem>>, vector<2x32xf32>
    %cst_124 = arith.constant dense<0.000000e+00> : vector<2x64xf32>
    %984 = tpu.matmul %983, %915, %cst_124 {dimension_numbers = #tpu.dot_dimension_numbers<[1], [0], [0], [1], [0, 0, 1, 1], [], []>} : vector<2x32xf32>, vector<32x64xf32>, vector<2x64xf32> -> vector<2x64xf32>
    %985 = vector.broadcast %916 : vector<1x64xf32> to vector<2x64xf32>
    %986 = arith.addf %985, %984 : vector<2x64xf32>
    %987 = arith.negf %986 : vector<2x64xf32>
    %988 = math.exp %987 : vector<2x64xf32>
    %cst_125 = arith.constant 1.000000e+00 : f32
    %989 = vector.broadcast %cst_125 : f32 to vector<2x64xf32>
    %990 = arith.addf %989, %988 : vector<2x64xf32>
    %991 = arith.divf %989, %990 : vector<2x64xf32>
    %992 = math.tanh %986 : vector<2x64xf32>
    %993 = vector.extract_strided_slice %991 {offsets = [0, 16], sizes = [2, 16], strides = [1, 1]} : vector<2x64xf32> to vector<2x16xf32>
    %994 = arith.mulf %993, %957 : vector<2x16xf32>
    %995 = vector.extract_strided_slice %991 {offsets = [0, 0], sizes = [2, 16], strides = [1, 1]} : vector<2x64xf32> to vector<2x16xf32>
    %996 = vector.extract_strided_slice %992 {offsets = [0, 48], sizes = [2, 16], strides = [1, 1]} : vector<2x64xf32> to vector<2x16xf32>
    %997 = arith.mulf %995, %996 : vector<2x16xf32>
    %998 = arith.addf %994, %997 : vector<2x16xf32>
    %999 = vector.extract_strided_slice %991 {offsets = [0, 32], sizes = [2, 16], strides = [1, 1]} : vector<2x64xf32> to vector<2x16xf32>
    %1000 = math.tanh %998 : vector<2x16xf32>
    %1001 = arith.mulf %999, %1000 : vector<2x16xf32>
    %c2_126 = arith.constant 2 : index
    %c0_127 = arith.constant 0 : index
    %1002 = vector.load %arg5[%c2_126, %c0_127] : memref<16x16xf32, #tpu.memory_space<vmem>>, vector<2x16xf32>
    tpu.vector_store %arg5[%c2_126, %c0_127], %1001 {strides = array<i32>} : memref<16x16xf32, #tpu.memory_space<vmem>>, vector<2x16xf32>,
    %1003 = vector.extract_strided_slice %913 {offsets = [0, 2, 0], sizes = [2, 1, 64], strides = [1, 1, 1]} : vector<2x8x64xf32> to vector<2x1x64xf32>
    %1004 = vector.shape_cast %1003 : vector<2x1x64xf32> to vector<2x64xf32>
    %cst_128 = arith.constant dense<0.000000e+00> : vector<2x64xf32>
    %1005 = tpu.matmul %980, %914, %cst_128 {dimension_numbers = #tpu.dot_dimension_numbers<[1], [0], [0], [1], [0, 0, 1, 1], [], []>} : vector<2x16xf32>, vector<16x64xf32>, vector<2x64xf32> -> vector<2x64xf32>
    %1006 = arith.addf %1004, %1005 : vector<2x64xf32>
    %1007 = arith.negf %1006 : vector<2x64xf32>
    %1008 = math.exp %1007 : vector<2x64xf32>
    %cst_129 = arith.constant 1.000000e+00 : f32
    %1009 = vector.broadcast %cst_129 : f32 to vector<2x64xf32>
    %1010 = arith.addf %1009, %1008 : vector<2x64xf32>
    %1011 = arith.divf %1009, %1010 : vector<2x64xf32>
    %1012 = math.tanh %1006 : vector<2x64xf32>
    %1013 = vector.extract_strided_slice %1011 {offsets = [0, 16], sizes = [2, 16], strides = [1, 1]} : vector<2x64xf32> to vector<2x16xf32>
    %1014 = arith.mulf %1013, %977 : vector<2x16xf32>
    %1015 = vector.extract_strided_slice %1011 {offsets = [0, 0], sizes = [2, 16], strides = [1, 1]} : vector<2x64xf32> to vector<2x16xf32>
    %1016 = vector.extract_strided_slice %1012 {offsets = [0, 48], sizes = [2, 16], strides = [1, 1]} : vector<2x64xf32> to vector<2x16xf32>
    %1017 = arith.mulf %1015, %1016 : vector<2x16xf32>
    %1018 = arith.addf %1014, %1017 : vector<2x16xf32>
    %1019 = vector.extract_strided_slice %1011 {offsets = [0, 32], sizes = [2, 16], strides = [1, 1]} : vector<2x64xf32> to vector<2x16xf32>
    %1020 = math.tanh %1018 : vector<2x16xf32>
    %1021 = arith.mulf %1019, %1020 : vector<2x16xf32>
    %c0_130 = arith.constant 0 : index
    %c0_131 = arith.constant 0 : index
    %1022 = vector.load %arg4[%c0_130, %c0_131] : memref<2x32xf32, #tpu.memory_space<vmem>>, vector<2x16xf32>
    tpu.vector_store %arg4[%c0_130, %c0_131], %1021 {strides = array<i32>} : memref<2x32xf32, #tpu.memory_space<vmem>>, vector<2x16xf32>,
    %c0_132 = arith.constant 0 : index
    %c16_133 = arith.constant 16 : index
    %1023 = vector.load %arg4[%c0_132, %c16_133] : memref<2x32xf32, #tpu.memory_space<vmem>>, vector<2x16xf32>
    tpu.vector_store %arg4[%c0_132, %c16_133], %1001 {strides = array<i32>} : memref<2x32xf32, #tpu.memory_space<vmem>>, vector<2x16xf32>,
    %c0_134 = arith.constant 0 : index
    %c0_135 = arith.constant 0 : index
    %1024 = vector.load %arg4[%c0_134, %c0_135] : memref<2x32xf32, #tpu.memory_space<vmem>>, vector<2x32xf32>
    %cst_136 = arith.constant dense<0.000000e+00> : vector<2x64xf32>
    %1025 = tpu.matmul %1024, %915, %cst_136 {dimension_numbers = #tpu.dot_dimension_numbers<[1], [0], [0], [1], [0, 0, 1, 1], [], []>} : vector<2x32xf32>, vector<32x64xf32>, vector<2x64xf32> -> vector<2x64xf32>
    %1026 = vector.broadcast %916 : vector<1x64xf32> to vector<2x64xf32>
    %1027 = arith.addf %1026, %1025 : vector<2x64xf32>
    %1028 = arith.negf %1027 : vector<2x64xf32>
    %1029 = math.exp %1028 : vector<2x64xf32>
    %cst_137 = arith.constant 1.000000e+00 : f32
    %1030 = vector.broadcast %cst_137 : f32 to vector<2x64xf32>
    %1031 = arith.addf %1030, %1029 : vector<2x64xf32>
    %1032 = arith.divf %1030, %1031 : vector<2x64xf32>
    %1033 = math.tanh %1027 : vector<2x64xf32>
    %1034 = vector.extract_strided_slice %1032 {offsets = [0, 16], sizes = [2, 16], strides = [1, 1]} : vector<2x64xf32> to vector<2x16xf32>
    %1035 = arith.mulf %1034, %998 : vector<2x16xf32>
    %1036 = vector.extract_strided_slice %1032 {offsets = [0, 0], sizes = [2, 16], strides = [1, 1]} : vector<2x64xf32> to vector<2x16xf32>
    %1037 = vector.extract_strided_slice %1033 {offsets = [0, 48], sizes = [2, 16], strides = [1, 1]} : vector<2x64xf32> to vector<2x16xf32>
    %1038 = arith.mulf %1036, %1037 : vector<2x16xf32>
    %1039 = arith.addf %1035, %1038 : vector<2x16xf32>
    %1040 = vector.extract_strided_slice %1032 {offsets = [0, 32], sizes = [2, 16], strides = [1, 1]} : vector<2x64xf32> to vector<2x16xf32>
    %1041 = math.tanh %1039 : vector<2x16xf32>
    %1042 = arith.mulf %1040, %1041 : vector<2x16xf32>
    %c4_138 = arith.constant 4 : index
    %c0_139 = arith.constant 0 : index
    %1043 = vector.load %arg5[%c4_138, %c0_139] : memref<16x16xf32, #tpu.memory_space<vmem>>, vector<2x16xf32>
    tpu.vector_store %arg5[%c4_138, %c0_139], %1042 {strides = array<i32>} : memref<16x16xf32, #tpu.memory_space<vmem>>, vector<2x16xf32>,
    %1044 = vector.extract_strided_slice %913 {offsets = [0, 3, 0], sizes = [2, 1, 64], strides = [1, 1, 1]} : vector<2x8x64xf32> to vector<2x1x64xf32>
    %1045 = vector.shape_cast %1044 : vector<2x1x64xf32> to vector<2x64xf32>
    %cst_140 = arith.constant dense<0.000000e+00> : vector<2x64xf32>
    %1046 = tpu.matmul %1021, %914, %cst_140 {dimension_numbers = #tpu.dot_dimension_numbers<[1], [0], [0], [1], [0, 0, 1, 1], [], []>} : vector<2x16xf32>, vector<16x64xf32>, vector<2x64xf32> -> vector<2x64xf32>
    %1047 = arith.addf %1045, %1046 : vector<2x64xf32>
    %1048 = arith.negf %1047 : vector<2x64xf32>
    %1049 = math.exp %1048 : vector<2x64xf32>
    %cst_141 = arith.constant 1.000000e+00 : f32
    %1050 = vector.broadcast %cst_141 : f32 to vector<2x64xf32>
    %1051 = arith.addf %1050, %1049 : vector<2x64xf32>
    %1052 = arith.divf %1050, %1051 : vector<2x64xf32>
    %1053 = math.tanh %1047 : vector<2x64xf32>
    %1054 = vector.extract_strided_slice %1052 {offsets = [0, 16], sizes = [2, 16], strides = [1, 1]} : vector<2x64xf32> to vector<2x16xf32>
    %1055 = arith.mulf %1054, %1018 : vector<2x16xf32>
    %1056 = vector.extract_strided_slice %1052 {offsets = [0, 0], sizes = [2, 16], strides = [1, 1]} : vector<2x64xf32> to vector<2x16xf32>
    %1057 = vector.extract_strided_slice %1053 {offsets = [0, 48], sizes = [2, 16], strides = [1, 1]} : vector<2x64xf32> to vector<2x16xf32>
    %1058 = arith.mulf %1056, %1057 : vector<2x16xf32>
    %1059 = arith.addf %1055, %1058 : vector<2x16xf32>
    %1060 = vector.extract_strided_slice %1052 {offsets = [0, 32], sizes = [2, 16], strides = [1, 1]} : vector<2x64xf32> to vector<2x16xf32>
    %1061 = math.tanh %1059 : vector<2x16xf32>
    %1062 = arith.mulf %1060, %1061 : vector<2x16xf32>
    %c0_142 = arith.constant 0 : index
    %c0_143 = arith.constant 0 : index
    %1063 = vector.load %arg4[%c0_142, %c0_143] : memref<2x32xf32, #tpu.memory_space<vmem>>, vector<2x16xf32>
    tpu.vector_store %arg4[%c0_142, %c0_143], %1062 {strides = array<i32>} : memref<2x32xf32, #tpu.memory_space<vmem>>, vector<2x16xf32>,
    %c0_144 = arith.constant 0 : index
    %c16_145 = arith.constant 16 : index
    %1064 = vector.load %arg4[%c0_144, %c16_145] : memref<2x32xf32, #tpu.memory_space<vmem>>, vector<2x16xf32>
    tpu.vector_store %arg4[%c0_144, %c16_145], %1042 {strides = array<i32>} : memref<2x32xf32, #tpu.memory_space<vmem>>, vector<2x16xf32>,
    %c0_146 = arith.constant 0 : index
    %c0_147 = arith.constant 0 : index
    %1065 = vector.load %arg4[%c0_146, %c0_147] : memref<2x32xf32, #tpu.memory_space<vmem>>, vector<2x32xf32>
    %cst_148 = arith.constant dense<0.000000e+00> : vector<2x64xf32>
    %1066 = tpu.matmul %1065, %915, %cst_148 {dimension_numbers = #tpu.dot_dimension_numbers<[1], [0], [0], [1], [0, 0, 1, 1], [], []>} : vector<2x32xf32>, vector<32x64xf32>, vector<2x64xf32> -> vector<2x64xf32>
    %1067 = vector.broadcast %916 : vector<1x64xf32> to vector<2x64xf32>
    %1068 = arith.addf %1067, %1066 : vector<2x64xf32>
    %1069 = arith.negf %1068 : vector<2x64xf32>
    %1070 = math.exp %1069 : vector<2x64xf32>
    %cst_149 = arith.constant 1.000000e+00 : f32
    %1071 = vector.broadcast %cst_149 : f32 to vector<2x64xf32>
    %1072 = arith.addf %1071, %1070 : vector<2x64xf32>
    %1073 = arith.divf %1071, %1072 : vector<2x64xf32>
    %1074 = math.tanh %1068 : vector<2x64xf32>
    %1075 = vector.extract_strided_slice %1073 {offsets = [0, 16], sizes = [2, 16], strides = [1, 1]} : vector<2x64xf32> to vector<2x16xf32>
    %1076 = arith.mulf %1075, %1039 : vector<2x16xf32>
    %1077 = vector.extract_strided_slice %1073 {offsets = [0, 0], sizes = [2, 16], strides = [1, 1]} : vector<2x64xf32> to vector<2x16xf32>
    %1078 = vector.extract_strided_slice %1074 {offsets = [0, 48], sizes = [2, 16], strides = [1, 1]} : vector<2x64xf32> to vector<2x16xf32>
    %1079 = arith.mulf %1077, %1078 : vector<2x16xf32>
    %1080 = arith.addf %1076, %1079 : vector<2x16xf32>
    %1081 = vector.extract_strided_slice %1073 {offsets = [0, 32], sizes = [2, 16], strides = [1, 1]} : vector<2x64xf32> to vector<2x16xf32>
    %1082 = math.tanh %1080 : vector<2x16xf32>
    %1083 = arith.mulf %1081, %1082 : vector<2x16xf32>
    %c6_150 = arith.constant 6 : index
    %c0_151 = arith.constant 0 : index
    %1084 = vector.load %arg5[%c6_150, %c0_151] : memref<16x16xf32, #tpu.memory_space<vmem>>, vector<2x16xf32>
    tpu.vector_store %arg5[%c6_150, %c0_151], %1083 {strides = array<i32>} : memref<16x16xf32, #tpu.memory_space<vmem>>, vector<2x16xf32>,
    %1085 = vector.extract_strided_slice %913 {offsets = [0, 4, 0], sizes = [2, 1, 64], strides = [1, 1, 1]} : vector<2x8x64xf32> to vector<2x1x64xf32>
    %1086 = vector.shape_cast %1085 : vector<2x1x64xf32> to vector<2x64xf32>
    %cst_152 = arith.constant dense<0.000000e+00> : vector<2x64xf32>
    %1087 = tpu.matmul %1062, %914, %cst_152 {dimension_numbers = #tpu.dot_dimension_numbers<[1], [0], [0], [1], [0, 0, 1, 1], [], []>} : vector<2x16xf32>, vector<16x64xf32>, vector<2x64xf32> -> vector<2x64xf32>
    %1088 = arith.addf %1086, %1087 : vector<2x64xf32>
    %1089 = arith.negf %1088 : vector<2x64xf32>
    %1090 = math.exp %1089 : vector<2x64xf32>
    %cst_153 = arith.constant 1.000000e+00 : f32
    %1091 = vector.broadcast %cst_153 : f32 to vector<2x64xf32>
    %1092 = arith.addf %1091, %1090 : vector<2x64xf32>
    %1093 = arith.divf %1091, %1092 : vector<2x64xf32>
    %1094 = math.tanh %1088 : vector<2x64xf32>
    %1095 = vector.extract_strided_slice %1093 {offsets = [0, 16], sizes = [2, 16], strides = [1, 1]} : vector<2x64xf32> to vector<2x16xf32>
    %1096 = arith.mulf %1095, %1059 : vector<2x16xf32>
    %1097 = vector.extract_strided_slice %1093 {offsets = [0, 0], sizes = [2, 16], strides = [1, 1]} : vector<2x64xf32> to vector<2x16xf32>
    %1098 = vector.extract_strided_slice %1094 {offsets = [0, 48], sizes = [2, 16], strides = [1, 1]} : vector<2x64xf32> to vector<2x16xf32>
    %1099 = arith.mulf %1097, %1098 : vector<2x16xf32>
    %1100 = arith.addf %1096, %1099 : vector<2x16xf32>
    %1101 = vector.extract_strided_slice %1093 {offsets = [0, 32], sizes = [2, 16], strides = [1, 1]} : vector<2x64xf32> to vector<2x16xf32>
    %1102 = math.tanh %1100 : vector<2x16xf32>
    %1103 = arith.mulf %1101, %1102 : vector<2x16xf32>
    %c0_154 = arith.constant 0 : index
    %c0_155 = arith.constant 0 : index
    %1104 = vector.load %arg4[%c0_154, %c0_155] : memref<2x32xf32, #tpu.memory_space<vmem>>, vector<2x16xf32>
    tpu.vector_store %arg4[%c0_154, %c0_155], %1103 {strides = array<i32>} : memref<2x32xf32, #tpu.memory_space<vmem>>, vector<2x16xf32>,
    %c0_156 = arith.constant 0 : index
    %c16_157 = arith.constant 16 : index
    %1105 = vector.load %arg4[%c0_156, %c16_157] : memref<2x32xf32, #tpu.memory_space<vmem>>, vector<2x16xf32>
    tpu.vector_store %arg4[%c0_156, %c16_157], %1083 {strides = array<i32>} : memref<2x32xf32, #tpu.memory_space<vmem>>, vector<2x16xf32>,
    %c0_158 = arith.constant 0 : index
    %c0_159 = arith.constant 0 : index
    %1106 = vector.load %arg4[%c0_158, %c0_159] : memref<2x32xf32, #tpu.memory_space<vmem>>, vector<2x32xf32>
    %cst_160 = arith.constant dense<0.000000e+00> : vector<2x64xf32>
    %1107 = tpu.matmul %1106, %915, %cst_160 {dimension_numbers = #tpu.dot_dimension_numbers<[1], [0], [0], [1], [0, 0, 1, 1], [], []>} : vector<2x32xf32>, vector<32x64xf32>, vector<2x64xf32> -> vector<2x64xf32>
    %1108 = vector.broadcast %916 : vector<1x64xf32> to vector<2x64xf32>
    %1109 = arith.addf %1108, %1107 : vector<2x64xf32>
    %1110 = arith.negf %1109 : vector<2x64xf32>
    %1111 = math.exp %1110 : vector<2x64xf32>
    %cst_161 = arith.constant 1.000000e+00 : f32
    %1112 = vector.broadcast %cst_161 : f32 to vector<2x64xf32>
    %1113 = arith.addf %1112, %1111 : vector<2x64xf32>
    %1114 = arith.divf %1112, %1113 : vector<2x64xf32>
    %1115 = math.tanh %1109 : vector<2x64xf32>
    %1116 = vector.extract_strided_slice %1114 {offsets = [0, 16], sizes = [2, 16], strides = [1, 1]} : vector<2x64xf32> to vector<2x16xf32>
    %1117 = arith.mulf %1116, %1080 : vector<2x16xf32>
    %1118 = vector.extract_strided_slice %1114 {offsets = [0, 0], sizes = [2, 16], strides = [1, 1]} : vector<2x64xf32> to vector<2x16xf32>
    %1119 = vector.extract_strided_slice %1115 {offsets = [0, 48], sizes = [2, 16], strides = [1, 1]} : vector<2x64xf32> to vector<2x16xf32>
    %1120 = arith.mulf %1118, %1119 : vector<2x16xf32>
    %1121 = arith.addf %1117, %1120 : vector<2x16xf32>
    %1122 = vector.extract_strided_slice %1114 {offsets = [0, 32], sizes = [2, 16], strides = [1, 1]} : vector<2x64xf32> to vector<2x16xf32>
    %1123 = math.tanh %1121 : vector<2x16xf32>
    %1124 = arith.mulf %1122, %1123 : vector<2x16xf32>
    %c8_162 = arith.constant 8 : index
    %c0_163 = arith.constant 0 : index
    %1125 = vector.load %arg5[%c8_162, %c0_163] : memref<16x16xf32, #tpu.memory_space<vmem>>, vector<2x16xf32>
    tpu.vector_store %arg5[%c8_162, %c0_163], %1124 {strides = array<i32>} : memref<16x16xf32, #tpu.memory_space<vmem>>, vector<2x16xf32>,
    %1126 = vector.extract_strided_slice %913 {offsets = [0, 5, 0], sizes = [2, 1, 64], strides = [1, 1, 1]} : vector<2x8x64xf32> to vector<2x1x64xf32>
    %1127 = vector.shape_cast %1126 : vector<2x1x64xf32> to vector<2x64xf32>
    %cst_164 = arith.constant dense<0.000000e+00> : vector<2x64xf32>
    %1128 = tpu.matmul %1103, %914, %cst_164 {dimension_numbers = #tpu.dot_dimension_numbers<[1], [0], [0], [1], [0, 0, 1, 1], [], []>} : vector<2x16xf32>, vector<16x64xf32>, vector<2x64xf32> -> vector<2x64xf32>
    %1129 = arith.addf %1127, %1128 : vector<2x64xf32>
    %1130 = arith.negf %1129 : vector<2x64xf32>
    %1131 = math.exp %1130 : vector<2x64xf32>
    %cst_165 = arith.constant 1.000000e+00 : f32
    %1132 = vector.broadcast %cst_165 : f32 to vector<2x64xf32>
    %1133 = arith.addf %1132, %1131 : vector<2x64xf32>
    %1134 = arith.divf %1132, %1133 : vector<2x64xf32>
    %1135 = math.tanh %1129 : vector<2x64xf32>
    %1136 = vector.extract_strided_slice %1134 {offsets = [0, 16], sizes = [2, 16], strides = [1, 1]} : vector<2x64xf32> to vector<2x16xf32>
    %1137 = arith.mulf %1136, %1100 : vector<2x16xf32>
    %1138 = vector.extract_strided_slice %1134 {offsets = [0, 0], sizes = [2, 16], strides = [1, 1]} : vector<2x64xf32> to vector<2x16xf32>
    %1139 = vector.extract_strided_slice %1135 {offsets = [0, 48], sizes = [2, 16], strides = [1, 1]} : vector<2x64xf32> to vector<2x16xf32>
    %1140 = arith.mulf %1138, %1139 : vector<2x16xf32>
    %1141 = arith.addf %1137, %1140 : vector<2x16xf32>
    %1142 = vector.extract_strided_slice %1134 {offsets = [0, 32], sizes = [2, 16], strides = [1, 1]} : vector<2x64xf32> to vector<2x16xf32>
    %1143 = math.tanh %1141 : vector<2x16xf32>
    %1144 = arith.mulf %1142, %1143 : vector<2x16xf32>
    %c0_166 = arith.constant 0 : index
    %c0_167 = arith.constant 0 : index
    %1145 = vector.load %arg4[%c0_166, %c0_167] : memref<2x32xf32, #tpu.memory_space<vmem>>, vector<2x16xf32>
    tpu.vector_store %arg4[%c0_166, %c0_167], %1144 {strides = array<i32>} : memref<2x32xf32, #tpu.memory_space<vmem>>, vector<2x16xf32>,
    %c0_168 = arith.constant 0 : index
    %c16_169 = arith.constant 16 : index
    %1146 = vector.load %arg4[%c0_168, %c16_169] : memref<2x32xf32, #tpu.memory_space<vmem>>, vector<2x16xf32>
    tpu.vector_store %arg4[%c0_168, %c16_169], %1124 {strides = array<i32>} : memref<2x32xf32, #tpu.memory_space<vmem>>, vector<2x16xf32>,
    %c0_170 = arith.constant 0 : index
    %c0_171 = arith.constant 0 : index
    %1147 = vector.load %arg4[%c0_170, %c0_171] : memref<2x32xf32, #tpu.memory_space<vmem>>, vector<2x32xf32>
    %cst_172 = arith.constant dense<0.000000e+00> : vector<2x64xf32>
    %1148 = tpu.matmul %1147, %915, %cst_172 {dimension_numbers = #tpu.dot_dimension_numbers<[1], [0], [0], [1], [0, 0, 1, 1], [], []>} : vector<2x32xf32>, vector<32x64xf32>, vector<2x64xf32> -> vector<2x64xf32>
    %1149 = vector.broadcast %916 : vector<1x64xf32> to vector<2x64xf32>
    %1150 = arith.addf %1149, %1148 : vector<2x64xf32>
    %1151 = arith.negf %1150 : vector<2x64xf32>
    %1152 = math.exp %1151 : vector<2x64xf32>
    %cst_173 = arith.constant 1.000000e+00 : f32
    %1153 = vector.broadcast %cst_173 : f32 to vector<2x64xf32>
    %1154 = arith.addf %1153, %1152 : vector<2x64xf32>
    %1155 = arith.divf %1153, %1154 : vector<2x64xf32>
    %1156 = math.tanh %1150 : vector<2x64xf32>
    %1157 = vector.extract_strided_slice %1155 {offsets = [0, 16], sizes = [2, 16], strides = [1, 1]} : vector<2x64xf32> to vector<2x16xf32>
    %1158 = arith.mulf %1157, %1121 : vector<2x16xf32>
    %1159 = vector.extract_strided_slice %1155 {offsets = [0, 0], sizes = [2, 16], strides = [1, 1]} : vector<2x64xf32> to vector<2x16xf32>
    %1160 = vector.extract_strided_slice %1156 {offsets = [0, 48], sizes = [2, 16], strides = [1, 1]} : vector<2x64xf32> to vector<2x16xf32>
    %1161 = arith.mulf %1159, %1160 : vector<2x16xf32>
    %1162 = arith.addf %1158, %1161 : vector<2x16xf32>
    %1163 = vector.extract_strided_slice %1155 {offsets = [0, 32], sizes = [2, 16], strides = [1, 1]} : vector<2x64xf32> to vector<2x16xf32>
    %1164 = math.tanh %1162 : vector<2x16xf32>
    %1165 = arith.mulf %1163, %1164 : vector<2x16xf32>
    %c10_174 = arith.constant 10 : index
    %c0_175 = arith.constant 0 : index
    %1166 = vector.load %arg5[%c10_174, %c0_175] : memref<16x16xf32, #tpu.memory_space<vmem>>, vector<2x16xf32>
    tpu.vector_store %arg5[%c10_174, %c0_175], %1165 {strides = array<i32>} : memref<16x16xf32, #tpu.memory_space<vmem>>, vector<2x16xf32>,
    %1167 = vector.extract_strided_slice %913 {offsets = [0, 6, 0], sizes = [2, 1, 64], strides = [1, 1, 1]} : vector<2x8x64xf32> to vector<2x1x64xf32>
    %1168 = vector.shape_cast %1167 : vector<2x1x64xf32> to vector<2x64xf32>
    %cst_176 = arith.constant dense<0.000000e+00> : vector<2x64xf32>
    %1169 = tpu.matmul %1144, %914, %cst_176 {dimension_numbers = #tpu.dot_dimension_numbers<[1], [0], [0], [1], [0, 0, 1, 1], [], []>} : vector<2x16xf32>, vector<16x64xf32>, vector<2x64xf32> -> vector<2x64xf32>
    %1170 = arith.addf %1168, %1169 : vector<2x64xf32>
    %1171 = arith.negf %1170 : vector<2x64xf32>
    %1172 = math.exp %1171 : vector<2x64xf32>
    %cst_177 = arith.constant 1.000000e+00 : f32
    %1173 = vector.broadcast %cst_177 : f32 to vector<2x64xf32>
    %1174 = arith.addf %1173, %1172 : vector<2x64xf32>
    %1175 = arith.divf %1173, %1174 : vector<2x64xf32>
    %1176 = math.tanh %1170 : vector<2x64xf32>
    %1177 = vector.extract_strided_slice %1175 {offsets = [0, 16], sizes = [2, 16], strides = [1, 1]} : vector<2x64xf32> to vector<2x16xf32>
    %1178 = arith.mulf %1177, %1141 : vector<2x16xf32>
    %1179 = vector.extract_strided_slice %1175 {offsets = [0, 0], sizes = [2, 16], strides = [1, 1]} : vector<2x64xf32> to vector<2x16xf32>
    %1180 = vector.extract_strided_slice %1176 {offsets = [0, 48], sizes = [2, 16], strides = [1, 1]} : vector<2x64xf32> to vector<2x16xf32>
    %1181 = arith.mulf %1179, %1180 : vector<2x16xf32>
    %1182 = arith.addf %1178, %1181 : vector<2x16xf32>
    %1183 = vector.extract_strided_slice %1175 {offsets = [0, 32], sizes = [2, 16], strides = [1, 1]} : vector<2x64xf32> to vector<2x16xf32>
    %1184 = math.tanh %1182 : vector<2x16xf32>
    %1185 = arith.mulf %1183, %1184 : vector<2x16xf32>
    %c0_178 = arith.constant 0 : index
    %c0_179 = arith.constant 0 : index
    %1186 = vector.load %arg4[%c0_178, %c0_179] : memref<2x32xf32, #tpu.memory_space<vmem>>, vector<2x16xf32>
    tpu.vector_store %arg4[%c0_178, %c0_179], %1185 {strides = array<i32>} : memref<2x32xf32, #tpu.memory_space<vmem>>, vector<2x16xf32>,
    %c0_180 = arith.constant 0 : index
    %c16_181 = arith.constant 16 : index
    %1187 = vector.load %arg4[%c0_180, %c16_181] : memref<2x32xf32, #tpu.memory_space<vmem>>, vector<2x16xf32>
    tpu.vector_store %arg4[%c0_180, %c16_181], %1165 {strides = array<i32>} : memref<2x32xf32, #tpu.memory_space<vmem>>, vector<2x16xf32>,
    %c0_182 = arith.constant 0 : index
    %c0_183 = arith.constant 0 : index
    %1188 = vector.load %arg4[%c0_182, %c0_183] : memref<2x32xf32, #tpu.memory_space<vmem>>, vector<2x32xf32>
    %cst_184 = arith.constant dense<0.000000e+00> : vector<2x64xf32>
    %1189 = tpu.matmul %1188, %915, %cst_184 {dimension_numbers = #tpu.dot_dimension_numbers<[1], [0], [0], [1], [0, 0, 1, 1], [], []>} : vector<2x32xf32>, vector<32x64xf32>, vector<2x64xf32> -> vector<2x64xf32>
    %1190 = vector.broadcast %916 : vector<1x64xf32> to vector<2x64xf32>
    %1191 = arith.addf %1190, %1189 : vector<2x64xf32>
    %1192 = arith.negf %1191 : vector<2x64xf32>
    %1193 = math.exp %1192 : vector<2x64xf32>
    %cst_185 = arith.constant 1.000000e+00 : f32
    %1194 = vector.broadcast %cst_185 : f32 to vector<2x64xf32>
    %1195 = arith.addf %1194, %1193 : vector<2x64xf32>
    %1196 = arith.divf %1194, %1195 : vector<2x64xf32>
    %1197 = math.tanh %1191 : vector<2x64xf32>
    %1198 = vector.extract_strided_slice %1196 {offsets = [0, 16], sizes = [2, 16], strides = [1, 1]} : vector<2x64xf32> to vector<2x16xf32>
    %1199 = arith.mulf %1198, %1162 : vector<2x16xf32>
    %1200 = vector.extract_strided_slice %1196 {offsets = [0, 0], sizes = [2, 16], strides = [1, 1]} : vector<2x64xf32> to vector<2x16xf32>
    %1201 = vector.extract_strided_slice %1197 {offsets = [0, 48], sizes = [2, 16], strides = [1, 1]} : vector<2x64xf32> to vector<2x16xf32>
    %1202 = arith.mulf %1200, %1201 : vector<2x16xf32>
    %1203 = arith.addf %1199, %1202 : vector<2x16xf32>
    %1204 = vector.extract_strided_slice %1196 {offsets = [0, 32], sizes = [2, 16], strides = [1, 1]} : vector<2x64xf32> to vector<2x16xf32>
    %1205 = math.tanh %1203 : vector<2x16xf32>
    %1206 = arith.mulf %1204, %1205 : vector<2x16xf32>
    %c12_186 = arith.constant 12 : index
    %c0_187 = arith.constant 0 : index
    %1207 = vector.load %arg5[%c12_186, %c0_187] : memref<16x16xf32, #tpu.memory_space<vmem>>, vector<2x16xf32>
    tpu.vector_store %arg5[%c12_186, %c0_187], %1206 {strides = array<i32>} : memref<16x16xf32, #tpu.memory_space<vmem>>, vector<2x16xf32>,
    %1208 = vector.extract_strided_slice %913 {offsets = [0, 7, 0], sizes = [2, 1, 64], strides = [1, 1, 1]} : vector<2x8x64xf32> to vector<2x1x64xf32>
    %1209 = vector.shape_cast %1208 : vector<2x1x64xf32> to vector<2x64xf32>
    %cst_188 = arith.constant dense<0.000000e+00> : vector<2x64xf32>
    %1210 = tpu.matmul %1185, %914, %cst_188 {dimension_numbers = #tpu.dot_dimension_numbers<[1], [0], [0], [1], [0, 0, 1, 1], [], []>} : vector<2x16xf32>, vector<16x64xf32>, vector<2x64xf32> -> vector<2x64xf32>
    %1211 = arith.addf %1209, %1210 : vector<2x64xf32>
    %1212 = arith.negf %1211 : vector<2x64xf32>
    %1213 = math.exp %1212 : vector<2x64xf32>
    %cst_189 = arith.constant 1.000000e+00 : f32
    %1214 = vector.broadcast %cst_189 : f32 to vector<2x64xf32>
    %1215 = arith.addf %1214, %1213 : vector<2x64xf32>
    %1216 = arith.divf %1214, %1215 : vector<2x64xf32>
    %1217 = math.tanh %1211 : vector<2x64xf32>
    %1218 = vector.extract_strided_slice %1216 {offsets = [0, 16], sizes = [2, 16], strides = [1, 1]} : vector<2x64xf32> to vector<2x16xf32>
    %1219 = arith.mulf %1218, %1182 : vector<2x16xf32>
    %1220 = vector.extract_strided_slice %1216 {offsets = [0, 0], sizes = [2, 16], strides = [1, 1]} : vector<2x64xf32> to vector<2x16xf32>
    %1221 = vector.extract_strided_slice %1217 {offsets = [0, 48], sizes = [2, 16], strides = [1, 1]} : vector<2x64xf32> to vector<2x16xf32>
    %1222 = arith.mulf %1220, %1221 : vector<2x16xf32>
    %1223 = arith.addf %1219, %1222 : vector<2x16xf32>
    %1224 = vector.extract_strided_slice %1216 {offsets = [0, 32], sizes = [2, 16], strides = [1, 1]} : vector<2x64xf32> to vector<2x16xf32>
    %1225 = math.tanh %1223 : vector<2x16xf32>
    %1226 = arith.mulf %1224, %1225 : vector<2x16xf32>
    %c0_190 = arith.constant 0 : index
    %c0_191 = arith.constant 0 : index
    %1227 = vector.load %arg4[%c0_190, %c0_191] : memref<2x32xf32, #tpu.memory_space<vmem>>, vector<2x16xf32>
    tpu.vector_store %arg4[%c0_190, %c0_191], %1226 {strides = array<i32>} : memref<2x32xf32, #tpu.memory_space<vmem>>, vector<2x16xf32>,
    %c0_192 = arith.constant 0 : index
    %c16_193 = arith.constant 16 : index
    %1228 = vector.load %arg4[%c0_192, %c16_193] : memref<2x32xf32, #tpu.memory_space<vmem>>, vector<2x16xf32>
    tpu.vector_store %arg4[%c0_192, %c16_193], %1206 {strides = array<i32>} : memref<2x32xf32, #tpu.memory_space<vmem>>, vector<2x16xf32>,
    %c0_194 = arith.constant 0 : index
    %c0_195 = arith.constant 0 : index
    %1229 = vector.load %arg4[%c0_194, %c0_195] : memref<2x32xf32, #tpu.memory_space<vmem>>, vector<2x32xf32>
    %cst_196 = arith.constant dense<0.000000e+00> : vector<2x64xf32>
    %1230 = tpu.matmul %1229, %915, %cst_196 {dimension_numbers = #tpu.dot_dimension_numbers<[1], [0], [0], [1], [0, 0, 1, 1], [], []>} : vector<2x32xf32>, vector<32x64xf32>, vector<2x64xf32> -> vector<2x64xf32>
    %1231 = vector.broadcast %916 : vector<1x64xf32> to vector<2x64xf32>
    %1232 = arith.addf %1231, %1230 : vector<2x64xf32>
    %1233 = arith.negf %1232 : vector<2x64xf32>
    %1234 = math.exp %1233 : vector<2x64xf32>
    %cst_197 = arith.constant 1.000000e+00 : f32
    %1235 = vector.broadcast %cst_197 : f32 to vector<2x64xf32>
    %1236 = arith.addf %1235, %1234 : vector<2x64xf32>
    %1237 = arith.divf %1235, %1236 : vector<2x64xf32>
    %1238 = math.tanh %1232 : vector<2x64xf32>
    %1239 = vector.extract_strided_slice %1237 {offsets = [0, 16], sizes = [2, 16], strides = [1, 1]} : vector<2x64xf32> to vector<2x16xf32>
    %1240 = arith.mulf %1239, %1203 : vector<2x16xf32>
    %1241 = vector.extract_strided_slice %1237 {offsets = [0, 0], sizes = [2, 16], strides = [1, 1]} : vector<2x64xf32> to vector<2x16xf32>
    %1242 = vector.extract_strided_slice %1238 {offsets = [0, 48], sizes = [2, 16], strides = [1, 1]} : vector<2x64xf32> to vector<2x16xf32>
    %1243 = arith.mulf %1241, %1242 : vector<2x16xf32>
    %1244 = arith.addf %1240, %1243 : vector<2x16xf32>
    %1245 = vector.extract_strided_slice %1237 {offsets = [0, 32], sizes = [2, 16], strides = [1, 1]} : vector<2x64xf32> to vector<2x16xf32>
    %1246 = math.tanh %1244 : vector<2x16xf32>
    %1247 = arith.mulf %1245, %1246 : vector<2x16xf32>
    %c14_198 = arith.constant 14 : index
    %c0_199 = arith.constant 0 : index
    %1248 = vector.load %arg5[%c14_198, %c0_199] : memref<16x16xf32, #tpu.memory_space<vmem>>, vector<2x16xf32>
    tpu.vector_store %arg5[%c14_198, %c0_199], %1247 {strides = array<i32>} : memref<16x16xf32, #tpu.memory_space<vmem>>, vector<2x16xf32>,
    %c576 = arith.constant 576 : index
    %c0_200 = arith.constant 0 : index
    %1249 = vector.load %arg2[%c576, %c0_200] : memref<600x128xf32, #tpu.memory_space<vmem>>, vector<16x128xf32>
    %c592 = arith.constant 592 : index
    %c0_201 = arith.constant 0 : index
    %1250 = vector.load %arg2[%c592, %c0_201] : memref<600x128xf32, #tpu.memory_space<vmem>>, vector<1x128xf32>
    %c0_202 = arith.constant 0 : index
    %c0_203 = arith.constant 0 : index
    %1251 = vector.load %arg5[%c0_202, %c0_203] : memref<16x16xf32, #tpu.memory_space<vmem>>, vector<16x16xf32>
    %cst_204 = arith.constant dense<0.000000e+00> : vector<16x128xf32>
    %1252 = tpu.matmul %1251, %1249, %cst_204 {dimension_numbers = #tpu.dot_dimension_numbers<[1], [0], [0], [1], [0, 0, 1, 1], [], []>} : vector<16x16xf32>, vector<16x128xf32>, vector<16x128xf32> -> vector<16x128xf32>
    %1253 = vector.broadcast %1250 : vector<1x128xf32> to vector<16x128xf32>
    %1254 = arith.addf %1252, %1253 : vector<16x128xf32>
    %c0_205 = arith.constant 0 : index
    %c0_206 = arith.constant 0 : index
    %1255 = vector.load %arg3[%c0_205, %c0_206] : memref<16x128xf32, #tpu.memory_space<vmem>>, vector<16x128xf32>
    tpu.vector_store %arg3[%c0_205, %c0_206], %1254 {strides = array<i32>} : memref<16x128xf32, #tpu.memory_space<vmem>>, vector<16x128xf32>,
    return
  }
}

</mosaic_0001>

<llo_original>
// kernel: net_forward.1
$region0: #{net_forward.1}
  #allocation0 [shape = 'u32[]', space=smem, size = 0x4, offset = 0x4, fixed_abs, tag = 'smem constant byte address 0x4 - core index']
  #allocation1 [shape = 'u32[144,128]{1,0:T(1,128)}', space=vmem, size = 0x12000, scoped, tag = 'internal scratch']
  #allocation2 [shape = 'f32[2,32]{1,0:T(2,128)}', space=vmem, size = 0x400, scoped, tag = 'scratch operand']
  #allocation3 [shape = 'f32[16,16]{1,0:T(8,128)}', space=vmem, size = 0x2000, scoped, tag = 'scratch operand']
  %s0 = inlined_call_operand.vmem [shape: f32[2,8,128], index: 0, kind: input, shape index: {}]
  %s1 = inlined_call_operand.vmem [shape: f32[188], index: 1, kind: input, shape index: {}]
  %s2 = inlined_call_operand.hbm [shape: f32[600,128], index: 2, kind: input, shape index: {}]
  %s3 = inlined_call_operand.vmem [shape: f32[16,128], index: 3, kind: output, shape index: {}]
  %s4 = sld [smem:[#allocation0]]
  $region30: #{net_forward.1} parent=0
    _
  %s6 = ssub.s32 1, %s4
  %s7 = scalar_select 0, %s6, %s4
  $region1: #{net_forward.1} parent=0
    #allocation4 [shape = 'u8[1024]{0}', space=smem, size = 0x400, scoped, tag = 'input window, operand 1, single buffered']
    #allocation5 [shape = 's32[1]{0}', space=sflag, size = 0x4, scoped, tag = 'scoped memory for net_forward.1']
    #allocation6 [shape = 's32[1]{0}', space=sflag, size = 0x4, scoped, tag = 'scoped memory for net_forward.1']
    #allocation7 [shape = 'u8[307200]{0}', space=vmem, size = 0x4b000, scoped, tag = 'input window, operand 2, single buffered']
    %8 = vsyncpa [#allocation6], 0
    %9 = vsyncpa [#allocation5], 0
    // Predicated region
    $region2: #{net_forward.1} parent=1 // pred_check
      _
    $region3: #{net_forward.1} parent=1 // pred_check_branch
      %11 = sbr.rel (0) target = $region5
    $region4: #{net_forward.1} parent=1 // pred_region
      _
    $region5: #{net_forward.1} parent=1 // pred_fallthru
      _
    // Predicated region
    $region6: #{net_forward.1} parent=1 // pred_check
      _
    $region7: #{net_forward.1} parent=1 // pred_check_branch
      %13 = sbr.rel (0) target = $region9
    $region8: #{net_forward.1} parent=1 // pred_region
      %s15 = ssub.s32 32, 32
      %16 = vsyncadd [#allocation6], %s15
      %s18 = sshll.u32 %s1, 4
      %s19 = int_to_ptr.vmem [resolvable:$true] %s18
      %21 = dma.vmem_to_smem %s19, 32, [#allocation4], [#allocation6]
    $region9: #{net_forward.1} parent=1 // pred_fallthru
      _
    // Predicated region
    $region10: #{net_forward.1} parent=1 // pred_check
      _
    $region11: #{net_forward.1} parent=1 // pred_check_branch
      %23 = sbr.rel (0) target = $region13
    $region12: #{net_forward.1} parent=1 // pred_region
      %s25 = ssub.s32 9600, 9600
      %26 = vsyncadd [#allocation5], %s25
      %s27 = sshll.u32 [#allocation7], 4
      %s28 = int_to_ptr.vmem [resolvable:$true] %s27
      %33 = dma.hbm_to_vmem [thread:$0]  %s2, 9600, %s28, [#allocation5], 128, 128, 8
    $region13: #{net_forward.1} parent=1 // pred_fallthru
      _
    // Predicated region
    $region14: #{net_forward.1} parent=1 // pred_check
      _
    $region15: #{net_forward.1} parent=1 // pred_check_branch
      %35 = sbr.rel (0) target = $region17
    $region16: #{net_forward.1} parent=1 // pred_region
      %36 = dma.done [#allocation6], 32
    $region17: #{net_forward.1} parent=1 // pred_fallthru
      _
    // Predicated region
    $region18: #{net_forward.1} parent=1 // pred_check
      _
    $region19: #{net_forward.1} parent=1 // pred_check_branch
      %38 = sbr.rel (0) target = $region21
    $region20: #{net_forward.1} parent=1 // pred_region
      %39 = dma.done [#allocation5], 9600
    $region21: #{net_forward.1} parent=1 // pred_fallthru
      _
    %40 = sfence
    %v41 = vld [vmem:[%s0] sm:$0xff]
    %v42 = vld [vmem:[%s0 + $0x8] sm:$0xff]
    %v43 = vlaneseq
    %v44 = vshrl.u32 %v43, 7
    %v45 = vlaneseq
    %v46 = vand.u32 %v45, 127
    %vm47 = vcmp.lt.s32.totalorder %v44, 7
    %vm48 = vcmp.ge.s32.totalorder %v44, 1
    %vm49 = vcmp.lt.s32.totalorder %v46, 96
    %v50 = vrot.slane %v41, 7
    %v51 = vrot.slane %v42, 7
    %v52 = vsel %vm48, %v50, 0.0
    %v53 = vsel %vm48, %v51, 0.0
    %54 = vrot.lane.b32.xlu0 %v52, 1
    %v55 = vpop.permute.xlu0 %54
    %56 = vrot.lane.b32.xlu0 %v53, 1
    %v57 = vpop.permute.xlu0 %56
    %s58 = sld [smem:[#allocation4]]
    %v59 = vstv %s58
    %v60 = vmul.f32 %v55, %v59
    %v61 = vmul.f32 %v57, %v59
    %v62 = vadd.f32 %v60, 0.0
    %v63 = vadd.f32 %v61, 0.0
    %s64 = sld [smem:[#allocation4 + $0x1]]
    %v65 = vstv %s64
    %v66 = vmul.f32 %v55, %v65
    %v67 = vmul.f32 %v57, %v65
    %v68 = vadd.f32 %v66, 0.0
    %v69 = vadd.f32 %v67, 0.0
    %s70 = sld [smem:[#allocation4 + $0x2]]
    %v71 = vstv %s70
    %v72 = vmul.f32 %v55, %v71
    %v73 = vmul.f32 %v57, %v71
    %v74 = vadd.f32 %v72, 0.0
    %v75 = vadd.f32 %v73, 0.0
    %s76 = sld [smem:[#allocation4 + $0x3]]
    %v77 = vstv %s76
    %v78 = vmul.f32 %v55, %v77
    %v79 = vmul.f32 %v57, %v77
    %v80 = vadd.f32 %v78, 0.0
    %v81 = vadd.f32 %v79, 0.0
    %s82 = sld [smem:[#allocation4 + $0x4]]
    %v83 = vstv %s82
    %v84 = vmul.f32 %v52, %v83
    %v85 = vmul.f32 %v53, %v83
    %v86 = vadd.f32 %v62, %v84
    %v87 = vadd.f32 %v63, %v85
    %s88 = sld [smem:[#allocation4 + $0x5]]
    %v89 = vstv %s88
    %v90 = vmul.f32 %v52, %v89
    %v91 = vmul.f32 %v53, %v89
    %v92 = vadd.f32 %v68, %v90
    %v93 = vadd.f32 %v69, %v91
    %s94 = sld [smem:[#allocation4 + $0x6]]
    %v95 = vstv %s94
    %v96 = vmul.f32 %v52, %v95
    %v97 = vmul.f32 %v53, %v95
    %v98 = vadd.f32 %v74, %v96
    %v99 = vadd.f32 %v75, %v97
    %s100 = sld [smem:[#allocation4 + $0x7]]
    %v101 = vstv %s100
    %v102 = vmul.f32 %v52, %v101
    %v103 = vmul.f32 %v53, %v101
    %v104 = vadd.f32 %v80, %v102
    %v105 = vadd.f32 %v81, %v103
    %106 = vrot.lane.b32.xlu0 %v52, 127
    %v107 = vpop.permute.xlu0 %106
    %108 = vrot.lane.b32.xlu0 %v53, 127
    %v109 = vpop.permute.xlu0 %108
    %s110 = sld [smem:[#allocation4 + $0x8]]
    %v111 = vstv %s110
    %v112 = vmul.f32 %v107, %v111
    %v113 = vmul.f32 %v109, %v111
    %v114 = vadd.f32 %v86, %v112
    %v115 = vadd.f32 %v87, %v113
    %s116 = sld [smem:[#allocation4 + $0x9]]
    %v117 = vstv %s116
    %v118 = vmul.f32 %v107, %v117
    %v119 = vmul.f32 %v109, %v117
    %v120 = vadd.f32 %v92, %v118
    %v121 = vadd.f32 %v93, %v119
    %s122 = sld [smem:[#allocation4 + $0xa]]
    %v123 = vstv %s122
    %v124 = vmul.f32 %v107, %v123
    %v125 = vmul.f32 %v109, %v123
    %v126 = vadd.f32 %v98, %v124
    %v127 = vadd.f32 %v99, %v125
    %s128 = sld [smem:[#allocation4 + $0xb]]
    %v129 = vstv %s128
    %v130 = vmul.f32 %v107, %v129
    %v131 = vmul.f32 %v109, %v129
    %v132 = vadd.f32 %v104, %v130
    %v133 = vadd.f32 %v105, %v131
    %134 = vrot.lane.b32.xlu0 %v41, 1
    %v135 = vpop.permute.xlu0 %134
    %136 = vrot.lane.b32.xlu0 %v42, 1
    %v137 = vpop.permute.xlu0 %136
    %s138 = sld [smem:[#allocation4 + $0xc]]
    %v139 = vstv %s138
    %v140 = vmul.f32 %v135, %v139
    %v141 = vmul.f32 %v137, %v139
    %v142 = vadd.f32 %v114, %v140
    %v143 = vadd.f32 %v115, %v141
    %s144 = sld [smem:[#allocation4 + $0xd]]
    %v145 = vstv %s144
    %v146 = vmul.f32 %v135, %v145
    %v147 = vmul.f32 %v137, %v145
    %v148 = vadd.f32 %v120, %v146
    %v149 = vadd.f32 %v121, %v147
    %s150 = sld [smem:[#allocation4 + $0xe]]
    %v151 = vstv %s150
    %v152 = vmul.f32 %v135, %v151
    %v153 = vmul.f32 %v137, %v151
    %v154 = vadd.f32 %v126, %v152
    %v155 = vadd.f32 %v127, %v153
    %s156 = sld [smem:[#allocation4 + $0xf]]
    %v157 = vstv %s156
    %v158 = vmul.f32 %v135, %v157
    %v159 = vmul.f32 %v137, %v157
    %v160 = vadd.f32 %v132, %v158
    %v161 = vadd.f32 %v133, %v159
    %s162 = sld [smem:[#allocation4 + $0x10]]
    %v163 = vstv %s162
    %v164 = vmul.f32 %v41, %v163
    %v165 = vmul.f32 %v42, %v163
    %v166 = vadd.f32 %v142, %v164
    %v167 = vadd.f32 %v143, %v165
    %s168 = sld [smem:[#allocation4 + $0x11]]
    %v169 = vstv %s168
    %v170 = vmul.f32 %v41, %v169
    %v171 = vmul.f32 %v42, %v169
    %v172 = vadd.f32 %v148, %v170
    %v173 = vadd.f32 %v149, %v171
    %s174 = sld [smem:[#allocation4 + $0x12]]
    %v175 = vstv %s174
    %v176 = vmul.f32 %v41, %v175
    %v177 = vmul.f32 %v42, %v175
    %v178 = vadd.f32 %v154, %v176
    %v179 = vadd.f32 %v155, %v177
    %s180 = sld [smem:[#allocation4 + $0x13]]
    %v181 = vstv %s180
    %v182 = vmul.f32 %v41, %v181
    %v183 = vmul.f32 %v42, %v181
    %v184 = vadd.f32 %v160, %v182
    %v185 = vadd.f32 %v161, %v183
    %186 = vrot.lane.b32.xlu0 %v41, 127
    %v187 = vpop.permute.xlu0 %186
    %188 = vrot.lane.b32.xlu0 %v42, 127
    %v189 = vpop.permute.xlu0 %188
    %s190 = sld [smem:[#allocation4 + $0x14]]
    %v191 = vstv %s190
    %v192 = vmul.f32 %v187, %v191
    %v193 = vmul.f32 %v189, %v191
    %v194 = vadd.f32 %v166, %v192
    %v195 = vadd.f32 %v167, %v193
    %s196 = sld [smem:[#allocation4 + $0x15]]
    %v197 = vstv %s196
    %v198 = vmul.f32 %v187, %v197
    %v199 = vmul.f32 %v189, %v197
    %v200 = vadd.f32 %v172, %v198
    %v201 = vadd.f32 %v173, %v199
    %s202 = sld [smem:[#allocation4 + $0x16]]
    %v203 = vstv %s202
    %v204 = vmul.f32 %v187, %v203
    %v205 = vmul.f32 %v189, %v203
    %v206 = vadd.f32 %v178, %v204
    %v207 = vadd.f32 %v179, %v205
    %s208 = sld [smem:[#allocation4 + $0x17]]
    %v209 = vstv %s208
    %v210 = vmul.f32 %v187, %v209
    %v211 = vmul.f32 %v189, %v209
    %v212 = vadd.f32 %v184, %v210
    %v213 = vadd.f32 %v185, %v211
    %v214 = vrot.slane %v41, 1
    %v215 = vrot.slane %v42, 1
    %v216 = vsel %vm47, %v214, 0.0
    %v217 = vsel %vm47, %v215, 0.0
    %218 = vrot.lane.b32.xlu0 %v216, 1
    %v219 = vpop.permute.xlu0 %218
    %220 = vrot.lane.b32.xlu0 %v217, 1
    %v221 = vpop.permute.xlu0 %220
    %s222 = sld [smem:[#allocation4 + $0x18]]
    %v223 = vstv %s222
    %v224 = vmul.f32 %v219, %v223
    %v225 = vmul.f32 %v221, %v223
    %v226 = vadd.f32 %v194, %v224
    %v227 = vadd.f32 %v195, %v225
    %s228 = sld [smem:[#allocation4 + $0x19]]
    %v229 = vstv %s228
    %v230 = vmul.f32 %v219, %v229
    %v231 = vmul.f32 %v221, %v229
    %v232 = vadd.f32 %v200, %v230
    %v233 = vadd.f32 %v201, %v231
    %s234 = sld [smem:[#allocation4 + $0x1a]]
    %v235 = vstv %s234
    %v236 = vmul.f32 %v219, %v235
    %v237 = vmul.f32 %v221, %v235
    %v238 = vadd.f32 %v206, %v236
    %v239 = vadd.f32 %v207, %v237
    %s240 = sld [smem:[#allocation4 + $0x1b]]
    %v241 = vstv %s240
    %v242 = vmul.f32 %v219, %v241
    %v243 = vmul.f32 %v221, %v241
    %v244 = vadd.f32 %v212, %v242
    %v245 = vadd.f32 %v213, %v243
    %s246 = sld [smem:[#allocation4 + $0x1c]]
    %v247 = vstv %s246
    %v248 = vmul.f32 %v216, %v247
    %v249 = vmul.f32 %v217, %v247
    %v250 = vadd.f32 %v226, %v248
    %v251 = vadd.f32 %v227, %v249
    %s252 = sld [smem:[#allocation4 + $0x1d]]
    %v253 = vstv %s252
    %v254 = vmul.f32 %v216, %v253
    %v255 = vmul.f32 %v217, %v253
    %v256 = vadd.f32 %v232, %v254
    %v257 = vadd.f32 %v233, %v255
    %s258 = sld [smem:[#allocation4 + $0x1e]]
    %v259 = vstv %s258
    %v260 = vmul.f32 %v216, %v259
    %v261 = vmul.f32 %v217, %v259
    %v262 = vadd.f32 %v238, %v260
    %v263 = vadd.f32 %v239, %v261
    %s264 = sld [smem:[#allocation4 + $0x1f]]
    %v265 = vstv %s264
    %v266 = vmul.f32 %v216, %v265
    %v267 = vmul.f32 %v217, %v265
    %v268 = vadd.f32 %v244, %v266
    %v269 = vadd.f32 %v245, %v267
    %270 = vrot.lane.b32.xlu0 %v216, 127
    %v271 = vpop.permute.xlu0 %270
    %272 = vrot.lane.b32.xlu0 %v217, 127
    %v273 = vpop.permute.xlu0 %272
    %s274 = sld [smem:[#allocation4 + $0x20]]
    %v275 = vstv %s274
    %v276 = vmul.f32 %v271, %v275
    %v277 = vmul.f32 %v273, %v275
    %v278 = vadd.f32 %v250, %v276
    %v279 = vadd.f32 %v251, %v277
    %s280 = sld [smem:[#allocation4 + $0x21]]
    %v281 = vstv %s280
    %v282 = vmul.f32 %v271, %v281
    %v283 = vmul.f32 %v273, %v281
    %v284 = vadd.f32 %v256, %v282
    %v285 = vadd.f32 %v257, %v283
    %s286 = sld [smem:[#allocation4 + $0x22]]
    %v287 = vstv %s286
    %v288 = vmul.f32 %v271, %v287
    %v289 = vmul.f32 %v273, %v287
    %v290 = vadd.f32 %v262, %v288
    %v291 = vadd.f32 %v263, %v289
    %s292 = sld [smem:[#allocation4 + $0x23]]
    %v293 = vstv %s292
    %v294 = vmul.f32 %v271, %v293
    %v295 = vmul.f32 %v273, %v293
    %v296 = vadd.f32 %v268, %v294
    %v297 = vadd.f32 %v269, %v295
    %s298 = sld [smem:[#allocation4 + $0x24]]
    %v299 = vstv %s298
    %v300 = vadd.f32 %v278, %v299
    %v301 = vadd.f32 %v279, %v299
    %vm302 = vcmp.gt.f32.partialorder %v300, 0.0
    %vm303 = vcmp.gt.f32.partialorder %v301, 0.0
    %v304 = vmul.f32 %v300, 1.442695
    %v305 = vpow.pop %v304
    %v306 = vmul.f32 %v301, 1.442695
    %v307 = vpow.pop %v306
    %v308 = vsub.f32 %v305, 1.0
    %v309 = vsub.f32 %v307, 1.0
    %v310 = vsel %vm302, %v300, %v308
    %v311 = vsel %vm303, %v301, %v309
    %312 = vrot.lane.b32.xlu0 %v310, 127
    %v313 = vpop.permute.xlu0 %312
    %314 = vrot.lane.b32.xlu0 %v311, 127
    %v315 = vpop.permute.xlu0 %314
    %v316 = vmax.f32 %v310, %v313
    %v317 = vmax.f32 %v311, %v315
    %v318 = vsel %vm49, %v316, 0.0
    %v319 = vsel %vm49, %v317, 0.0
    %s320 = sld [smem:[#allocation4 + $0x25]]
    %v321 = vstv %s320
    %v322 = vadd.f32 %v284, %v321
    %v323 = vadd.f32 %v285, %v321
    %vm324 = vcmp.gt.f32.partialorder %v322, 0.0
    %vm325 = vcmp.gt.f32.partialorder %v323, 0.0
    %v326 = vmul.f32 %v322, 1.442695
    %v327 = vpow.pop %v326
    %v328 = vmul.f32 %v323, 1.442695
    %v329 = vpow.pop %v328
    %v330 = vsub.f32 %v327, 1.0
    %v331 = vsub.f32 %v329, 1.0
    %v332 = vsel %vm324, %v322, %v330
    %v333 = vsel %vm325, %v323, %v331
    %334 = vrot.lane.b32.xlu0 %v332, 127
    %v335 = vpop.permute.xlu0 %334
    %336 = vrot.lane.b32.xlu0 %v333, 127
    %v337 = vpop.permute.xlu0 %336
    %v338 = vmax.f32 %v332, %v335
    %v339 = vmax.f32 %v333, %v337
    %v340 = vsel %vm49, %v338, 0.0
    %v341 = vsel %vm49, %v339, 0.0
    %s342 = sld [smem:[#allocation4 + $0x26]]
    %v343 = vstv %s342
    %v344 = vadd.f32 %v290, %v343
    %v345 = vadd.f32 %v291, %v343
    %vm346 = vcmp.gt.f32.partialorder %v344, 0.0
    %vm347 = vcmp.gt.f32.partialorder %v345, 0.0
    %v348 = vmul.f32 %v344, 1.442695
    %v349 = vpow.pop %v348
    %v350 = vmul.f32 %v345, 1.442695
    %v351 = vpow.pop %v350
    %v352 = vsub.f32 %v349, 1.0
    %v353 = vsub.f32 %v351, 1.0
    %v354 = vsel %vm346, %v344, %v352
    %v355 = vsel %vm347, %v345, %v353
    %356 = vrot.lane.b32.xlu0 %v354, 127
    %v357 = vpop.permute.xlu0 %356
    %358 = vrot.lane.b32.xlu0 %v355, 127
    %v359 = vpop.permute.xlu0 %358
    %v360 = vmax.f32 %v354, %v357
    %v361 = vmax.f32 %v355, %v359
    %v362 = vsel %vm49, %v360, 0.0
    %v363 = vsel %vm49, %v361, 0.0
    %s364 = sld [smem:[#allocation4 + $0x27]]
    %v365 = vstv %s364
    %v366 = vadd.f32 %v296, %v365
    %v367 = vadd.f32 %v297, %v365
    %vm368 = vcmp.gt.f32.partialorder %v366, 0.0
    %vm369 = vcmp.gt.f32.partialorder %v367, 0.0
    %v370 = vmul.f32 %v366, 1.442695
    %v371 = vpow.pop %v370
    %v372 = vmul.f32 %v367, 1.442695
    %v373 = vpow.pop %v372
    %v374 = vsub.f32 %v371, 1.0
    %v375 = vsub.f32 %v373, 1.0
    %v376 = vsel %vm368, %v366, %v374
    %v377 = vsel %vm369, %v367, %v375
    %378 = vrot.lane.b32.xlu0 %v376, 127
    %v379 = vpop.permute.xlu0 %378
    %380 = vrot.lane.b32.xlu0 %v377, 127
    %v381 = vpop.permute.xlu0 %380
    %v382 = vmax.f32 %v376, %v379
    %v383 = vmax.f32 %v377, %v381
    %v384 = vsel %vm49, %v382, 0.0
    %v385 = vsel %vm49, %v383, 0.0
    %v386 = vrot.slane %v318, 7
    %v387 = vrot.slane %v319, 7
    %v388 = vsel %vm48, %v386, 0.0
    %v389 = vsel %vm48, %v387, 0.0
    %390 = vrot.lane.b32.xlu0 %v388, 2
    %v391 = vpop.permute.xlu0 %390
    %392 = vrot.lane.b32.xlu0 %v389, 2
    %v393 = vpop.permute.xlu0 %392
    %s394 = sld [smem:[#allocation4 + $0x28]]
    %v395 = vstv %s394
    %v396 = vmul.f32 %v391, %v395
    %v397 = vmul.f32 %v393, %v395
    %v398 = vadd.f32 %v396, 0.0
    %v399 = vadd.f32 %v397, 0.0
    %s400 = sld [smem:[#allocation4 + $0x29]]
    %v401 = vstv %s400
    %v402 = vmul.f32 %v391, %v401
    %v403 = vmul.f32 %v393, %v401
    %v404 = vadd.f32 %v402, 0.0
    %v405 = vadd.f32 %v403, 0.0
    %s406 = sld [smem:[#allocation4 + $0x2a]]
    %v407 = vstv %s406
    %v408 = vmul.f32 %v391, %v407
    %v409 = vmul.f32 %v393, %v407
    %v410 = vadd.f32 %v408, 0.0
    %v411 = vadd.f32 %v409, 0.0
    %s412 = sld [smem:[#allocation4 + $0x2b]]
    %v413 = vstv %s412
    %v414 = vmul.f32 %v391, %v413
    %v415 = vmul.f32 %v393, %v413
    %v416 = vadd.f32 %v414, 0.0
    %v417 = vadd.f32 %v415, 0.0
    %s418 = sld [smem:[#allocation4 + $0x38]]
    %v419 = vstv %s418
    %v420 = vmul.f32 %v388, %v419
    %v421 = vmul.f32 %v389, %v419
    %v422 = vadd.f32 %v398, %v420
    %v423 = vadd.f32 %v399, %v421
    %s424 = sld [smem:[#allocation4 + $0x39]]
    %v425 = vstv %s424
    %v426 = vmul.f32 %v388, %v425
    %v427 = vmul.f32 %v389, %v425
    %v428 = vadd.f32 %v404, %v426
    %v429 = vadd.f32 %v405, %v427
    %s430 = sld [smem:[#allocation4 + $0x3a]]
    %v431 = vstv %s430
    %v432 = vmul.f32 %v388, %v431
    %v433 = vmul.f32 %v389, %v431
    %v434 = vadd.f32 %v410, %v432
    %v435 = vadd.f32 %v411, %v433
    %s436 = sld [smem:[#allocation4 + $0x3b]]
    %v437 = vstv %s436
    %v438 = vmul.f32 %v388, %v437
    %v439 = vmul.f32 %v389, %v437
    %v440 = vadd.f32 %v416, %v438
    %v441 = vadd.f32 %v417, %v439
    %442 = vrot.lane.b32.xlu0 %v388, 126
    %v443 = vpop.permute.xlu0 %442
    %444 = vrot.lane.b32.xlu0 %v389, 126
    %v445 = vpop.permute.xlu0 %444
    %s446 = sld [smem:[#allocation4 + $0x48]]
    %v447 = vstv %s446
    %v448 = vmul.f32 %v443, %v447
    %v449 = vmul.f32 %v445, %v447
    %v450 = vadd.f32 %v422, %v448
    %v451 = vadd.f32 %v423, %v449
    %s452 = sld [smem:[#allocation4 + $0x49]]
    %v453 = vstv %s452
    %v454 = vmul.f32 %v443, %v453
    %v455 = vmul.f32 %v445, %v453
    %v456 = vadd.f32 %v428, %v454
    %v457 = vadd.f32 %v429, %v455
    %s458 = sld [smem:[#allocation4 + $0x4a]]
    %v459 = vstv %s458
    %v460 = vmul.f32 %v443, %v459
    %v461 = vmul.f32 %v445, %v459
    %v462 = vadd.f32 %v434, %v460
    %v463 = vadd.f32 %v435, %v461
    %s464 = sld [smem:[#allocation4 + $0x4b]]
    %v465 = vstv %s464
    %v466 = vmul.f32 %v443, %v465
    %v467 = vmul.f32 %v445, %v465
    %v468 = vadd.f32 %v440, %v466
    %v469 = vadd.f32 %v441, %v467
    %470 = vrot.lane.b32.xlu0 %v318, 2
    %v471 = vpop.permute.xlu0 %470
    %472 = vrot.lane.b32.xlu0 %v319, 2
    %v473 = vpop.permute.xlu0 %472
    %s474 = sld [smem:[#allocation4 + $0x58]]
    %v475 = vstv %s474
    %v476 = vmul.f32 %v471, %v475
    %v477 = vmul.f32 %v473, %v475
    %v478 = vadd.f32 %v450, %v476
    %v479 = vadd.f32 %v451, %v477
    %s480 = sld [smem:[#allocation4 + $0x59]]
    %v481 = vstv %s480
    %v482 = vmul.f32 %v471, %v481
    %v483 = vmul.f32 %v473, %v481
    %v484 = vadd.f32 %v456, %v482
    %v485 = vadd.f32 %v457, %v483
    %s486 = sld [smem:[#allocation4 + $0x5a]]
    %v487 = vstv %s486
    %v488 = vmul.f32 %v471, %v487
    %v489 = vmul.f32 %v473, %v487
    %v490 = vadd.f32 %v462, %v488
    %v491 = vadd.f32 %v463, %v489
    %s492 = sld [smem:[#allocation4 + $0x5b]]
    %v493 = vstv %s492
    %v494 = vmul.f32 %v471, %v493
    %v495 = vmul.f32 %v473, %v493
    %v496 = vadd.f32 %v468, %v494
    %v497 = vadd.f32 %v469, %v495
    %s498 = sld [smem:[#allocation4 + $0x68]]
    %v499 = vstv %s498
    %v500 = vmul.f32 %v318, %v499
    %v501 = vmul.f32 %v319, %v499
    %v502 = vadd.f32 %v478, %v500
    %v503 = vadd.f32 %v479, %v501
    %s504 = sld [smem:[#allocation4 + $0x69]]
    %v505 = vstv %s504
    %v506 = vmul.f32 %v318, %v505
    %v507 = vmul.f32 %v319, %v505
    %v508 = vadd.f32 %v484, %v506
    %v509 = vadd.f32 %v485, %v507
    %s510 = sld [smem:[#allocation4 + $0x6a]]
    %v511 = vstv %s510
    %v512 = vmul.f32 %v318, %v511
    %v513 = vmul.f32 %v319, %v511
    %v514 = vadd.f32 %v490, %v512
    %v515 = vadd.f32 %v491, %v513
    %s516 = sld [smem:[#allocation4 + $0x6b]]
    %v517 = vstv %s516
    %v518 = vmul.f32 %v318, %v517
    %v519 = vmul.f32 %v319, %v517
    %v520 = vadd.f32 %v496, %v518
    %v521 = vadd.f32 %v497, %v519
    %522 = vrot.lane.b32.xlu0 %v318, 126
    %v523 = vpop.permute.xlu0 %522
    %524 = vrot.lane.b32.xlu0 %v319, 126
    %v525 = vpop.permute.xlu0 %524
    %s526 = sld [smem:[#allocation4 + $0x78]]
    %v527 = vstv %s526
    %v528 = vmul.f32 %v523, %v527
    %v529 = vmul.f32 %v525, %v527
    %v530 = vadd.f32 %v502, %v528
    %v531 = vadd.f32 %v503, %v529
    %s532 = sld [smem:[#allocation4 + $0x79]]
    %v533 = vstv %s532
    %v534 = vmul.f32 %v523, %v533
    %v535 = vmul.f32 %v525, %v533
    %v536 = vadd.f32 %v508, %v534
    %v537 = vadd.f32 %v509, %v535
    %s538 = sld [smem:[#allocation4 + $0x7a]]
    %v539 = vstv %s538
    %v540 = vmul.f32 %v523, %v539
    %v541 = vmul.f32 %v525, %v539
    %v542 = vadd.f32 %v514, %v540
    %v543 = vadd.f32 %v515, %v541
    %s544 = sld [smem:[#allocation4 + $0x7b]]
    %v545 = vstv %s544
    %v546 = vmul.f32 %v523, %v545
    %v547 = vmul.f32 %v525, %v545
    %v548 = vadd.f32 %v520, %v546
    %v549 = vadd.f32 %v521, %v547
    %v550 = vrot.slane %v318, 1
    %v551 = vrot.slane %v319, 1
    %v552 = vsel %vm47, %v550, 0.0
    %v553 = vsel %vm47, %v551, 0.0
    %554 = vrot.lane.b32.xlu0 %v552, 2
    %v555 = vpop.permute.xlu0 %554
    %556 = vrot.lane.b32.xlu0 %v553, 2
    %v557 = vpop.permute.xlu0 %556
    %s558 = sld [smem:[#allocation4 + $0x88]]
    %v559 = vstv %s558
    %v560 = vmul.f32 %v555, %v559
    %v561 = vmul.f32 %v557, %v559
    %v562 = vadd.f32 %v530, %v560
    %v563 = vadd.f32 %v531, %v561
    %s564 = sld [smem:[#allocation4 + $0x89]]
    %v565 = vstv %s564
    %v566 = vmul.f32 %v555, %v565
    %v567 = vmul.f32 %v557, %v565
    %v568 = vadd.f32 %v536, %v566
    %v569 = vadd.f32 %v537, %v567
    %s570 = sld [smem:[#allocation4 + $0x8a]]
    %v571 = vstv %s570
    %v572 = vmul.f32 %v555, %v571
    %v573 = vmul.f32 %v557, %v571
    %v574 = vadd.f32 %v542, %v572
    %v575 = vadd.f32 %v543, %v573
    %s576 = sld [smem:[#allocation4 + $0x8b]]
    %v577 = vstv %s576
    %v578 = vmul.f32 %v555, %v577
    %v579 = vmul.f32 %v557, %v577
    %v580 = vadd.f32 %v548, %v578
    %v581 = vadd.f32 %v549, %v579
    %s582 = sld [smem:[#allocation4 + $0x98]]
    %v583 = vstv %s582
    %v584 = vmul.f32 %v552, %v583
    %v585 = vmul.f32 %v553, %v583
    %v586 = vadd.f32 %v562, %v584
    %v587 = vadd.f32 %v563, %v585
    %s588 = sld [smem:[#allocation4 + $0x99]]
    %v589 = vstv %s588
    %v590 = vmul.f32 %v552, %v589
    %v591 = vmul.f32 %v553, %v589
    %v592 = vadd.f32 %v568, %v590
    %v593 = vadd.f32 %v569, %v591
    %s594 = sld [smem:[#allocation4 + $0x9a]]
    %v595 = vstv %s594
    %v596 = vmul.f32 %v552, %v595
    %v597 = vmul.f32 %v553, %v595
    %v598 = vadd.f32 %v574, %v596
    %v599 = vadd.f32 %v575, %v597
    %s600 = sld [smem:[#allocation4 + $0x9b]]
    %v601 = vstv %s600
    %v602 = vmul.f32 %v552, %v601
    %v603 = vmul.f32 %v553, %v601
    %v604 = vadd.f32 %v580, %v602
    %v605 = vadd.f32 %v581, %v603
    %606 = vrot.lane.b32.xlu0 %v552, 126
    %v607 = vpop.permute.xlu0 %606
    %608 = vrot.lane.b32.xlu0 %v553, 126
    %v609 = vpop.permute.xlu0 %608
    %s610 = sld [smem:[#allocation4 + $0xa8]]
    %v611 = vstv %s610
    %v612 = vmul.f32 %v607, %v611
    %v613 = vmul.f32 %v609, %v611
    %v614 = vadd.f32 %v586, %v612
    %v615 = vadd.f32 %v587, %v613
    %s616 = sld [smem:[#allocation4 + $0xa9]]
    %v617 = vstv %s616
    %v618 = vmul.f32 %v607, %v617
    %v619 = vmul.f32 %v609, %v617
    %v620 = vadd.f32 %v592, %v618
    %v621 = vadd.f32 %v593, %v619
    %s622 = sld [smem:[#allocation4 + $0xaa]]
    %v623 = vstv %s622
    %v624 = vmul.f32 %v607, %v623
    %v625 = vmul.f32 %v609, %v623
    %v626 = vadd.f32 %v598, %v624
    %v627 = vadd.f32 %v599, %v625
    %s628 = sld [smem:[#allocation4 + $0xab]]
    %v629 = vstv %s628
    %v630 = vmul.f32 %v607, %v629
    %v631 = vmul.f32 %v609, %v629
    %v632 = vadd.f32 %v604, %v630
    %v633 = vadd.f32 %v605, %v631
    %v634 = vrot.slane %v340, 7
    %v635 = vrot.slane %v341, 7
    %v636 = vsel %vm48, %v634, 0.0
    %v637 = vsel %vm48, %v635, 0.0
    %638 = vrot.lane.b32.xlu0 %v636, 2
    %v639 = vpop.permute.xlu0 %638
    %640 = vrot.lane.b32.xlu0 %v637, 2
    %v641 = vpop.permute.xlu0 %640
    %s642 = sld [smem:[#allocation4 + $0x2c]]
    %v643 = vstv %s642
    %v644 = vmul.f32 %v639, %v643
    %v645 = vmul.f32 %v641, %v643
    %v646 = vadd.f32 %v614, %v644
    %v647 = vadd.f32 %v615, %v645
    %s648 = sld [smem:[#allocation4 + $0x2d]]
    %v649 = vstv %s648
    %v650 = vmul.f32 %v639, %v649
    %v651 = vmul.f32 %v641, %v649
    %v652 = vadd.f32 %v620, %v650
    %v653 = vadd.f32 %v621, %v651
    %s654 = sld [smem:[#allocation4 + $0x2e]]
    %v655 = vstv %s654
    %v656 = vmul.f32 %v639, %v655
    %v657 = vmul.f32 %v641, %v655
    %v658 = vadd.f32 %v626, %v656
    %v659 = vadd.f32 %v627, %v657
    %s660 = sld [smem:[#allocation4 + $0x2f]]
    %v661 = vstv %s660
    %v662 = vmul.f32 %v639, %v661
    %v663 = vmul.f32 %v641, %v661
    %v664 = vadd.f32 %v632, %v662
    %v665 = vadd.f32 %v633, %v663
    %s666 = sld [smem:[#allocation4 + $0x3c]]
    %v667 = vstv %s666
    %v668 = vmul.f32 %v636, %v667
    %v669 = vmul.f32 %v637, %v667
    %v670 = vadd.f32 %v646, %v668
    %v671 = vadd.f32 %v647, %v669
    %s672 = sld [smem:[#allocation4 + $0x3d]]
    %v673 = vstv %s672
    %v674 = vmul.f32 %v636, %v673
    %v675 = vmul.f32 %v637, %v673
    %v676 = vadd.f32 %v652, %v674
    %v677 = vadd.f32 %v653, %v675
    %s678 = sld [smem:[#allocation4 + $0x3e]]
    %v679 = vstv %s678
    %v680 = vmul.f32 %v636, %v679
    %v681 = vmul.f32 %v637, %v679
    %v682 = vadd.f32 %v658, %v680
    %v683 = vadd.f32 %v659, %v681
    %s684 = sld [smem:[#allocation4 + $0x3f]]
    %v685 = vstv %s684
    %v686 = vmul.f32 %v636, %v685
    %v687 = vmul.f32 %v637, %v685
    %v688 = vadd.f32 %v664, %v686
    %v689 = vadd.f32 %v665, %v687
    %690 = vrot.lane.b32.xlu0 %v636, 126
    %v691 = vpop.permute.xlu0 %690
    %692 = vrot.lane.b32.xlu0 %v637, 126
    %v693 = vpop.permute.xlu0 %692
    %s694 = sld [smem:[#allocation4 + $0x4c]]
    %v695 = vstv %s694
    %v696 = vmul.f32 %v691, %v695
    %v697 = vmul.f32 %v693, %v695
    %v698 = vadd.f32 %v670, %v696
    %v699 = vadd.f32 %v671, %v697
    %s700 = sld [smem:[#allocation4 + $0x4d]]
    %v701 = vstv %s700
    %v702 = vmul.f32 %v691, %v701
    %v703 = vmul.f32 %v693, %v701
    %v704 = vadd.f32 %v676, %v702
    %v705 = vadd.f32 %v677, %v703
    %s706 = sld [smem:[#allocation4 + $0x4e]]
    %v707 = vstv %s706
    %v708 = vmul.f32 %v691, %v707
    %v709 = vmul.f32 %v693, %v707
    %v710 = vadd.f32 %v682, %v708
    %v711 = vadd.f32 %v683, %v709
    %s712 = sld [smem:[#allocation4 + $0x4f]]
    %v713 = vstv %s712
    %v714 = vmul.f32 %v691, %v713
    %v715 = vmul.f32 %v693, %v713
    %v716 = vadd.f32 %v688, %v714
    %v717 = vadd.f32 %v689, %v715
    %718 = vrot.lane.b32.xlu0 %v340, 2
    %v719 = vpop.permute.xlu0 %718
    %720 = vrot.lane.b32.xlu0 %v341, 2
    %v721 = vpop.permute.xlu0 %720
    %s722 = sld [smem:[#allocation4 + $0x5c]]
    %v723 = vstv %s722
    %v724 = vmul.f32 %v719, %v723
    %v725 = vmul.f32 %v721, %v723
    %v726 = vadd.f32 %v698, %v724
    %v727 = vadd.f32 %v699, %v725
    %s728 = sld [smem:[#allocation4 + $0x5d]]
    %v729 = vstv %s728
    %v730 = vmul.f32 %v719, %v729
    %v731 = vmul.f32 %v721, %v729
    %v732 = vadd.f32 %v704, %v730
    %v733 = vadd.f32 %v705, %v731
    %s734 = sld [smem:[#allocation4 + $0x5e]]
    %v735 = vstv %s734
    %v736 = vmul.f32 %v719, %v735
    %v737 = vmul.f32 %v721, %v735
    %v738 = vadd.f32 %v710, %v736
    %v739 = vadd.f32 %v711, %v737
    %s740 = sld [smem:[#allocation4 + $0x5f]]
    %v741 = vstv %s740
    %v742 = vmul.f32 %v719, %v741
    %v743 = vmul.f32 %v721, %v741
    %v744 = vadd.f32 %v716, %v742
    %v745 = vadd.f32 %v717, %v743
    %s746 = sld [smem:[#allocation4 + $0x6c]]
    %v747 = vstv %s746
    %v748 = vmul.f32 %v340, %v747
    %v749 = vmul.f32 %v341, %v747
    %v750 = vadd.f32 %v726, %v748
    %v751 = vadd.f32 %v727, %v749
    %s752 = sld [smem:[#allocation4 + $0x6d]]
    %v753 = vstv %s752
    %v754 = vmul.f32 %v340, %v753
    %v755 = vmul.f32 %v341, %v753
    %v756 = vadd.f32 %v732, %v754
    %v757 = vadd.f32 %v733, %v755
    %s758 = sld [smem:[#allocation4 + $0x6e]]
    %v759 = vstv %s758
    %v760 = vmul.f32 %v340, %v759
    %v761 = vmul.f32 %v341, %v759
    %v762 = vadd.f32 %v738, %v760
    %v763 = vadd.f32 %v739, %v761
    %s764 = sld [smem:[#allocation4 + $0x6f]]
    %v765 = vstv %s764
    %v766 = vmul.f32 %v340, %v765
    %v767 = vmul.f32 %v341, %v765
    %v768 = vadd.f32 %v744, %v766
    %v769 = vadd.f32 %v745, %v767
    %770 = vrot.lane.b32.xlu0 %v340, 126
    %v771 = vpop.permute.xlu0 %770
    %772 = vrot.lane.b32.xlu0 %v341, 126
    %v773 = vpop.permute.xlu0 %772
    %s774 = sld [smem:[#allocation4 + $0x7c]]
    %v775 = vstv %s774
    %v776 = vmul.f32 %v771, %v775
    %v777 = vmul.f32 %v773, %v775
    %v778 = vadd.f32 %v750, %v776
    %v779 = vadd.f32 %v751, %v777
    %s780 = sld [smem:[#allocation4 + $0x7d]]
    %v781 = vstv %s780
    %v782 = vmul.f32 %v771, %v781
    %v783 = vmul.f32 %v773, %v781
    %v784 = vadd.f32 %v756, %v782
    %v785 = vadd.f32 %v757, %v783
    %s786 = sld [smem:[#allocation4 + $0x7e]]
    %v787 = vstv %s786
    %v788 = vmul.f32 %v771, %v787
    %v789 = vmul.f32 %v773, %v787
    %v790 = vadd.f32 %v762, %v788
    %v791 = vadd.f32 %v763, %v789
    %s792 = sld [smem:[#allocation4 + $0x7f]]
    %v793 = vstv %s792
    %v794 = vmul.f32 %v771, %v793
    %v795 = vmul.f32 %v773, %v793
    %v796 = vadd.f32 %v768, %v794
    %v797 = vadd.f32 %v769, %v795
    %v798 = vrot.slane %v340, 1
    %v799 = vrot.slane %v341, 1
    %v800 = vsel %vm47, %v798, 0.0
    %v801 = vsel %vm47, %v799, 0.0
    %802 = vrot.lane.b32.xlu0 %v800, 2
    %v803 = vpop.permute.xlu0 %802
    %804 = vrot.lane.b32.xlu0 %v801, 2
    %v805 = vpop.permute.xlu0 %804
    %s806 = sld [smem:[#allocation4 + $0x8c]]
    %v807 = vstv %s806
    %v808 = vmul.f32 %v803, %v807
    %v809 = vmul.f32 %v805, %v807
    %v810 = vadd.f32 %v778, %v808
    %v811 = vadd.f32 %v779, %v809
    %s812 = sld [smem:[#allocation4 + $0x8d]]
    %v813 = vstv %s812
    %v814 = vmul.f32 %v803, %v813
    %v815 = vmul.f32 %v805, %v813
    %v816 = vadd.f32 %v784, %v814
    %v817 = vadd.f32 %v785, %v815
    %s818 = sld [smem:[#allocation4 + $0x8e]]
    %v819 = vstv %s818
    %v820 = vmul.f32 %v803, %v819
    %v821 = vmul.f32 %v805, %v819
    %v822 = vadd.f32 %v790, %v820
    %v823 = vadd.f32 %v791, %v821
    %s824 = sld [smem:[#allocation4 + $0x8f]]
    %v825 = vstv %s824
    %v826 = vmul.f32 %v803, %v825
    %v827 = vmul.f32 %v805, %v825
    %v828 = vadd.f32 %v796, %v826
    %v829 = vadd.f32 %v797, %v827
    %s830 = sld [smem:[#allocation4 + $0x9c]]
    %v831 = vstv %s830
    %v832 = vmul.f32 %v800, %v831
    %v833 = vmul.f32 %v801, %v831
    %v834 = vadd.f32 %v810, %v832
    %v835 = vadd.f32 %v811, %v833
    %s836 = sld [smem:[#allocation4 + $0x9d]]
    %v837 = vstv %s836
    %v838 = vmul.f32 %v800, %v837
    %v839 = vmul.f32 %v801, %v837
    %v840 = vadd.f32 %v816, %v838
    %v841 = vadd.f32 %v817, %v839
    %s842 = sld [smem:[#allocation4 + $0x9e]]
    %v843 = vstv %s842
    %v844 = vmul.f32 %v800, %v843
    %v845 = vmul.f32 %v801, %v843
    %v846 = vadd.f32 %v822, %v844
    %v847 = vadd.f32 %v823, %v845
    %s848 = sld [smem:[#allocation4 + $0x9f]]
    %v849 = vstv %s848
    %v850 = vmul.f32 %v800, %v849
    %v851 = vmul.f32 %v801, %v849
    %v852 = vadd.f32 %v828, %v850
    %v853 = vadd.f32 %v829, %v851
    %854 = vrot.lane.b32.xlu0 %v800, 126
    %v855 = vpop.permute.xlu0 %854
    %856 = vrot.lane.b32.xlu0 %v801, 126
    %v857 = vpop.permute.xlu0 %856
    %s858 = sld [smem:[#allocation4 + $0xac]]
    %v859 = vstv %s858
    %v860 = vmul.f32 %v855, %v859
    %v861 = vmul.f32 %v857, %v859
    %v862 = vadd.f32 %v834, %v860
    %v863 = vadd.f32 %v835, %v861
    %s864 = sld [smem:[#allocation4 + $0xad]]
    %v865 = vstv %s864
    %v866 = vmul.f32 %v855, %v865
    %v867 = vmul.f32 %v857, %v865
    %v868 = vadd.f32 %v840, %v866
    %v869 = vadd.f32 %v841, %v867
    %s870 = sld [smem:[#allocation4 + $0xae]]
    %v871 = vstv %s870
    %v872 = vmul.f32 %v855, %v871
    %v873 = vmul.f32 %v857, %v871
    %v874 = vadd.f32 %v846, %v872
    %v875 = vadd.f32 %v847, %v873
    %s876 = sld [smem:[#allocation4 + $0xaf]]
    %v877 = vstv %s876
    %v878 = vmul.f32 %v855, %v877
    %v879 = vmul.f32 %v857, %v877
    %v880 = vadd.f32 %v852, %v878
    %v881 = vadd.f32 %v853, %v879
    %v882 = vrot.slane %v362, 7
    %v883 = vrot.slane %v363, 7
    %v884 = vsel %vm48, %v882, 0.0
    %v885 = vsel %vm48, %v883, 0.0
    %886 = vrot.lane.b32.xlu0 %v884, 2
    %v887 = vpop.permute.xlu0 %886
    %888 = vrot.lane.b32.xlu0 %v885, 2
    %v889 = vpop.permute.xlu0 %888
    %s890 = sld [smem:[#allocation4 + $0x30]]
    %v891 = vstv %s890
    %v892 = vmul.f32 %v887, %v891
    %v893 = vmul.f32 %v889, %v891
    %v894 = vadd.f32 %v862, %v892
    %v895 = vadd.f32 %v863, %v893
    %s896 = sld [smem:[#allocation4 + $0x31]]
    %v897 = vstv %s896
    %v898 = vmul.f32 %v887, %v897
    %v899 = vmul.f32 %v889, %v897
    %v900 = vadd.f32 %v868, %v898
    %v901 = vadd.f32 %v869, %v899
    %s902 = sld [smem:[#allocation4 + $0x32]]
    %v903 = vstv %s902
    %v904 = vmul.f32 %v887, %v903
    %v905 = vmul.f32 %v889, %v903
    %v906 = vadd.f32 %v874, %v904
    %v907 = vadd.f32 %v875, %v905
    %s908 = sld [smem:[#allocation4 + $0x33]]
    %v909 = vstv %s908
    %v910 = vmul.f32 %v887, %v909
    %v911 = vmul.f32 %v889, %v909
    %v912 = vadd.f32 %v880, %v910
    %v913 = vadd.f32 %v881, %v911
    %s914 = sld [smem:[#allocation4 + $0x40]]
    %v915 = vstv %s914
    %v916 = vmul.f32 %v884, %v915
    %v917 = vmul.f32 %v885, %v915
    %v918 = vadd.f32 %v894, %v916
    %v919 = vadd.f32 %v895, %v917
    %s920 = sld [smem:[#allocation4 + $0x41]]
    %v921 = vstv %s920
    %v922 = vmul.f32 %v884, %v921
    %v923 = vmul.f32 %v885, %v921
    %v924 = vadd.f32 %v900, %v922
    %v925 = vadd.f32 %v901, %v923
    %s926 = sld [smem:[#allocation4 + $0x42]]
    %v927 = vstv %s926
    %v928 = vmul.f32 %v884, %v927
    %v929 = vmul.f32 %v885, %v927
    %v930 = vadd.f32 %v906, %v928
    %v931 = vadd.f32 %v907, %v929
    %s932 = sld [smem:[#allocation4 + $0x43]]
    %v933 = vstv %s932
    %v934 = vmul.f32 %v884, %v933
    %v935 = vmul.f32 %v885, %v933
    %v936 = vadd.f32 %v912, %v934
    %v937 = vadd.f32 %v913, %v935
    %938 = vrot.lane.b32.xlu0 %v884, 126
    %v939 = vpop.permute.xlu0 %938
    %940 = vrot.lane.b32.xlu0 %v885, 126
    %v941 = vpop.permute.xlu0 %940
    %s942 = sld [smem:[#allocation4 + $0x50]]
    %v943 = vstv %s942
    %v944 = vmul.f32 %v939, %v943
    %v945 = vmul.f32 %v941, %v943
    %v946 = vadd.f32 %v918, %v944
    %v947 = vadd.f32 %v919, %v945
    %s948 = sld [smem:[#allocation4 + $0x51]]
    %v949 = vstv %s948
    %v950 = vmul.f32 %v939, %v949
    %v951 = vmul.f32 %v941, %v949
    %v952 = vadd.f32 %v924, %v950
    %v953 = vadd.f32 %v925, %v951
    %s954 = sld [smem:[#allocation4 + $0x52]]
    %v955 = vstv %s954
    %v956 = vmul.f32 %v939, %v955
    %v957 = vmul.f32 %v941, %v955
    %v958 = vadd.f32 %v930, %v956
    %v959 = vadd.f32 %v931, %v957
    %s960 = sld [smem:[#allocation4 + $0x53]]
    %v961 = vstv %s960
    %v962 = vmul.f32 %v939, %v961
    %v963 = vmul.f32 %v941, %v961
    %v964 = vadd.f32 %v936, %v962
    %v965 = vadd.f32 %v937, %v963
    %966 = vrot.lane.b32.xlu0 %v362, 2
    %v967 = vpop.permute.xlu0 %966
    %968 = vrot.lane.b32.xlu0 %v363, 2
    %v969 = vpop.permute.xlu0 %968
    %s970 = sld [smem:[#allocation4 + $0x60]]
    %v971 = vstv %s970
    %v972 = vmul.f32 %v967, %v971
    %v973 = vmul.f32 %v969, %v971
    %v974 = vadd.f32 %v946, %v972
    %v975 = vadd.f32 %v947, %v973
    %s976 = sld [smem:[#allocation4 + $0x61]]
    %v977 = vstv %s976
    %v978 = vmul.f32 %v967, %v977
    %v979 = vmul.f32 %v969, %v977
    %v980 = vadd.f32 %v952, %v978
    %v981 = vadd.f32 %v953, %v979
    %s982 = sld [smem:[#allocation4 + $0x62]]
    %v983 = vstv %s982
    %v984 = vmul.f32 %v967, %v983
    %v985 = vmul.f32 %v969, %v983
    %v986 = vadd.f32 %v958, %v984
    %v987 = vadd.f32 %v959, %v985
    %s988 = sld [smem:[#allocation4 + $0x63]]
    %v989 = vstv %s988
    %v990 = vmul.f32 %v967, %v989
    %v991 = vmul.f32 %v969, %v989
    %v992 = vadd.f32 %v964, %v990
    %v993 = vadd.f32 %v965, %v991
    %s994 = sld [smem:[#allocation4 + $0x70]]
    %v995 = vstv %s994
    %v996 = vmul.f32 %v362, %v995
    %v997 = vmul.f32 %v363, %v995
    %v998 = vadd.f32 %v974, %v996
    %v999 = vadd.f32 %v975, %v997
    %s1000 = sld [smem:[#allocation4 + $0x71]]
    %v1001 = vstv %s1000
    %v1002 = vmul.f32 %v362, %v1001
    %v1003 = vmul.f32 %v363, %v1001
    %v1004 = vadd.f32 %v980, %v1002
    %v1005 = vadd.f32 %v981, %v1003
    %s1006 = sld [smem:[#allocation4 + $0x72]]
    %v1007 = vstv %s1006
    %v1008 = vmul.f32 %v362, %v1007
    %v1009 = vmul.f32 %v363, %v1007
    %v1010 = vadd.f32 %v986, %v1008
    %v1011 = vadd.f32 %v987, %v1009
    %s1012 = sld [smem:[#allocation4 + $0x73]]
    %v1013 = vstv %s1012
    %v1014 = vmul.f32 %v362, %v1013
    %v1015 = vmul.f32 %v363, %v1013
    %v1016 = vadd.f32 %v992, %v1014
    %v1017 = vadd.f32 %v993, %v1015
    %1018 = vrot.lane.b32.xlu0 %v362, 126
    %v1019 = vpop.permute.xlu0 %1018
    %1020 = vrot.lane.b32.xlu0 %v363, 126
    %v1021 = vpop.permute.xlu0 %1020
    %s1022 = sld [smem:[#allocation4 + $0x80]]
    %v1023 = vstv %s1022
    %v1024 = vmul.f32 %v1019, %v1023
    %v1025 = vmul.f32 %v1021, %v1023
    %v1026 = vadd.f32 %v998, %v1024
    %v1027 = vadd.f32 %v999, %v1025
    %s1028 = sld [smem:[#allocation4 + $0x81]]
    %v1029 = vstv %s1028
    %v1030 = vmul.f32 %v1019, %v1029
    %v1031 = vmul.f32 %v1021, %v1029
    %v1032 = vadd.f32 %v1004, %v1030
    %v1033 = vadd.f32 %v1005, %v1031
    %s1034 = sld [smem:[#allocation4 + $0x82]]
    %v1035 = vstv %s1034
    %v1036 = vmul.f32 %v1019, %v1035
    %v1037 = vmul.f32 %v1021, %v1035
    %v1038 = vadd.f32 %v1010, %v1036
    %v1039 = vadd.f32 %v1011, %v1037
    %s1040 = sld [smem:[#allocation4 + $0x83]]
    %v1041 = vstv %s1040
    %v1042 = vmul.f32 %v1019, %v1041
    %v1043 = vmul.f32 %v1021, %v1041
    %v1044 = vadd.f32 %v1016, %v1042
    %v1045 = vadd.f32 %v1017, %v1043
    %v1046 = vrot.slane %v362, 1
    %v1047 = vrot.slane %v363, 1
    %v1048 = vsel %vm47, %v1046, 0.0
    %v1049 = vsel %vm47, %v1047, 0.0
    %1050 = vrot.lane.b32.xlu0 %v1048, 2
    %v1051 = vpop.permute.xlu0 %1050
    %1052 = vrot.lane.b32.xlu0 %v1049, 2
    %v1053 = vpop.permute.xlu0 %1052
    %s1054 = sld [smem:[#allocation4 + $0x90]]
    %v1055 = vstv %s1054
    %v1056 = vmul.f32 %v1051, %v1055
    %v1057 = vmul.f32 %v1053, %v1055
    %v1058 = vadd.f32 %v1026, %v1056
    %v1059 = vadd.f32 %v1027, %v1057
    %s1060 = sld [smem:[#allocation4 + $0x91]]
    %v1061 = vstv %s1060
    %v1062 = vmul.f32 %v1051, %v1061
    %v1063 = vmul.f32 %v1053, %v1061
    %v1064 = vadd.f32 %v1032, %v1062
    %v1065 = vadd.f32 %v1033, %v1063
    %s1066 = sld [smem:[#allocation4 + $0x92]]
    %v1067 = vstv %s1066
    %v1068 = vmul.f32 %v1051, %v1067
    %v1069 = vmul.f32 %v1053, %v1067
    %v1070 = vadd.f32 %v1038, %v1068
    %v1071 = vadd.f32 %v1039, %v1069
    %s1072 = sld [smem:[#allocation4 + $0x93]]
    %v1073 = vstv %s1072
    %v1074 = vmul.f32 %v1051, %v1073
    %v1075 = vmul.f32 %v1053, %v1073
    %v1076 = vadd.f32 %v1044, %v1074
    %v1077 = vadd.f32 %v1045, %v1075
    %s1078 = sld [smem:[#allocation4 + $0xa0]]
    %v1079 = vstv %s1078
    %v1080 = vmul.f32 %v1048, %v1079
    %v1081 = vmul.f32 %v1049, %v1079
    %v1082 = vadd.f32 %v1058, %v1080
    %v1083 = vadd.f32 %v1059, %v1081
    %s1084 = sld [smem:[#allocation4 + $0xa1]]
    %v1085 = vstv %s1084
    %v1086 = vmul.f32 %v1048, %v1085
    %v1087 = vmul.f32 %v1049, %v1085
    %v1088 = vadd.f32 %v1064, %v1086
    %v1089 = vadd.f32 %v1065, %v1087
    %s1090 = sld [smem:[#allocation4 + $0xa2]]
    %v1091 = vstv %s1090
    %v1092 = vmul.f32 %v1048, %v1091
    %v1093 = vmul.f32 %v1049, %v1091
    %v1094 = vadd.f32 %v1070, %v1092
    %v1095 = vadd.f32 %v1071, %v1093
    %s1096 = sld [smem:[#allocation4 + $0xa3]]
    %v1097 = vstv %s1096
    %v1098 = vmul.f32 %v1048, %v1097
    %v1099 = vmul.f32 %v1049, %v1097
    %v1100 = vadd.f32 %v1076, %v1098
    %v1101 = vadd.f32 %v1077, %v1099
    %1102 = vrot.lane.b32.xlu0 %v1048, 126
    %v1103 = vpop.permute.xlu0 %1102
    %1104 = vrot.lane.b32.xlu0 %v1049, 126
    %v1105 = vpop.permute.xlu0 %1104
    %s1106 = sld [smem:[#allocation4 + $0xb0]]
    %v1107 = vstv %s1106
    %v1108 = vmul.f32 %v1103, %v1107
    %v1109 = vmul.f32 %v1105, %v1107
    %v1110 = vadd.f32 %v1082, %v1108
    %v1111 = vadd.f32 %v1083, %v1109
    %s1112 = sld [smem:[#allocation4 + $0xb1]]
    %v1113 = vstv %s1112
    %v1114 = vmul.f32 %v1103, %v1113
    %v1115 = vmul.f32 %v1105, %v1113
    %v1116 = vadd.f32 %v1088, %v1114
    %v1117 = vadd.f32 %v1089, %v1115
    %s1118 = sld [smem:[#allocation4 + $0xb2]]
    %v1119 = vstv %s1118
    %v1120 = vmul.f32 %v1103, %v1119
    %v1121 = vmul.f32 %v1105, %v1119
    %v1122 = vadd.f32 %v1094, %v1120
    %v1123 = vadd.f32 %v1095, %v1121
    %s1124 = sld [smem:[#allocation4 + $0xb3]]
    %v1125 = vstv %s1124
    %v1126 = vmul.f32 %v1103, %v1125
    %v1127 = vmul.f32 %v1105, %v1125
    %v1128 = vadd.f32 %v1100, %v1126
    %v1129 = vadd.f32 %v1101, %v1127
    %v1130 = vrot.slane %v384, 7
    %v1131 = vrot.slane %v385, 7
    %v1132 = vsel %vm48, %v1130, 0.0
    %v1133 = vsel %vm48, %v1131, 0.0
    %1134 = vrot.lane.b32.xlu0 %v1132, 2
    %v1135 = vpop.permute.xlu0 %1134
    %1136 = vrot.lane.b32.xlu0 %v1133, 2
    %v1137 = vpop.permute.xlu0 %1136
    %s1138 = sld [smem:[#allocation4 + $0x34]]
    %v1139 = vstv %s1138
    %v1140 = vmul.f32 %v1135, %v1139
    %v1141 = vmul.f32 %v1137, %v1139
    %v1142 = vadd.f32 %v1110, %v1140
    %v1143 = vadd.f32 %v1111, %v1141
    %s1144 = sld [smem:[#allocation4 + $0x35]]
    %v1145 = vstv %s1144
    %v1146 = vmul.f32 %v1135, %v1145
    %v1147 = vmul.f32 %v1137, %v1145
    %v1148 = vadd.f32 %v1116, %v1146
    %v1149 = vadd.f32 %v1117, %v1147
    %s1150 = sld [smem:[#allocation4 + $0x36]]
    %v1151 = vstv %s1150
    %v1152 = vmul.f32 %v1135, %v1151
    %v1153 = vmul.f32 %v1137, %v1151
    %v1154 = vadd.f32 %v1122, %v1152
    %v1155 = vadd.f32 %v1123, %v1153
    %s1156 = sld [smem:[#allocation4 + $0x37]]
    %v1157 = vstv %s1156
    %v1158 = vmul.f32 %v1135, %v1157
    %v1159 = vmul.f32 %v1137, %v1157
    %v1160 = vadd.f32 %v1128, %v1158
    %v1161 = vadd.f32 %v1129, %v1159
    %s1162 = sld [smem:[#allocation4 + $0x44]]
    %v1163 = vstv %s1162
    %v1164 = vmul.f32 %v1132, %v1163
    %v1165 = vmul.f32 %v1133, %v1163
    %v1166 = vadd.f32 %v1142, %v1164
    %v1167 = vadd.f32 %v1143, %v1165
    %s1168 = sld [smem:[#allocation4 + $0x45]]
    %v1169 = vstv %s1168
    %v1170 = vmul.f32 %v1132, %v1169
    %v1171 = vmul.f32 %v1133, %v1169
    %v1172 = vadd.f32 %v1148, %v1170
    %v1173 = vadd.f32 %v1149, %v1171
    %s1174 = sld [smem:[#allocation4 + $0x46]]
    %v1175 = vstv %s1174
    %v1176 = vmul.f32 %v1132, %v1175
    %v1177 = vmul.f32 %v1133, %v1175
    %v1178 = vadd.f32 %v1154, %v1176
    %v1179 = vadd.f32 %v1155, %v1177
    %s1180 = sld [smem:[#allocation4 + $0x47]]
    %v1181 = vstv %s1180
    %v1182 = vmul.f32 %v1132, %v1181
    %v1183 = vmul.f32 %v1133, %v1181
    %v1184 = vadd.f32 %v1160, %v1182
    %v1185 = vadd.f32 %v1161, %v1183
    %1186 = vrot.lane.b32.xlu0 %v1132, 126
    %v1187 = vpop.permute.xlu0 %1186
    %1188 = vrot.lane.b32.xlu0 %v1133, 126
    %v1189 = vpop.permute.xlu0 %1188
    %s1190 = sld [smem:[#allocation4 + $0x54]]
    %v1191 = vstv %s1190
    %v1192 = vmul.f32 %v1187, %v1191
    %v1193 = vmul.f32 %v1189, %v1191
    %v1194 = vadd.f32 %v1166, %v1192
    %v1195 = vadd.f32 %v1167, %v1193
    %s1196 = sld [smem:[#allocation4 + $0x55]]
    %v1197 = vstv %s1196
    %v1198 = vmul.f32 %v1187, %v1197
    %v1199 = vmul.f32 %v1189, %v1197
    %v1200 = vadd.f32 %v1172, %v1198
    %v1201 = vadd.f32 %v1173, %v1199
    %s1202 = sld [smem:[#allocation4 + $0x56]]
    %v1203 = vstv %s1202
    %v1204 = vmul.f32 %v1187, %v1203
    %v1205 = vmul.f32 %v1189, %v1203
    %v1206 = vadd.f32 %v1178, %v1204
    %v1207 = vadd.f32 %v1179, %v1205
    %s1208 = sld [smem:[#allocation4 + $0x57]]
    %v1209 = vstv %s1208
    %v1210 = vmul.f32 %v1187, %v1209
    %v1211 = vmul.f32 %v1189, %v1209
    %v1212 = vadd.f32 %v1184, %v1210
    %v1213 = vadd.f32 %v1185, %v1211
    %1214 = vrot.lane.b32.xlu0 %v384, 2
    %v1215 = vpop.permute.xlu0 %1214
    %1216 = vrot.lane.b32.xlu0 %v385, 2
    %v1217 = vpop.permute.xlu0 %1216
    %s1218 = sld [smem:[#allocation4 + $0x64]]
    %v1219 = vstv %s1218
    %v1220 = vmul.f32 %v1215, %v1219
    %v1221 = vmul.f32 %v1217, %v1219
    %v1222 = vadd.f32 %v1194, %v1220
    %v1223 = vadd.f32 %v1195, %v1221
    %s1224 = sld [smem:[#allocation4 + $0x65]]
    %v1225 = vstv %s1224
    %v1226 = vmul.f32 %v1215, %v1225
    %v1227 = vmul.f32 %v1217, %v1225
    %v1228 = vadd.f32 %v1200, %v1226
    %v1229 = vadd.f32 %v1201, %v1227
    %s1230 = sld [smem:[#allocation4 + $0x66]]
    %v1231 = vstv %s1230
    %v1232 = vmul.f32 %v1215, %v1231
    %v1233 = vmul.f32 %v1217, %v1231
    %v1234 = vadd.f32 %v1206, %v1232
    %v1235 = vadd.f32 %v1207, %v1233
    %s1236 = sld [smem:[#allocation4 + $0x67]]
    %v1237 = vstv %s1236
    %v1238 = vmul.f32 %v1215, %v1237
    %v1239 = vmul.f32 %v1217, %v1237
    %v1240 = vadd.f32 %v1212, %v1238
    %v1241 = vadd.f32 %v1213, %v1239
    %s1242 = sld [smem:[#allocation4 + $0x74]]
    %v1243 = vstv %s1242
    %v1244 = vmul.f32 %v384, %v1243
    %v1245 = vmul.f32 %v385, %v1243
    %v1246 = vadd.f32 %v1222, %v1244
    %v1247 = vadd.f32 %v1223, %v1245
    %s1248 = sld [smem:[#allocation4 + $0x75]]
    %v1249 = vstv %s1248
    %v1250 = vmul.f32 %v384, %v1249
    %v1251 = vmul.f32 %v385, %v1249
    %v1252 = vadd.f32 %v1228, %v1250
    %v1253 = vadd.f32 %v1229, %v1251
    %s1254 = sld [smem:[#allocation4 + $0x76]]
    %v1255 = vstv %s1254
    %v1256 = vmul.f32 %v384, %v1255
    %v1257 = vmul.f32 %v385, %v1255
    %v1258 = vadd.f32 %v1234, %v1256
    %v1259 = vadd.f32 %v1235, %v1257
    %s1260 = sld [smem:[#allocation4 + $0x77]]
    %v1261 = vstv %s1260
    %v1262 = vmul.f32 %v384, %v1261
    %v1263 = vmul.f32 %v385, %v1261
    %v1264 = vadd.f32 %v1240, %v1262
    %v1265 = vadd.f32 %v1241, %v1263
    %1266 = vrot.lane.b32.xlu0 %v384, 126
    %v1267 = vpop.permute.xlu0 %1266
    %1268 = vrot.lane.b32.xlu0 %v385, 126
    %v1269 = vpop.permute.xlu0 %1268
    %s1270 = sld [smem:[#allocation4 + $0x84]]
    %v1271 = vstv %s1270
    %v1272 = vmul.f32 %v1267, %v1271
    %v1273 = vmul.f32 %v1269, %v1271
    %v1274 = vadd.f32 %v1246, %v1272
    %v1275 = vadd.f32 %v1247, %v1273
    %s1276 = sld [smem:[#allocation4 + $0x85]]
    %v1277 = vstv %s1276
    %v1278 = vmul.f32 %v1267, %v1277
    %v1279 = vmul.f32 %v1269, %v1277
    %v1280 = vadd.f32 %v1252, %v1278
    %v1281 = vadd.f32 %v1253, %v1279
    %s1282 = sld [smem:[#allocation4 + $0x86]]
    %v1283 = vstv %s1282
    %v1284 = vmul.f32 %v1267, %v1283
    %v1285 = vmul.f32 %v1269, %v1283
    %v1286 = vadd.f32 %v1258, %v1284
    %v1287 = vadd.f32 %v1259, %v1285
    %s1288 = sld [smem:[#allocation4 + $0x87]]
    %v1289 = vstv %s1288
    %v1290 = vmul.f32 %v1267, %v1289
    %v1291 = vmul.f32 %v1269, %v1289
    %v1292 = vadd.f32 %v1264, %v1290
    %v1293 = vadd.f32 %v1265, %v1291
    %v1294 = vrot.slane %v384, 1
    %v1295 = vrot.slane %v385, 1
    %v1296 = vsel %vm47, %v1294, 0.0
    %v1297 = vsel %vm47, %v1295, 0.0
    %1298 = vrot.lane.b32.xlu0 %v1296, 2
    %v1299 = vpop.permute.xlu0 %1298
    %1300 = vrot.lane.b32.xlu0 %v1297, 2
    %v1301 = vpop.permute.xlu0 %1300
    %s1302 = sld [smem:[#allocation4 + $0x94]]
    %v1303 = vstv %s1302
    %v1304 = vmul.f32 %v1299, %v1303
    %v1305 = vmul.f32 %v1301, %v1303
    %v1306 = vadd.f32 %v1274, %v1304
    %v1307 = vadd.f32 %v1275, %v1305
    %s1308 = sld [smem:[#allocation4 + $0x95]]
    %v1309 = vstv %s1308
    %v1310 = vmul.f32 %v1299, %v1309
    %v1311 = vmul.f32 %v1301, %v1309
    %v1312 = vadd.f32 %v1280, %v1310
    %v1313 = vadd.f32 %v1281, %v1311
    %s1314 = sld [smem:[#allocation4 + $0x96]]
    %v1315 = vstv %s1314
    %v1316 = vmul.f32 %v1299, %v1315
    %v1317 = vmul.f32 %v1301, %v1315
    %v1318 = vadd.f32 %v1286, %v1316
    %v1319 = vadd.f32 %v1287, %v1317
    %s1320 = sld [smem:[#allocation4 + $0x97]]
    %v1321 = vstv %s1320
    %v1322 = vmul.f32 %v1299, %v1321
    %v1323 = vmul.f32 %v1301, %v1321
    %v1324 = vadd.f32 %v1292, %v1322
    %v1325 = vadd.f32 %v1293, %v1323
    %s1326 = sld [smem:[#allocation4 + $0xa4]]
    %v1327 = vstv %s1326
    %v1328 = vmul.f32 %v1296, %v1327
    %v1329 = vmul.f32 %v1297, %v1327
    %v1330 = vadd.f32 %v1306, %v1328
    %v1331 = vadd.f32 %v1307, %v1329
    %s1332 = sld [smem:[#allocation4 + $0xa5]]
    %v1333 = vstv %s1332
    %v1334 = vmul.f32 %v1296, %v1333
    %v1335 = vmul.f32 %v1297, %v1333
    %v1336 = vadd.f32 %v1312, %v1334
    %v1337 = vadd.f32 %v1313, %v1335
    %s1338 = sld [smem:[#allocation4 + $0xa6]]
    %v1339 = vstv %s1338
    %v1340 = vmul.f32 %v1296, %v1339
    %v1341 = vmul.f32 %v1297, %v1339
    %v1342 = vadd.f32 %v1318, %v1340
    %v1343 = vadd.f32 %v1319, %v1341
    %s1344 = sld [smem:[#allocation4 + $0xa7]]
    %v1345 = vstv %s1344
    %v1346 = vmul.f32 %v1296, %v1345
    %v1347 = vmul.f32 %v1297, %v1345
    %v1348 = vadd.f32 %v1324, %v1346
    %v1349 = vadd.f32 %v1325, %v1347
    %1350 = vrot.lane.b32.xlu0 %v1296, 126
    %v1351 = vpop.permute.xlu0 %1350
    %1352 = vrot.lane.b32.xlu0 %v1297, 126
    %v1353 = vpop.permute.xlu0 %1352
    %s1354 = sld [smem:[#allocation4 + $0xb4]]
    %v1355 = vstv %s1354
    %v1356 = vmul.f32 %v1351, %v1355
    %v1357 = vmul.f32 %v1353, %v1355
    %v1358 = vadd.f32 %v1330, %v1356
    %v1359 = vadd.f32 %v1331, %v1357
    %s1360 = sld [smem:[#allocation4 + $0xb5]]
    %v1361 = vstv %s1360
    %v1362 = vmul.f32 %v1351, %v1361
    %v1363 = vmul.f32 %v1353, %v1361
    %v1364 = vadd.f32 %v1336, %v1362
    %v1365 = vadd.f32 %v1337, %v1363
    %s1366 = sld [smem:[#allocation4 + $0xb6]]
    %v1367 = vstv %s1366
    %v1368 = vmul.f32 %v1351, %v1367
    %v1369 = vmul.f32 %v1353, %v1367
    %v1370 = vadd.f32 %v1342, %v1368
    %v1371 = vadd.f32 %v1343, %v1369
    %s1372 = sld [smem:[#allocation4 + $0xb7]]
    %v1373 = vstv %s1372
    %v1374 = vmul.f32 %v1351, %v1373
    %v1375 = vmul.f32 %v1353, %v1373
    %v1376 = vadd.f32 %v1348, %v1374
    %v1377 = vadd.f32 %v1349, %v1375
    %s1378 = sld [smem:[#allocation4 + $0xb8]]
    %v1379 = vstv %s1378
    %v1380 = vadd.f32 %v1358, %v1379
    %v1381 = vadd.f32 %v1359, %v1379
    %vm1382 = vcmp.gt.f32.partialorder %v1380, 0.0
    %vm1383 = vcmp.gt.f32.partialorder %v1381, 0.0
    %v1384 = vmul.f32 %v1380, 1.442695
    %v1385 = vpow.pop %v1384
    %v1386 = vmul.f32 %v1381, 1.442695
    %v1387 = vpow.pop %v1386
    %v1388 = vsub.f32 %v1385, 1.0
    %v1389 = vsub.f32 %v1387, 1.0
    %v1390 = vsel %vm1382, %v1380, %v1388
    %v1391 = vsel %vm1383, %v1381, %v1389
    %1392 = vrot.lane.b32.xlu0 %v1390, 126
    %v1393 = vpop.permute.xlu0 %1392
    %1394 = vrot.lane.b32.xlu0 %v1391, 126
    %v1395 = vpop.permute.xlu0 %1394
    %v1396 = vmax.f32 %v1390, %v1393
    %v1397 = vmax.f32 %v1391, %v1395
    %s1398 = sld [smem:[#allocation4 + $0xb9]]
    %v1399 = vstv %s1398
    %v1400 = vadd.f32 %v1364, %v1399
    %v1401 = vadd.f32 %v1365, %v1399
    %vm1402 = vcmp.gt.f32.partialorder %v1400, 0.0
    %vm1403 = vcmp.gt.f32.partialorder %v1401, 0.0
    %v1404 = vmul.f32 %v1400, 1.442695
    %v1405 = vpow.pop %v1404
    %v1406 = vmul.f32 %v1401, 1.442695
    %v1407 = vpow.pop %v1406
    %v1408 = vsub.f32 %v1405, 1.0
    %v1409 = vsub.f32 %v1407, 1.0
    %v1410 = vsel %vm1402, %v1400, %v1408
    %v1411 = vsel %vm1403, %v1401, %v1409
    %1412 = vrot.lane.b32.xlu0 %v1410, 126
    %v1413 = vpop.permute.xlu0 %1412
    %1414 = vrot.lane.b32.xlu0 %v1411, 126
    %v1415 = vpop.permute.xlu0 %1414
    %v1416 = vmax.f32 %v1410, %v1413
    %v1417 = vmax.f32 %v1411, %v1415
    %s1418 = sld [smem:[#allocation4 + $0xba]]
    %v1419 = vstv %s1418
    %v1420 = vadd.f32 %v1370, %v1419
    %v1421 = vadd.f32 %v1371, %v1419
    %vm1422 = vcmp.gt.f32.partialorder %v1420, 0.0
    %vm1423 = vcmp.gt.f32.partialorder %v1421, 0.0
    %v1424 = vmul.f32 %v1420, 1.442695
    %v1425 = vpow.pop %v1424
    %v1426 = vmul.f32 %v1421, 1.442695
    %v1427 = vpow.pop %v1426
    %v1428 = vsub.f32 %v1425, 1.0
    %v1429 = vsub.f32 %v1427, 1.0
    %v1430 = vsel %vm1422, %v1420, %v1428
    %v1431 = vsel %vm1423, %v1421, %v1429
    %1432 = vrot.lane.b32.xlu0 %v1430, 126
    %v1433 = vpop.permute.xlu0 %1432
    %1434 = vrot.lane.b32.xlu0 %v1431, 126
    %v1435 = vpop.permute.xlu0 %1434
    %v1436 = vmax.f32 %v1430, %v1433
    %v1437 = vmax.f32 %v1431, %v1435
    %s1438 = sld [smem:[#allocation4 + $0xbb]]
    %v1439 = vstv %s1438
    %v1440 = vadd.f32 %v1376, %v1439
    %v1441 = vadd.f32 %v1377, %v1439
    %vm1442 = vcmp.gt.f32.partialorder %v1440, 0.0
    %vm1443 = vcmp.gt.f32.partialorder %v1441, 0.0
    %v1444 = vmul.f32 %v1440, 1.442695
    %v1445 = vpow.pop %v1444
    %v1446 = vmul.f32 %v1441, 1.442695
    %v1447 = vpow.pop %v1446
    %v1448 = vsub.f32 %v1445, 1.0
    %v1449 = vsub.f32 %v1447, 1.0
    %v1450 = vsel %vm1442, %v1440, %v1448
    %v1451 = vsel %vm1443, %v1441, %v1449
    %1452 = vrot.lane.b32.xlu0 %v1450, 126
    %v1453 = vpop.permute.xlu0 %1452
    %1454 = vrot.lane.b32.xlu0 %v1451, 126
    %v1455 = vpop.permute.xlu0 %1454
    %v1456 = vmax.f32 %v1450, %v1453
    %v1457 = vmax.f32 %v1451, %v1455
    %v1458 = vld [vmem:[#allocation7 + $0x210] sm:$0x1]
    %v1459 = vld [vmem:[#allocation7] sm:$0xff]
    %v1460 = vld [vmem:[#allocation7 + $0x8] sm:$0xff]
    %v1461 = vld [vmem:[#allocation7 + $0x10] sm:$0xff]
    %v1462 = vld [vmem:[#allocation7 + $0x18] sm:$0xff]
    %v1463 = vld [vmem:[#allocation7 + $0x20] sm:$0xff]
    %v1464 = vld [vmem:[#allocation7 + $0x28] sm:$0xff]
    %v1465 = vld [vmem:[#allocation7 + $0x30] sm:$0xff]
    %v1466 = vld [vmem:[#allocation7 + $0x38] sm:$0xff]
    %v1467 = vld [vmem:[#allocation7 + $0x40] sm:$0xff]
    %v1468 = vld [vmem:[#allocation7 + $0x48] sm:$0xff]
    %v1469 = vld [vmem:[#allocation7 + $0x50] sm:$0xff]
    %v1470 = vld [vmem:[#allocation7 + $0x58] sm:$0xff]
    %v1471 = vld [vmem:[#allocation7 + $0x60] sm:$0xff]
    %v1472 = vld [vmem:[#allocation7 + $0x68] sm:$0xff]
    %v1473 = vld [vmem:[#allocation7 + $0x70] sm:$0xff]
    %v1474 = vld [vmem:[#allocation7 + $0x78] sm:$0xff]
    %v1475 = vld [vmem:[#allocation7 + $0x80] sm:$0xff]
    %v1476 = vld [vmem:[#allocation7 + $0x88] sm:$0xff]
    %v1477 = vld [vmem:[#allocation7 + $0x90] sm:$0xff]
    %v1478 = vld [vmem:[#allocation7 + $0x98] sm:$0xff]
    %v1479 = vld [vmem:[#allocation7 + $0xa0] sm:$0xff]
    %v1480 = vld [vmem:[#allocation7 + $0xa8] sm:$0xff]
    %v1481 = vld [vmem:[#allocation7 + $0xb0] sm:$0xff]
    %v1482 = vld [vmem:[#allocation7 + $0xb8] sm:$0xff]
    %v1483 = vld [vmem:[#allocation7 + $0xc0] sm:$0xff]
    %v1484 = vld [vmem:[#allocation7 + $0xc8] sm:$0xff]
    %v1485 = vld [vmem:[#allocation7 + $0xd0] sm:$0xff]
    %v1486 = vld [vmem:[#allocation7 + $0xd8] sm:$0xff]
    %v1487 = vld [vmem:[#allocation7 + $0xe0] sm:$0xff]
    %v1488 = vld [vmem:[#allocation7 + $0xe8] sm:$0xff]
    %v1489 = vld [vmem:[#allocation7 + $0xf0] sm:$0xff]
    %v1490 = vld [vmem:[#allocation7 + $0xf8] sm:$0xff]
    %1491 = vmatprep.subr.mxu0 0.0
    %1492 = vmatpush1.msra.mxu0 %v1490
    %1493 = vmatprep.subr.mxu0 0.0
    %1494 = vmatpush1.msra.mxu0 %v1489
    %1495 = vmatprep.subr.mxu0 0.0
    %1496 = vmatpush1.msra.mxu0 %v1488
    %1497 = vmatprep.subr.mxu0 0.0
    %1498 = vmatpush1.msra.mxu0 %v1487
    %1499 = vmatprep.subr.mxu0 0.0
    %1500 = vmatpush1.msra.mxu0 %v1486
    %1501 = vmatprep.subr.mxu0 0.0
    %1502 = vmatpush1.msra.mxu0 %v1485
    %1503 = vmatprep.subr.mxu0 0.0
    %1504 = vmatpush1.msra.mxu0 %v1484
    %1505 = vmatprep.subr.mxu0 0.0
    %1506 = vmatpush1.msra.mxu0 %v1483
    %1507 = vmatprep.subr.mxu0 0.0
    %1508 = vmatpush1.msra.mxu0 %v1482
    %1509 = vmatprep.subr.mxu0 0.0
    %1510 = vmatpush1.msra.mxu0 %v1481
    %1511 = vmatprep.subr.mxu0 0.0
    %1512 = vmatpush1.msra.mxu0 %v1480
    %1513 = vmatprep.subr.mxu0 0.0
    %1514 = vmatpush1.msra.mxu0 %v1479
    %1515 = vmatprep.subr.mxu0 0.0
    %1516 = vmatpush1.msra.mxu0 %v1478
    %1517 = vmatprep.subr.mxu0 0.0
    %1518 = vmatpush1.msra.mxu0 %v1477
    %1519 = vmatprep.subr.mxu0 0.0
    %1520 = vmatpush1.msra.mxu0 %v1476
    %1521 = vmatprep.subr.mxu0 0.0
    %1522 = vmatpush1.msra.mxu0 %v1475
    %1523 = vmatprep.subr.mxu0 0.0
    %1524 = vmatpush2.msra.mxu0 0.0
    %1525 = vmatprep.subr.mxu0 0.0
    %1526 = vmatpush2.msra.mxu0 0.0
    %1527 = vmatprep.subr.mxu0 0.0
    %1528 = vmatpush2.msra.mxu0 0.0
    %1529 = vmatprep.subr.mxu0 0.0
    %1530 = vmatpush2.msra.mxu0 0.0
    %1531 = vmatprep.subr.mxu0 0.0
    %1532 = vmatpush2.msra.mxu0 0.0
    %1533 = vmatprep.subr.mxu0 0.0
    %1534 = vmatpush2.msra.mxu0 0.0
    %1535 = vmatprep.subr.mxu0 0.0
    %1536 = vmatpush2.msra.mxu0 0.0
    %1537 = vmatprep.subr.mxu0 0.0
    %1538 = vmatpush2.msra.mxu0 0.0
    %1539 = vmatprep.subr.mxu0 0.0
    %1540 = vmatpush2.msra.mxu0 0.0
    %1541 = vmatprep.subr.mxu0 0.0
    %1542 = vmatpush2.msra.mxu0 0.0
    %1543 = vmatprep.subr.mxu0 0.0
    %1544 = vmatpush2.msra.mxu0 0.0
    %1545 = vmatprep.subr.mxu0 0.0
    %1546 = vmatpush2.msra.mxu0 0.0
    %1547 = vmatprep.subr.mxu0 0.0
    %1548 = vmatpush2.msra.mxu0 0.0
    %1549 = vmatprep.subr.mxu0 0.0
    %1550 = vmatpush2.msra.mxu0 0.0
    %1551 = vmatprep.subr.mxu0 0.0
    %1552 = vmatpush2.msra.mxu0 0.0
    %1553 = vmatprep.subr.mxu0 0.0
    %1554 = vmatpush2.msra.mxu0 0.0
    %1555 = vmatprep.mubr.f32.mxu0 0.0
    %1556 = vmatmul.mubr.f32.gmra.mxu0 %v1416
    %v1557 = vpop.f32.mrf.mxu0
    %v1558 = vadd.f32 0.0, %v1557
    %v1559 = vpop.f32.mrf.mxu0
    %1560 = vmatprep.mubr.f32.mxu0 0.0
    %1561 = vmatmul.mubr.f32.gmra.mxu0 %v1417
    %v1562 = vpop.f32.mrf.mxu0
    %v1563 = vadd.f32 0.0, %v1562
    %v1564 = vpop.f32.mrf.mxu0
    %1565 = vdwg.mxu0
    %1566 = vmatprep.subr.mxu0 0.0
    %1567 = vmatpush1.msra.mxu0 %v1474
    %1568 = vmatprep.subr.mxu0 0.0
    %1569 = vmatpush1.msra.mxu0 %v1473
    %1570 = vmatprep.subr.mxu0 0.0
    %1571 = vmatpush1.msra.mxu0 %v1472
    %1572 = vmatprep.subr.mxu0 0.0
    %1573 = vmatpush1.msra.mxu0 %v1471
    %1574 = vmatprep.subr.mxu0 0.0
    %1575 = vmatpush1.msra.mxu0 %v1470
    %1576 = vmatprep.subr.mxu0 0.0
    %1577 = vmatpush1.msra.mxu0 %v1469
    %1578 = vmatprep.subr.mxu0 0.0
    %1579 = vmatpush1.msra.mxu0 %v1468
    %1580 = vmatprep.subr.mxu0 0.0
    %1581 = vmatpush1.msra.mxu0 %v1467
    %1582 = vmatprep.subr.mxu0 0.0
    %1583 = vmatpush1.msra.mxu0 %v1466
    %1584 = vmatprep.subr.mxu0 0.0
    %1585 = vmatpush1.msra.mxu0 %v1465
    %1586 = vmatprep.subr.mxu0 0.0
    %1587 = vmatpush1.msra.mxu0 %v1464
    %1588 = vmatprep.subr.mxu0 0.0
    %1589 = vmatpush1.msra.mxu0 %v1463
    %1590 = vmatprep.subr.mxu0 0.0
    %1591 = vmatpush1.msra.mxu0 %v1462
    %1592 = vmatprep.subr.mxu0 0.0
    %1593 = vmatpush1.msra.mxu0 %v1461
    %1594 = vmatprep.subr.mxu0 0.0
    %1595 = vmatpush1.msra.mxu0 %v1460
    %1596 = vmatprep.subr.mxu0 0.0
    %1597 = vmatpush1.msra.mxu0 %v1459
    %1598 = vmatprep.subr.mxu0 0.0
    %1599 = vmatpush2.msra.mxu0 0.0
    %1600 = vmatprep.subr.mxu0 0.0
    %1601 = vmatpush2.msra.mxu0 0.0
    %1602 = vmatprep.subr.mxu0 0.0
    %1603 = vmatpush2.msra.mxu0 0.0
    %1604 = vmatprep.subr.mxu0 0.0
    %1605 = vmatpush2.msra.mxu0 0.0
    %1606 = vmatprep.subr.mxu0 0.0
    %1607 = vmatpush2.msra.mxu0 0.0
    %1608 = vmatprep.subr.mxu0 0.0
    %1609 = vmatpush2.msra.mxu0 0.0
    %1610 = vmatprep.subr.mxu0 0.0
    %1611 = vmatpush2.msra.mxu0 0.0
    %1612 = vmatprep.subr.mxu0 0.0
    %1613 = vmatpush2.msra.mxu0 0.0
    %1614 = vmatprep.subr.mxu0 0.0
    %1615 = vmatpush2.msra.mxu0 0.0
    %1616 = vmatprep.subr.mxu0 0.0
    %1617 = vmatpush2.msra.mxu0 0.0
    %1618 = vmatprep.subr.mxu0 0.0
    %1619 = vmatpush2.msra.mxu0 0.0
    %1620 = vmatprep.subr.mxu0 0.0
    %1621 = vmatpush2.msra.mxu0 0.0
    %1622 = vmatprep.subr.mxu0 0.0
    %1623 = vmatpush2.msra.mxu0 0.0
    %1624 = vmatprep.subr.mxu0 0.0
    %1625 = vmatpush2.msra.mxu0 0.0
    %1626 = vmatprep.subr.mxu0 0.0
    %1627 = vmatpush2.msra.mxu0 0.0
    %1628 = vmatprep.subr.mxu0 0.0
    %1629 = vmatpush2.msra.mxu0 0.0
    %1630 = vmatprep.mubr.f32.mxu0 0.0
    %1631 = vmatmul.mubr.f32.gmra.mxu0 %v1396
    %v1632 = vpop.f32.mrf.mxu0
    %v1633 = vadd.f32 %v1558, %v1632
    %v1634 = vpop.f32.mrf.mxu0
    %1635 = vmatprep.mubr.f32.mxu0 0.0
    %1636 = vmatmul.mubr.f32.gmra.mxu0 %v1397
    %v1637 = vpop.f32.mrf.mxu0
    %v1638 = vadd.f32 %v1563, %v1637
    %v1639 = vpop.f32.mrf.mxu0
    %1640 = vdwg.mxu0
    %v1641 = vld [vmem:[#allocation7 + $0x100] sm:$0xff]
    %v1642 = vld [vmem:[#allocation7 + $0x108] sm:$0xff]
    %v1643 = vld [vmem:[#allocation7 + $0x110] sm:$0xff]
    %v1644 = vld [vmem:[#allocation7 + $0x118] sm:$0xff]
    %v1645 = vld [vmem:[#allocation7 + $0x120] sm:$0xff]
    %v1646 = vld [vmem:[#allocation7 + $0x128] sm:$0xff]
    %v1647 = vld [vmem:[#allocation7 + $0x130] sm:$0xff]
    %v1648 = vld [vmem:[#allocation7 + $0x138] sm:$0xff]
    %v1649 = vld [vmem:[#allocation7 + $0x140] sm:$0xff]
    %v1650 = vld [vmem:[#allocation7 + $0x148] sm:$0xff]
    %v1651 = vld [vmem:[#allocation7 + $0x150] sm:$0xff]
    %v1652 = vld [vmem:[#allocation7 + $0x158] sm:$0xff]
    %v1653 = vld [vmem:[#allocation7 + $0x160] sm:$0xff]
    %v1654 = vld [vmem:[#allocation7 + $0x168] sm:$0xff]
    %v1655 = vld [vmem:[#allocation7 + $0x170] sm:$0xff]
    %v1656 = vld [vmem:[#allocation7 + $0x178] sm:$0xff]
    %1657 = vmatprep.subr.mxu0 0.0
    %1658 = vmatpush1.msra.mxu0 %v1656
    %1659 = vmatprep.subr.mxu0 0.0
    %1660 = vmatpush1.msra.mxu0 %v1655
    %1661 = vmatprep.subr.mxu0 0.0
    %1662 = vmatpush1.msra.mxu0 %v1654
    %1663 = vmatprep.subr.mxu0 0.0
    %1664 = vmatpush1.msra.mxu0 %v1653
    %1665 = vmatprep.subr.mxu0 0.0
    %1666 = vmatpush1.msra.mxu0 %v1652
    %1667 = vmatprep.subr.mxu0 0.0
    %1668 = vmatpush1.msra.mxu0 %v1651
    %1669 = vmatprep.subr.mxu0 0.0
    %1670 = vmatpush1.msra.mxu0 %v1650
    %1671 = vmatprep.subr.mxu0 0.0
    %1672 = vmatpush1.msra.mxu0 %v1649
    %1673 = vmatprep.subr.mxu0 0.0
    %1674 = vmatpush1.msra.mxu0 %v1648
    %1675 = vmatprep.subr.mxu0 0.0
    %1676 = vmatpush1.msra.mxu0 %v1647
    %1677 = vmatprep.subr.mxu0 0.0
    %1678 = vmatpush1.msra.mxu0 %v1646
    %1679 = vmatprep.subr.mxu0 0.0
    %1680 = vmatpush1.msra.mxu0 %v1645
    %1681 = vmatprep.subr.mxu0 0.0
    %1682 = vmatpush1.msra.mxu0 %v1644
    %1683 = vmatprep.subr.mxu0 0.0
    %1684 = vmatpush1.msra.mxu0 %v1643
    %1685 = vmatprep.subr.mxu0 0.0
    %1686 = vmatpush1.msra.mxu0 %v1642
    %1687 = vmatprep.subr.mxu0 0.0
    %1688 = vmatpush1.msra.mxu0 %v1641
    %1689 = vmatprep.subr.mxu0 0.0
    %1690 = vmatpush2.msra.mxu0 0.0
    %1691 = vmatprep.subr.mxu0 0.0
    %1692 = vmatpush2.msra.mxu0 0.0
    %1693 = vmatprep.subr.mxu0 0.0
    %1694 = vmatpush2.msra.mxu0 0.0
    %1695 = vmatprep.subr.mxu0 0.0
    %1696 = vmatpush2.msra.mxu0 0.0
    %1697 = vmatprep.subr.mxu0 0.0
    %1698 = vmatpush2.msra.mxu0 0.0
    %1699 = vmatprep.subr.mxu0 0.0
    %1700 = vmatpush2.msra.mxu0 0.0
    %1701 = vmatprep.subr.mxu0 0.0
    %1702 = vmatpush2.msra.mxu0 0.0
    %1703 = vmatprep.subr.mxu0 0.0
    %1704 = vmatpush2.msra.mxu0 0.0
    %1705 = vmatprep.subr.mxu0 0.0
    %1706 = vmatpush2.msra.mxu0 0.0
    %1707 = vmatprep.subr.mxu0 0.0
    %1708 = vmatpush2.msra.mxu0 0.0
    %1709 = vmatprep.subr.mxu0 0.0
    %1710 = vmatpush2.msra.mxu0 0.0
    %1711 = vmatprep.subr.mxu0 0.0
    %1712 = vmatpush2.msra.mxu0 0.0
    %1713 = vmatprep.subr.mxu0 0.0
    %1714 = vmatpush2.msra.mxu0 0.0
    %1715 = vmatprep.subr.mxu0 0.0
    %1716 = vmatpush2.msra.mxu0 0.0
    %1717 = vmatprep.subr.mxu0 0.0
    %1718 = vmatpush2.msra.mxu0 0.0
    %1719 = vmatprep.subr.mxu0 0.0
    %1720 = vmatpush2.msra.mxu0 0.0
    %1721 = vmatprep.mubr.f32.mxu0 0.0
    %1722 = vmatmul.mubr.f32.gmra.mxu0 %v1436
    %v1723 = vpop.f32.mrf.mxu0
    %v1724 = vadd.f32 0.0, %v1723
    %v1725 = vpop.f32.mrf.mxu0
    %1726 = vmatprep.mubr.f32.mxu0 0.0
    %1727 = vmatmul.mubr.f32.gmra.mxu0 %v1437
    %v1728 = vpop.f32.mrf.mxu0
    %v1729 = vadd.f32 0.0, %v1728
    %v1730 = vpop.f32.mrf.mxu0
    %1731 = vdwg.mxu0
    %v1732 = vadd.f32 %v1633, %v1724
    %v1733 = vadd.f32 %v1638, %v1729
    %v1734 = vld [vmem:[#allocation7 + $0x180] sm:$0xff]
    %v1735 = vld [vmem:[#allocation7 + $0x188] sm:$0xff]
    %v1736 = vld [vmem:[#allocation7 + $0x190] sm:$0xff]
    %v1737 = vld [vmem:[#allocation7 + $0x198] sm:$0xff]
    %v1738 = vld [vmem:[#allocation7 + $0x1a0] sm:$0xff]
    %v1739 = vld [vmem:[#allocation7 + $0x1a8] sm:$0xff]
    %v1740 = vld [vmem:[#allocation7 + $0x1b0] sm:$0xff]
    %v1741 = vld [vmem:[#allocation7 + $0x1b8] sm:$0xff]
    %v1742 = vld [vmem:[#allocation7 + $0x1c0] sm:$0xff]
    %v1743 = vld [vmem:[#allocation7 + $0x1c8] sm:$0xff]
    %v1744 = vld [vmem:[#allocation7 + $0x1d0] sm:$0xff]
    %v1745 = vld [vmem:[#allocation7 + $0x1d8] sm:$0xff]
    %v1746 = vld [vmem:[#allocation7 + $0x1e0] sm:$0xff]
    %v1747 = vld [vmem:[#allocation7 + $0x1e8] sm:$0xff]
    %v1748 = vld [vmem:[#allocation7 + $0x1f0] sm:$0xff]
    %v1749 = vld [vmem:[#allocation7 + $0x1f8] sm:$0xff]
    %1750 = vmatprep.subr.mxu0 0.0
    %1751 = vmatpush1.msra.mxu0 %v1749
    %1752 = vmatprep.subr.mxu0 0.0
    %1753 = vmatpush1.msra.mxu0 %v1748
    %1754 = vmatprep.subr.mxu0 0.0
    %1755 = vmatpush1.msra.mxu0 %v1747
    %1756 = vmatprep.subr.mxu0 0.0
    %1757 = vmatpush1.msra.mxu0 %v1746
    %1758 = vmatprep.subr.mxu0 0.0
    %1759 = vmatpush1.msra.mxu0 %v1745
    %1760 = vmatprep.subr.mxu0 0.0
    %1761 = vmatpush1.msra.mxu0 %v1744
    %1762 = vmatprep.subr.mxu0 0.0
    %1763 = vmatpush1.msra.mxu0 %v1743
    %1764 = vmatprep.subr.mxu0 0.0
    %1765 = vmatpush1.msra.mxu0 %v1742
    %1766 = vmatprep.subr.mxu0 0.0
    %1767 = vmatpush1.msra.mxu0 %v1741
    %1768 = vmatprep.subr.mxu0 0.0
    %1769 = vmatpush1.msra.mxu0 %v1740
    %1770 = vmatprep.subr.mxu0 0.0
    %1771 = vmatpush1.msra.mxu0 %v1739
    %1772 = vmatprep.subr.mxu0 0.0
    %1773 = vmatpush1.msra.mxu0 %v1738
    %1774 = vmatprep.subr.mxu0 0.0
    %1775 = vmatpush1.msra.mxu0 %v1737
    %1776 = vmatprep.subr.mxu0 0.0
    %1777 = vmatpush1.msra.mxu0 %v1736
    %1778 = vmatprep.subr.mxu0 0.0
    %1779 = vmatpush1.msra.mxu0 %v1735
    %1780 = vmatprep.subr.mxu0 0.0
    %1781 = vmatpush1.msra.mxu0 %v1734
    %1782 = vmatprep.subr.mxu0 0.0
    %1783 = vmatpush2.msra.mxu0 0.0
    %1784 = vmatprep.subr.mxu0 0.0
    %1785 = vmatpush2.msra.mxu0 0.0
    %1786 = vmatprep.subr.mxu0 0.0
    %1787 = vmatpush2.msra.mxu0 0.0
    %1788 = vmatprep.subr.mxu0 0.0
    %1789 = vmatpush2.msra.mxu0 0.0
    %1790 = vmatprep.subr.mxu0 0.0
    %1791 = vmatpush2.msra.mxu0 0.0
    %1792 = vmatprep.subr.mxu0 0.0
    %1793 = vmatpush2.msra.mxu0 0.0
    %1794 = vmatprep.subr.mxu0 0.0
    %1795 = vmatpush2.msra.mxu0 0.0
    %1796 = vmatprep.subr.mxu0 0.0
    %1797 = vmatpush2.msra.mxu0 0.0
    %1798 = vmatprep.subr.mxu0 0.0
    %1799 = vmatpush2.msra.mxu0 0.0
    %1800 = vmatprep.subr.mxu0 0.0
    %1801 = vmatpush2.msra.mxu0 0.0
    %1802 = vmatprep.subr.mxu0 0.0
    %1803 = vmatpush2.msra.mxu0 0.0
    %1804 = vmatprep.subr.mxu0 0.0
    %1805 = vmatpush2.msra.mxu0 0.0
    %1806 = vmatprep.subr.mxu0 0.0
    %1807 = vmatpush2.msra.mxu0 0.0
    %1808 = vmatprep.subr.mxu0 0.0
    %1809 = vmatpush2.msra.mxu0 0.0
    %1810 = vmatprep.subr.mxu0 0.0
    %1811 = vmatpush2.msra.mxu0 0.0
    %1812 = vmatprep.subr.mxu0 0.0
    %1813 = vmatpush2.msra.mxu0 0.0
    %1814 = vmatprep.mubr.f32.mxu0 0.0
    %1815 = vmatmul.mubr.f32.gmra.mxu0 %v1456
    %v1816 = vpop.f32.mrf.mxu0
    %v1817 = vadd.f32 0.0, %v1816
    %v1818 = vpop.f32.mrf.mxu0
    %1819 = vmatprep.mubr.f32.mxu0 0.0
    %1820 = vmatmul.mubr.f32.gmra.mxu0 %v1457
    %v1821 = vpop.f32.mrf.mxu0
    %v1822 = vadd.f32 0.0, %v1821
    %v1823 = vpop.f32.mrf.mxu0
    %1824 = vdwg.mxu0
    %v1825 = vadd.f32 %v1732, %v1817
    %v1826 = vadd.f32 %v1733, %v1822
    %v1827 = vlaneseq
    %v1828 = vshrl.u32 %v1827, 7
    %v1829 = vsub.s32 0, %v1828
    %v1830 = vrot.slane %v1458, %v1829
    %v1831 = vadd.f32 %v1825, %v1830
    %v1832 = vadd.f32 %v1826, %v1830
    %v1833 = vld [vmem:[#allocation7 + $0x200] sm:$0xff]
    %v1834 = vld [vmem:[#allocation7 + $0x208] sm:$0xff]
    %v1835 = vld [vmem:[#allocation7 + $0x218] sm:$0xff]
    %v1836 = vld [vmem:[#allocation7 + $0x220] sm:$0xff]
    %v1837 = vld [vmem:[#allocation7 + $0x228] sm:$0xff]
    %v1838 = vld [vmem:[#allocation7 + $0x230] sm:$0xff]
    %v1839 = vld [vmem:[#allocation7 + $0x238] sm:$0x1]
    %vm1840 = vcmask 130048
    %v1842 = vsel %vm1840, 0.0, 0
    %1844 = vmatprep.subr.mxu0 0.0
    %1845 = vmatpush1.msra.mxu0 0.0
    %1846 = vmatprep.subr.mxu0 0.0
    %1847 = vmatpush1.msra.mxu0 0.0
    %1848 = vmatprep.subr.mxu0 0.0
    %1849 = vmatpush1.msra.mxu0 0.0
    %1850 = vmatprep.subr.mxu0 0.0
    %1851 = vmatpush1.msra.mxu0 0.0
    %1852 = vmatprep.subr.mxu0 0.0
    %1853 = vmatpush1.msra.mxu0 0.0
    %1854 = vmatprep.subr.mxu0 0.0
    %1855 = vmatpush1.msra.mxu0 0.0
    %1856 = vmatprep.subr.mxu0 0.0
    %1857 = vmatpush1.msra.mxu0 0.0
    %1858 = vmatprep.subr.mxu0 0.0
    %1859 = vmatpush1.msra.mxu0 0.0
    %1860 = vmatprep.subr.mxu0 0.0
    %1861 = vmatpush1.msra.mxu0 0.0
    %1862 = vmatprep.subr.mxu0 0.0
    %1863 = vmatpush1.msra.mxu0 0.0
    %1864 = vmatprep.subr.mxu0 0.0
    %1865 = vmatpush1.msra.mxu0 0.0
    %1866 = vmatprep.subr.mxu0 0.0
    %1867 = vmatpush1.msra.mxu0 0.0
    %1868 = vmatprep.subr.mxu0 0.0
    %1869 = vmatpush1.msra.mxu0 0.0
    %1870 = vmatprep.subr.mxu0 0.0
    %1871 = vmatpush1.msra.mxu0 0.0
    %1872 = vmatprep.subr.mxu0 0.0
    %1873 = vmatpush1.msra.mxu0 %v1834
    %1874 = vmatprep.subr.mxu0 0.0
    %1875 = vmatpush1.msra.mxu0 %v1833
    %1876 = vmatprep.subr.mxu0 0.0
    %1877 = vmatpush2.msra.mxu0 0.0
    %1878 = vmatprep.subr.mxu0 0.0
    %1879 = vmatpush2.msra.mxu0 0.0
    %1880 = vmatprep.subr.mxu0 0.0
    %1881 = vmatpush2.msra.mxu0 0.0
    %1882 = vmatprep.subr.mxu0 0.0
    %1883 = vmatpush2.msra.mxu0 0.0
    %1884 = vmatprep.subr.mxu0 0.0
    %1885 = vmatpush2.msra.mxu0 0.0
    %1886 = vmatprep.subr.mxu0 0.0
    %1887 = vmatpush2.msra.mxu0 0.0
    %1888 = vmatprep.subr.mxu0 0.0
    %1889 = vmatpush2.msra.mxu0 0.0
    %1890 = vmatprep.subr.mxu0 0.0
    %1891 = vmatpush2.msra.mxu0 0.0
    %1892 = vmatprep.subr.mxu0 0.0
    %1893 = vmatpush2.msra.mxu0 0.0
    %1894 = vmatprep.subr.mxu0 0.0
    %1895 = vmatpush2.msra.mxu0 0.0
    %1896 = vmatprep.subr.mxu0 0.0
    %1897 = vmatpush2.msra.mxu0 0.0
    %1898 = vmatprep.subr.mxu0 0.0
    %1899 = vmatpush2.msra.mxu0 0.0
    %1900 = vmatprep.subr.mxu0 0.0
    %1901 = vmatpush2.msra.mxu0 0.0
    %1902 = vmatprep.subr.mxu0 0.0
    %1903 = vmatpush2.msra.mxu0 0.0
    %1904 = vmatprep.subr.mxu0 0.0
    %1905 = vmatpush2.msra.mxu0 0.0
    %1906 = vmatprep.subr.mxu0 0.0
    %1907 = vmatpush2.msra.mxu0 0.0
    %1908 = vmatprep.mubr.f32.mxu0 0.0
    %1909 = vmatmul.mubr.f32.gmra.mxu0 %v1842
    %v1910 = vpop.f32.mrf.mxu0
    %v1911 = vadd.f32 0.0, %v1910
    %v1912 = vpop.f32.mrf.mxu0
    %1913 = vdwg.mxu0
    %v1915 = vrot.slane %v1911, 1
    %v1918 = vadd.f32 %v1831, %v1911
    %v1919 = vadd.f32 %v1832, %v1915
    %v1920 = vxor.u32 %v1918, 2147483648
    %v1921 = vxor.u32 %v1919, 2147483648
    %v1922 = vmul.f32 %v1920, 1.442695
    %v1923 = vpow.pop %v1922
    %v1924 = vmul.f32 %v1921, 1.442695
    %v1925 = vpow.pop %v1924
    %v1926 = vadd.f32 %v1923, 1.0
    %v1927 = vadd.f32 %v1925, 1.0
    %v1928 = vrcp.pop %v1926
    %v1929 = vmul.f32 1.0, %v1928
    %v1930 = vrcp.pop %v1927
    %v1931 = vmul.f32 1.0, %v1930
    %v1932 = vtanh.pop %v1918
    %v1933 = vtanh.pop %v1919
    %v1934 = vmul.f32 %v1929, 0.0
    %v1935 = vmul.f32 %v1931, 0.0
    %1938 = vrot.lane.b32.xlu0 %v1932, 80
    %v1939 = vpop.permute.xlu0 %1938
    %1940 = vrot.lane.b32.xlu0 %v1933, 80
    %v1941 = vpop.permute.xlu0 %1940
    %v1944 = vmul.f32 %v1929, %v1939
    %v1945 = vmul.f32 %v1931, %v1941
    %1948 = vrot.lane.b32.xlu0 %v1944, 16
    %v1949 = vpop.permute.xlu0 %1948
    %1950 = vrot.lane.b32.xlu0 %v1945, 16
    %v1951 = vpop.permute.xlu0 %1950
    %v1954 = vadd.f32 %v1934, %v1949
    %v1955 = vadd.f32 %v1935, %v1951
    %v1956 = vtanh.pop %v1954
    %v1957 = vtanh.pop %v1955
    %1960 = vrot.lane.b32.xlu0 %v1956, 16
    %v1961 = vpop.permute.xlu0 %1960
    %1962 = vrot.lane.b32.xlu0 %v1957, 16
    %v1963 = vpop.permute.xlu0 %1962
    %v1966 = vmul.f32 %v1929, %v1961
    %v1967 = vmul.f32 %v1931, %v1963
    %v1970 = vrot.slane %v1967, 7
    %vm1971 = vcmask 1041409
    %v1972 = vsel %vm1971, %v1970, %v1966
    %1973 = vrot.lane.b32.xlu0 %v1972, 96
    %v1974 = vpop.permute.xlu0 %1973
    %vm1976 = vcmask 123904
    %1977 = vst.msk [vmem:[#allocation2] sm:$0x3] %vm1976, %v1974
    %vm1978 = vcmask 255104
    %1979 = vst.msk [vmem:[#allocation2] sm:$0x3] %vm1978, 0.0
    %v1980 = vld [vmem:[#allocation2] sm:$0x3]
    %vm1981 = vcmask 261120
    %v1983 = vsel %vm1981, %v1980, 0
    %1985 = vmatprep.subr.mxu0 0.0
    %1986 = vmatpush1.msra.mxu0 0.0
    %1987 = vmatprep.subr.mxu0 0.0
    %1988 = vmatpush1.msra.mxu0 0.0
    %1989 = vmatprep.subr.mxu0 0.0
    %1990 = vmatpush1.msra.mxu0 0.0
    %1991 = vmatprep.subr.mxu0 0.0
    %1992 = vmatpush1.msra.mxu0 0.0
    %1993 = vmatprep.subr.mxu0 0.0
    %1994 = vmatpush1.msra.mxu0 0.0
    %1995 = vmatprep.subr.mxu0 0.0
    %1996 = vmatpush1.msra.mxu0 0.0
    %1997 = vmatprep.subr.mxu0 0.0
    %1998 = vmatpush1.msra.mxu0 0.0
    %1999 = vmatprep.subr.mxu0 0.0
    %2000 = vmatpush1.msra.mxu0 0.0
    %2001 = vmatprep.subr.mxu0 0.0
    %2002 = vmatpush1.msra.mxu0 0.0
    %2003 = vmatprep.subr.mxu0 0.0
    %2004 = vmatpush1.msra.mxu0 0.0
    %2005 = vmatprep.subr.mxu0 0.0
    %2006 = vmatpush1.msra.mxu0 0.0
    %2007 = vmatprep.subr.mxu0 0.0
    %2008 = vmatpush1.msra.mxu0 0.0
    %2009 = vmatprep.subr.mxu0 0.0
    %2010 = vmatpush1.msra.mxu0 %v1838
    %2011 = vmatprep.subr.mxu0 0.0
    %2012 = vmatpush1.msra.mxu0 %v1837
    %2013 = vmatprep.subr.mxu0 0.0
    %2014 = vmatpush1.msra.mxu0 %v1836
    %2015 = vmatprep.subr.mxu0 0.0
    %2016 = vmatpush1.msra.mxu0 %v1835
    %2017 = vmatprep.subr.mxu0 0.0
    %2018 = vmatpush2.msra.mxu0 0.0
    %2019 = vmatprep.subr.mxu0 0.0
    %2020 = vmatpush2.msra.mxu0 0.0
    %2021 = vmatprep.subr.mxu0 0.0
    %2022 = vmatpush2.msra.mxu0 0.0
    %2023 = vmatprep.subr.mxu0 0.0
    %2024 = vmatpush2.msra.mxu0 0.0
    %2025 = vmatprep.subr.mxu0 0.0
    %2026 = vmatpush2.msra.mxu0 0.0
    %2027 = vmatprep.subr.mxu0 0.0
    %2028 = vmatpush2.msra.mxu0 0.0
    %2029 = vmatprep.subr.mxu0 0.0
    %2030 = vmatpush2.msra.mxu0 0.0
    %2031 = vmatprep.subr.mxu0 0.0
    %2032 = vmatpush2.msra.mxu0 0.0
    %2033 = vmatprep.subr.mxu0 0.0
    %2034 = vmatpush2.msra.mxu0 0.0
    %2035 = vmatprep.subr.mxu0 0.0
    %2036 = vmatpush2.msra.mxu0 0.0
    %2037 = vmatprep.subr.mxu0 0.0
    %2038 = vmatpush2.msra.mxu0 0.0
    %2039 = vmatprep.subr.mxu0 0.0
    %2040 = vmatpush2.msra.mxu0 0.0
    %2041 = vmatprep.subr.mxu0 0.0
    %2042 = vmatpush2.msra.mxu0 0.0
    %2043 = vmatprep.subr.mxu0 0.0
    %2044 = vmatpush2.msra.mxu0 0.0
    %2045 = vmatprep.subr.mxu0 0.0
    %2046 = vmatpush2.msra.mxu0 0.0
    %2047 = vmatprep.subr.mxu0 0.0
    %2048 = vmatpush2.msra.mxu0 0.0
    %2049 = vmatprep.mubr.f32.mxu0 0.0
    %2050 = vmatmul.mubr.f32.gmra.mxu0 %v1983
    %v2051 = vpop.f32.mrf.mxu0
    %v2052 = vadd.f32 0.0, %v2051
    %v2053 = vpop.f32.mrf.mxu0
    %2054 = vdwg.mxu0
    %v2055 = vlaneseq
    %v2056 = vshrl.u32 %v2055, 7
    %v2057 = vsub.s32 0, %v2056
    %v2058 = vrot.slane %v1839, %v2057
    %v2059 = vadd.f32 %v2058, %v2052
    %v2060 = vxor.u32 %v2059, 2147483648
    %v2061 = vmul.f32 %v2060, 1.442695
    %v2062 = vpow.pop %v2061
    %v2063 = vadd.f32 %v2062, 1.0
    %v2064 = vrcp.pop %v2063
    %v2065 = vmul.f32 1.0, %v2064
    %v2066 = vtanh.pop %v2059
    %v2067 = vmul.f32 %v2065, 0.0
    %2069 = vrot.lane.b32.xlu0 %v2066, 80
    %v2070 = vpop.permute.xlu0 %2069
    %v2072 = vmul.f32 %v2065, %v2070
    %2074 = vrot.lane.b32.xlu0 %v2072, 16
    %v2075 = vpop.permute.xlu0 %2074
    %v2077 = vadd.f32 %v2067, %v2075
    %v2078 = vtanh.pop %v2077
    %2080 = vrot.lane.b32.xlu0 %v2078, 16
    %v2081 = vpop.permute.xlu0 %2080
    %v2083 = vmul.f32 %v2065, %v2081
    %2085 = vrot.lane.b32.xlu0 %v2083, 96
    %v2086 = vpop.permute.xlu0 %2085
    %2088 = vst.msk [vmem:[#allocation3] sm:$0x3] %vm1976, %v2086
    %v2089 = vsel %vm1840, %v1974, 0
    %2091 = vmatprep.subr.mxu0 0.0
    %2092 = vmatpush1.msra.mxu0 0.0
    %2093 = vmatprep.subr.mxu0 0.0
    %2094 = vmatpush1.msra.mxu0 0.0
    %2095 = vmatprep.subr.mxu0 0.0
    %2096 = vmatpush1.msra.mxu0 0.0
    %2097 = vmatprep.subr.mxu0 0.0
    %2098 = vmatpush1.msra.mxu0 0.0
    %2099 = vmatprep.subr.mxu0 0.0
    %2100 = vmatpush1.msra.mxu0 0.0
    %2101 = vmatprep.subr.mxu0 0.0
    %2102 = vmatpush1.msra.mxu0 0.0
    %2103 = vmatprep.subr.mxu0 0.0
    %2104 = vmatpush1.msra.mxu0 0.0
    %2105 = vmatprep.subr.mxu0 0.0
    %2106 = vmatpush1.msra.mxu0 0.0
    %2107 = vmatprep.subr.mxu0 0.0
    %2108 = vmatpush1.msra.mxu0 0.0
    %2109 = vmatprep.subr.mxu0 0.0
    %2110 = vmatpush1.msra.mxu0 0.0
    %2111 = vmatprep.subr.mxu0 0.0
    %2112 = vmatpush1.msra.mxu0 0.0
    %2113 = vmatprep.subr.mxu0 0.0
    %2114 = vmatpush1.msra.mxu0 0.0
    %2115 = vmatprep.subr.mxu0 0.0
    %2116 = vmatpush1.msra.mxu0 0.0
    %2117 = vmatprep.subr.mxu0 0.0
    %2118 = vmatpush1.msra.mxu0 0.0
    %2119 = vmatprep.subr.mxu0 0.0
    %2120 = vmatpush1.msra.mxu0 %v1834
    %2121 = vmatprep.subr.mxu0 0.0
    %2122 = vmatpush1.msra.mxu0 %v1833
    %2123 = vmatprep.subr.mxu0 0.0
    %2124 = vmatpush2.msra.mxu0 0.0
    %2125 = vmatprep.subr.mxu0 0.0
    %2126 = vmatpush2.msra.mxu0 0.0
    %2127 = vmatprep.subr.mxu0 0.0
    %2128 = vmatpush2.msra.mxu0 0.0
    %2129 = vmatprep.subr.mxu0 0.0
    %2130 = vmatpush2.msra.mxu0 0.0
    %2131 = vmatprep.subr.mxu0 0.0
    %2132 = vmatpush2.msra.mxu0 0.0
    %2133 = vmatprep.subr.mxu0 0.0
    %2134 = vmatpush2.msra.mxu0 0.0
    %2135 = vmatprep.subr.mxu0 0.0
    %2136 = vmatpush2.msra.mxu0 0.0
    %2137 = vmatprep.subr.mxu0 0.0
    %2138 = vmatpush2.msra.mxu0 0.0
    %2139 = vmatprep.subr.mxu0 0.0
    %2140 = vmatpush2.msra.mxu0 0.0
    %2141 = vmatprep.subr.mxu0 0.0
    %2142 = vmatpush2.msra.mxu0 0.0
    %2143 = vmatprep.subr.mxu0 0.0
    %2144 = vmatpush2.msra.mxu0 0.0
    %2145 = vmatprep.subr.mxu0 0.0
    %2146 = vmatpush2.msra.mxu0 0.0
    %2147 = vmatprep.subr.mxu0 0.0
    %2148 = vmatpush2.msra.mxu0 0.0
    %2149 = vmatprep.subr.mxu0 0.0
    %2150 = vmatpush2.msra.mxu0 0.0
    %2151 = vmatprep.subr.mxu0 0.0
    %2152 = vmatpush2.msra.mxu0 0.0
    %2153 = vmatprep.subr.mxu0 0.0
    %2154 = vmatpush2.msra.mxu0 0.0
    %2155 = vmatprep.mubr.f32.mxu0 0.0
    %2156 = vmatmul.mubr.f32.gmra.mxu0 %v2089
    %v2157 = vpop.f32.mrf.mxu0
    %v2158 = vadd.f32 0.0, %v2157
    %v2159 = vpop.f32.mrf.mxu0
    %2160 = vdwg.mxu0
    %v2162 = vrot.slane %v2158, 7
    %v2165 = vadd.f32 %v1831, %v2162
    %v2166 = vadd.f32 %v1832, %v2158
    %v2167 = vxor.u32 %v2165, 2147483648
    %v2168 = vxor.u32 %v2166, 2147483648
    %v2169 = vmul.f32 %v2167, 1.442695
    %v2170 = vpow.pop %v2169
    %v2171 = vmul.f32 %v2168, 1.442695
    %v2172 = vpow.pop %v2171
    %v2173 = vadd.f32 %v2170, 1.0
    %v2174 = vadd.f32 %v2172, 1.0
    %v2175 = vrcp.pop %v2173
    %v2176 = vmul.f32 1.0, %v2175
    %v2177 = vrcp.pop %v2174
    %v2178 = vmul.f32 1.0, %v2177
    %v2179 = vtanh.pop %v2165
    %v2180 = vtanh.pop %v2166
    %v2183 = vrot.slane %v1954, 7
    %v2184 = vrot.slane %v1955, 7
    %v2187 = vmul.f32 %v2176, %v2183
    %v2188 = vmul.f32 %v2178, %v2184
    %2191 = vrot.lane.b32.xlu0 %v2179, 80
    %v2192 = vpop.permute.xlu0 %2191
    %2193 = vrot.lane.b32.xlu0 %v2180, 80
    %v2194 = vpop.permute.xlu0 %2193
    %v2197 = vmul.f32 %v2176, %v2192
    %v2198 = vmul.f32 %v2178, %v2194
    %2201 = vrot.lane.b32.xlu0 %v2197, 16
    %v2202 = vpop.permute.xlu0 %2201
    %2203 = vrot.lane.b32.xlu0 %v2198, 16
    %v2204 = vpop.permute.xlu0 %2203
    %v2207 = vadd.f32 %v2187, %v2202
    %v2208 = vadd.f32 %v2188, %v2204
    %v2209 = vtanh.pop %v2207
    %v2210 = vtanh.pop %v2208
    %2213 = vrot.lane.b32.xlu0 %v2209, 16
    %v2214 = vpop.permute.xlu0 %2213
    %2215 = vrot.lane.b32.xlu0 %v2210, 16
    %v2216 = vpop.permute.xlu0 %2215
    %v2219 = vmul.f32 %v2176, %v2214
    %v2220 = vmul.f32 %v2178, %v2216
    %v2223 = vrot.slane %v2220, 7
    %vm2224 = vcmask 1042434
    %v2225 = vsel %vm2224, %v2223, %v2219
    %2226 = vrot.lane.b32.xlu0 %v2225, 96
    %v2227 = vpop.permute.xlu0 %2226
    %vm2229 = vcmask 124929
    %2230 = vst.msk [vmem:[#allocation2 - $0x1] sm:$0x6] %vm2229, %v2227
    %2231 = vrot.lane.b32.xlu0 %v2083, 112
    %v2232 = vpop.permute.xlu0 %2231
    %2234 = vst.msk [vmem:[#allocation2] sm:$0x3] %vm1978, %v2232
    %v2235 = vld [vmem:[#allocation2] sm:$0x3]
    %v2237 = vsel %vm1981, %v2235, 0
    %2239 = vmatprep.subr.mxu0 0.0
    %2240 = vmatpush1.msra.mxu0 0.0
    %2241 = vmatprep.subr.mxu0 0.0
    %2242 = vmatpush1.msra.mxu0 0.0
    %2243 = vmatprep.subr.mxu0 0.0
    %2244 = vmatpush1.msra.mxu0 0.0
    %2245 = vmatprep.subr.mxu0 0.0
    %2246 = vmatpush1.msra.mxu0 0.0
    %2247 = vmatprep.subr.mxu0 0.0
    %2248 = vmatpush1.msra.mxu0 0.0
    %2249 = vmatprep.subr.mxu0 0.0
    %2250 = vmatpush1.msra.mxu0 0.0
    %2251 = vmatprep.subr.mxu0 0.0
    %2252 = vmatpush1.msra.mxu0 0.0
    %2253 = vmatprep.subr.mxu0 0.0
    %2254 = vmatpush1.msra.mxu0 0.0
    %2255 = vmatprep.subr.mxu0 0.0
    %2256 = vmatpush1.msra.mxu0 0.0
    %2257 = vmatprep.subr.mxu0 0.0
    %2258 = vmatpush1.msra.mxu0 0.0
    %2259 = vmatprep.subr.mxu0 0.0
    %2260 = vmatpush1.msra.mxu0 0.0
    %2261 = vmatprep.subr.mxu0 0.0
    %2262 = vmatpush1.msra.mxu0 0.0
    %2263 = vmatprep.subr.mxu0 0.0
    %2264 = vmatpush1.msra.mxu0 %v1838
    %2265 = vmatprep.subr.mxu0 0.0
    %2266 = vmatpush1.msra.mxu0 %v1837
    %2267 = vmatprep.subr.mxu0 0.0
    %2268 = vmatpush1.msra.mxu0 %v1836
    %2269 = vmatprep.subr.mxu0 0.0
    %2270 = vmatpush1.msra.mxu0 %v1835
    %2271 = vmatprep.subr.mxu0 0.0
    %2272 = vmatpush2.msra.mxu0 0.0
    %2273 = vmatprep.subr.mxu0 0.0
    %2274 = vmatpush2.msra.mxu0 0.0
    %2275 = vmatprep.subr.mxu0 0.0
    %2276 = vmatpush2.msra.mxu0 0.0
    %2277 = vmatprep.subr.mxu0 0.0
    %2278 = vmatpush2.msra.mxu0 0.0
    %2279 = vmatprep.subr.mxu0 0.0
    %2280 = vmatpush2.msra.mxu0 0.0
    %2281 = vmatprep.subr.mxu0 0.0
    %2282 = vmatpush2.msra.mxu0 0.0
    %2283 = vmatprep.subr.mxu0 0.0
    %2284 = vmatpush2.msra.mxu0 0.0
    %2285 = vmatprep.subr.mxu0 0.0
    %2286 = vmatpush2.msra.mxu0 0.0
    %2287 = vmatprep.subr.mxu0 0.0
    %2288 = vmatpush2.msra.mxu0 0.0
    %2289 = vmatprep.subr.mxu0 0.0
    %2290 = vmatpush2.msra.mxu0 0.0
    %2291 = vmatprep.subr.mxu0 0.0
    %2292 = vmatpush2.msra.mxu0 0.0
    %2293 = vmatprep.subr.mxu0 0.0
    %2294 = vmatpush2.msra.mxu0 0.0
    %2295 = vmatprep.subr.mxu0 0.0
    %2296 = vmatpush2.msra.mxu0 0.0
    %2297 = vmatprep.subr.mxu0 0.0
    %2298 = vmatpush2.msra.mxu0 0.0
    %2299 = vmatprep.subr.mxu0 0.0
    %2300 = vmatpush2.msra.mxu0 0.0
    %2301 = vmatprep.subr.mxu0 0.0
    %2302 = vmatpush2.msra.mxu0 0.0
    %2303 = vmatprep.mubr.f32.mxu0 0.0
    %2304 = vmatmul.mubr.f32.gmra.mxu0 %v2237
    %v2305 = vpop.f32.mrf.mxu0
    %v2306 = vadd.f32 0.0, %v2305
    %v2307 = vpop.f32.mrf.mxu0
    %2308 = vdwg.mxu0
    %v2309 = vadd.f32 %v2058, %v2306
    %v2310 = vxor.u32 %v2309, 2147483648
    %v2311 = vmul.f32 %v2310, 1.442695
    %v2312 = vpow.pop %v2311
    %v2313 = vadd.f32 %v2312, 1.0
    %v2314 = vrcp.pop %v2313
    %v2315 = vmul.f32 1.0, %v2314
    %v2316 = vtanh.pop %v2309
    %v2317 = vmul.f32 %v2315, %v2077
    %2319 = vrot.lane.b32.xlu0 %v2316, 80
    %v2320 = vpop.permute.xlu0 %2319
    %v2322 = vmul.f32 %v2315, %v2320
    %2324 = vrot.lane.b32.xlu0 %v2322, 16
    %v2325 = vpop.permute.xlu0 %2324
    %v2327 = vadd.f32 %v2317, %v2325
    %v2328 = vtanh.pop %v2327
    %2330 = vrot.lane.b32.xlu0 %v2328, 16
    %v2331 = vpop.permute.xlu0 %2330
    %v2333 = vmul.f32 %v2315, %v2331
    %2335 = vrot.lane.b32.xlu0 %v2333, 96
    %v2336 = vpop.permute.xlu0 %2335
    %2338 = vst.msk [vmem:[#allocation3 + $0x2] sm:$0x3] %vm1976, %v2336
    %v2339 = vrot.slane %v2219, 1
    %v2340 = vsel %vm1971, %v2220, %v2339
    %2341 = vrot.lane.b32.xlu0 %v2340, 96
    %v2342 = vpop.permute.xlu0 %2341
    %v2343 = vsel %vm1840, %v2342, 0
    %2345 = vmatprep.subr.mxu0 0.0
    %2346 = vmatpush1.msra.mxu0 0.0
    %2347 = vmatprep.subr.mxu0 0.0
    %2348 = vmatpush1.msra.mxu0 0.0
    %2349 = vmatprep.subr.mxu0 0.0
    %2350 = vmatpush1.msra.mxu0 0.0
    %2351 = vmatprep.subr.mxu0 0.0
    %2352 = vmatpush1.msra.mxu0 0.0
    %2353 = vmatprep.subr.mxu0 0.0
    %2354 = vmatpush1.msra.mxu0 0.0
    %2355 = vmatprep.subr.mxu0 0.0
    %2356 = vmatpush1.msra.mxu0 0.0
    %2357 = vmatprep.subr.mxu0 0.0
    %2358 = vmatpush1.msra.mxu0 0.0
    %2359 = vmatprep.subr.mxu0 0.0
    %2360 = vmatpush1.msra.mxu0 0.0
    %2361 = vmatprep.subr.mxu0 0.0
    %2362 = vmatpush1.msra.mxu0 0.0
    %2363 = vmatprep.subr.mxu0 0.0
    %2364 = vmatpush1.msra.mxu0 0.0
    %2365 = vmatprep.subr.mxu0 0.0
    %2366 = vmatpush1.msra.mxu0 0.0
    %2367 = vmatprep.subr.mxu0 0.0
    %2368 = vmatpush1.msra.mxu0 0.0
    %2369 = vmatprep.subr.mxu0 0.0
    %2370 = vmatpush1.msra.mxu0 0.0
    %2371 = vmatprep.subr.mxu0 0.0
    %2372 = vmatpush1.msra.mxu0 0.0
    %2373 = vmatprep.subr.mxu0 0.0
    %2374 = vmatpush1.msra.mxu0 %v1834
    %2375 = vmatprep.subr.mxu0 0.0
    %2376 = vmatpush1.msra.mxu0 %v1833
    %2377 = vmatprep.subr.mxu0 0.0
    %2378 = vmatpush2.msra.mxu0 0.0
    %2379 = vmatprep.subr.mxu0 0.0
    %2380 = vmatpush2.msra.mxu0 0.0
    %2381 = vmatprep.subr.mxu0 0.0
    %2382 = vmatpush2.msra.mxu0 0.0
    %2383 = vmatprep.subr.mxu0 0.0
    %2384 = vmatpush2.msra.mxu0 0.0
    %2385 = vmatprep.subr.mxu0 0.0
    %2386 = vmatpush2.msra.mxu0 0.0
    %2387 = vmatprep.subr.mxu0 0.0
    %2388 = vmatpush2.msra.mxu0 0.0
    %2389 = vmatprep.subr.mxu0 0.0
    %2390 = vmatpush2.msra.mxu0 0.0
    %2391 = vmatprep.subr.mxu0 0.0
    %2392 = vmatpush2.msra.mxu0 0.0
    %2393 = vmatprep.subr.mxu0 0.0
    %2394 = vmatpush2.msra.mxu0 0.0
    %2395 = vmatprep.subr.mxu0 0.0
    %2396 = vmatpush2.msra.mxu0 0.0
    %2397 = vmatprep.subr.mxu0 0.0
    %2398 = vmatpush2.msra.mxu0 0.0
    %2399 = vmatprep.subr.mxu0 0.0
    %2400 = vmatpush2.msra.mxu0 0.0
    %2401 = vmatprep.subr.mxu0 0.0
    %2402 = vmatpush2.msra.mxu0 0.0
    %2403 = vmatprep.subr.mxu0 0.0
    %2404 = vmatpush2.msra.mxu0 0.0
    %2405 = vmatprep.subr.mxu0 0.0
    %2406 = vmatpush2.msra.mxu0 0.0
    %2407 = vmatprep.subr.mxu0 0.0
    %2408 = vmatpush2.msra.mxu0 0.0
    %2409 = vmatprep.mubr.f32.mxu0 0.0
    %2410 = vmatmul.mubr.f32.gmra.mxu0 %v2343
    %v2411 = vpop.f32.mrf.mxu0
    %v2412 = vadd.f32 0.0, %v2411
    %v2413 = vpop.f32.mrf.mxu0
    %2414 = vdwg.mxu0
    %v2416 = vrot.slane %v2412, 6
    %v2417 = vrot.slane %v2412, 7
    %v2420 = vadd.f32 %v1831, %v2416
    %v2421 = vadd.f32 %v1832, %v2417
    %v2422 = vxor.u32 %v2420, 2147483648
    %v2423 = vxor.u32 %v2421, 2147483648
    %v2424 = vmul.f32 %v2422, 1.442695
    %v2425 = vpow.pop %v2424
    %v2426 = vmul.f32 %v2423, 1.442695
    %v2427 = vpow.pop %v2426
    %v2428 = vadd.f32 %v2425, 1.0
    %v2429 = vadd.f32 %v2427, 1.0
    %v2430 = vrcp.pop %v2428
    %v2431 = vmul.f32 1.0, %v2430
    %v2432 = vrcp.pop %v2429
    %v2433 = vmul.f32 1.0, %v2432
    %v2434 = vtanh.pop %v2420
    %v2435 = vtanh.pop %v2421
    %v2438 = vrot.slane %v2207, 7
    %v2439 = vrot.slane %v2208, 7
    %v2442 = vmul.f32 %v2431, %v2438
    %v2443 = vmul.f32 %v2433, %v2439
    %2446 = vrot.lane.b32.xlu0 %v2434, 80
    %v2447 = vpop.permute.xlu0 %2446
    %2448 = vrot.lane.b32.xlu0 %v2435, 80
    %v2449 = vpop.permute.xlu0 %2448
    %v2452 = vmul.f32 %v2431, %v2447
    %v2453 = vmul.f32 %v2433, %v2449
    %2456 = vrot.lane.b32.xlu0 %v2452, 16
    %v2457 = vpop.permute.xlu0 %2456
    %2458 = vrot.lane.b32.xlu0 %v2453, 16
    %v2459 = vpop.permute.xlu0 %2458
    %v2462 = vadd.f32 %v2442, %v2457
    %v2463 = vadd.f32 %v2443, %v2459
    %v2464 = vtanh.pop %v2462
    %v2465 = vtanh.pop %v2463
    %2468 = vrot.lane.b32.xlu0 %v2464, 16
    %v2469 = vpop.permute.xlu0 %2468
    %2470 = vrot.lane.b32.xlu0 %v2465, 16
    %v2471 = vpop.permute.xlu0 %2470
    %v2474 = vmul.f32 %v2431, %v2469
    %v2475 = vmul.f32 %v2433, %v2471
    %v2478 = vrot.slane %v2475, 7
    %vm2479 = vcmask 1043459
    %v2480 = vsel %vm2479, %v2478, %v2474
    %2481 = vrot.lane.b32.xlu0 %v2480, 96
    %v2482 = vpop.permute.xlu0 %2481
    %vm2484 = vcmask 125954
    %2485 = vst.msk [vmem:[#allocation2 - $0x2] sm:$0xc] %vm2484, %v2482
    %2486 = vrot.lane.b32.xlu0 %v2333, 112
    %v2487 = vpop.permute.xlu0 %2486
    %2489 = vst.msk [vmem:[#allocation2] sm:$0x3] %vm1978, %v2487
    %v2490 = vld [vmem:[#allocation2] sm:$0x3]
    %v2492 = vsel %vm1981, %v2490, 0
    %2494 = vmatprep.subr.mxu0 0.0
    %2495 = vmatpush1.msra.mxu0 0.0
    %2496 = vmatprep.subr.mxu0 0.0
    %2497 = vmatpush1.msra.mxu0 0.0
    %2498 = vmatprep.subr.mxu0 0.0
    %2499 = vmatpush1.msra.mxu0 0.0
    %2500 = vmatprep.subr.mxu0 0.0
    %2501 = vmatpush1.msra.mxu0 0.0
    %2502 = vmatprep.subr.mxu0 0.0
    %2503 = vmatpush1.msra.mxu0 0.0
    %2504 = vmatprep.subr.mxu0 0.0
    %2505 = vmatpush1.msra.mxu0 0.0
    %2506 = vmatprep.subr.mxu0 0.0
    %2507 = vmatpush1.msra.mxu0 0.0
    %2508 = vmatprep.subr.mxu0 0.0
    %2509 = vmatpush1.msra.mxu0 0.0
    %2510 = vmatprep.subr.mxu0 0.0
    %2511 = vmatpush1.msra.mxu0 0.0
    %2512 = vmatprep.subr.mxu0 0.0
    %2513 = vmatpush1.msra.mxu0 0.0
    %2514 = vmatprep.subr.mxu0 0.0
    %2515 = vmatpush1.msra.mxu0 0.0
    %2516 = vmatprep.subr.mxu0 0.0
    %2517 = vmatpush1.msra.mxu0 0.0
    %2518 = vmatprep.subr.mxu0 0.0
    %2519 = vmatpush1.msra.mxu0 %v1838
    %2520 = vmatprep.subr.mxu0 0.0
    %2521 = vmatpush1.msra.mxu0 %v1837
    %2522 = vmatprep.subr.mxu0 0.0
    %2523 = vmatpush1.msra.mxu0 %v1836
    %2524 = vmatprep.subr.mxu0 0.0
    %2525 = vmatpush1.msra.mxu0 %v1835
    %2526 = vmatprep.subr.mxu0 0.0
    %2527 = vmatpush2.msra.mxu0 0.0
    %2528 = vmatprep.subr.mxu0 0.0
    %2529 = vmatpush2.msra.mxu0 0.0
    %2530 = vmatprep.subr.mxu0 0.0
    %2531 = vmatpush2.msra.mxu0 0.0
    %2532 = vmatprep.subr.mxu0 0.0
    %2533 = vmatpush2.msra.mxu0 0.0
    %2534 = vmatprep.subr.mxu0 0.0
    %2535 = vmatpush2.msra.mxu0 0.0
    %2536 = vmatprep.subr.mxu0 0.0
    %2537 = vmatpush2.msra.mxu0 0.0
    %2538 = vmatprep.subr.mxu0 0.0
    %2539 = vmatpush2.msra.mxu0 0.0
    %2540 = vmatprep.subr.mxu0 0.0
    %2541 = vmatpush2.msra.mxu0 0.0
    %2542 = vmatprep.subr.mxu0 0.0
    %2543 = vmatpush2.msra.mxu0 0.0
    %2544 = vmatprep.subr.mxu0 0.0
    %2545 = vmatpush2.msra.mxu0 0.0
    %2546 = vmatprep.subr.mxu0 0.0
    %2547 = vmatpush2.msra.mxu0 0.0
    %2548 = vmatprep.subr.mxu0 0.0
    %2549 = vmatpush2.msra.mxu0 0.0
    %2550 = vmatprep.subr.mxu0 0.0
    %2551 = vmatpush2.msra.mxu0 0.0
    %2552 = vmatprep.subr.mxu0 0.0
    %2553 = vmatpush2.msra.mxu0 0.0
    %2554 = vmatprep.subr.mxu0 0.0
    %2555 = vmatpush2.msra.mxu0 0.0
    %2556 = vmatprep.subr.mxu0 0.0
    %2557 = vmatpush2.msra.mxu0 0.0
    %2558 = vmatprep.mubr.f32.mxu0 0.0
    %2559 = vmatmul.mubr.f32.gmra.mxu0 %v2492
    %v2560 = vpop.f32.mrf.mxu0
    %v2561 = vadd.f32 0.0, %v2560
    %v2562 = vpop.f32.mrf.mxu0
    %2563 = vdwg.mxu0
    %v2564 = vadd.f32 %v2058, %v2561
    %v2565 = vxor.u32 %v2564, 2147483648
    %v2566 = vmul.f32 %v2565, 1.442695
    %v2567 = vpow.pop %v2566
    %v2568 = vadd.f32 %v2567, 1.0
    %v2569 = vrcp.pop %v2568
    %v2570 = vmul.f32 1.0, %v2569
    %v2571 = vtanh.pop %v2564
    %v2572 = vmul.f32 %v2570, %v2327
    %2574 = vrot.lane.b32.xlu0 %v2571, 80
    %v2575 = vpop.permute.xlu0 %2574
    %v2577 = vmul.f32 %v2570, %v2575
    %2579 = vrot.lane.b32.xlu0 %v2577, 16
    %v2580 = vpop.permute.xlu0 %2579
    %v2582 = vadd.f32 %v2572, %v2580
    %v2583 = vtanh.pop %v2582
    %2585 = vrot.lane.b32.xlu0 %v2583, 16
    %v2586 = vpop.permute.xlu0 %2585
    %v2588 = vmul.f32 %v2570, %v2586
    %2590 = vrot.lane.b32.xlu0 %v2588, 96
    %v2591 = vpop.permute.xlu0 %2590
    %2593 = vst.msk [vmem:[#allocation3 + $0x4] sm:$0x3] %vm1976, %v2591
    %v2594 = vrot.slane %v2474, 2
    %v2595 = vrot.slane %v2475, 1
    %v2596 = vsel %vm1971, %v2595, %v2594
    %2597 = vrot.lane.b32.xlu0 %v2596, 96
    %v2598 = vpop.permute.xlu0 %2597
    %v2599 = vsel %vm1840, %v2598, 0
    %2601 = vmatprep.subr.mxu0 0.0
    %2602 = vmatpush1.msra.mxu0 0.0
    %2603 = vmatprep.subr.mxu0 0.0
    %2604 = vmatpush1.msra.mxu0 0.0
    %2605 = vmatprep.subr.mxu0 0.0
    %2606 = vmatpush1.msra.mxu0 0.0
    %2607 = vmatprep.subr.mxu0 0.0
    %2608 = vmatpush1.msra.mxu0 0.0
    %2609 = vmatprep.subr.mxu0 0.0
    %2610 = vmatpush1.msra.mxu0 0.0
    %2611 = vmatprep.subr.mxu0 0.0
    %2612 = vmatpush1.msra.mxu0 0.0
    %2613 = vmatprep.subr.mxu0 0.0
    %2614 = vmatpush1.msra.mxu0 0.0
    %2615 = vmatprep.subr.mxu0 0.0
    %2616 = vmatpush1.msra.mxu0 0.0
    %2617 = vmatprep.subr.mxu0 0.0
    %2618 = vmatpush1.msra.mxu0 0.0
    %2619 = vmatprep.subr.mxu0 0.0
    %2620 = vmatpush1.msra.mxu0 0.0
    %2621 = vmatprep.subr.mxu0 0.0
    %2622 = vmatpush1.msra.mxu0 0.0
    %2623 = vmatprep.subr.mxu0 0.0
    %2624 = vmatpush1.msra.mxu0 0.0
    %2625 = vmatprep.subr.mxu0 0.0
    %2626 = vmatpush1.msra.mxu0 0.0
    %2627 = vmatprep.subr.mxu0 0.0
    %2628 = vmatpush1.msra.mxu0 0.0
    %2629 = vmatprep.subr.mxu0 0.0
    %2630 = vmatpush1.msra.mxu0 %v1834
    %2631 = vmatprep.subr.mxu0 0.0
    %2632 = vmatpush1.msra.mxu0 %v1833
    %2633 = vmatprep.subr.mxu0 0.0
    %2634 = vmatpush2.msra.mxu0 0.0
    %2635 = vmatprep.subr.mxu0 0.0
    %2636 = vmatpush2.msra.mxu0 0.0
    %2637 = vmatprep.subr.mxu0 0.0
    %2638 = vmatpush2.msra.mxu0 0.0
    %2639 = vmatprep.subr.mxu0 0.0
    %2640 = vmatpush2.msra.mxu0 0.0
    %2641 = vmatprep.subr.mxu0 0.0
    %2642 = vmatpush2.msra.mxu0 0.0
    %2643 = vmatprep.subr.mxu0 0.0
    %2644 = vmatpush2.msra.mxu0 0.0
    %2645 = vmatprep.subr.mxu0 0.0
    %2646 = vmatpush2.msra.mxu0 0.0
    %2647 = vmatprep.subr.mxu0 0.0
    %2648 = vmatpush2.msra.mxu0 0.0
    %2649 = vmatprep.subr.mxu0 0.0
    %2650 = vmatpush2.msra.mxu0 0.0
    %2651 = vmatprep.subr.mxu0 0.0
    %2652 = vmatpush2.msra.mxu0 0.0
    %2653 = vmatprep.subr.mxu0 0.0
    %2654 = vmatpush2.msra.mxu0 0.0
    %2655 = vmatprep.subr.mxu0 0.0
    %2656 = vmatpush2.msra.mxu0 0.0
    %2657 = vmatprep.subr.mxu0 0.0
    %2658 = vmatpush2.msra.mxu0 0.0
    %2659 = vmatprep.subr.mxu0 0.0
    %2660 = vmatpush2.msra.mxu0 0.0
    %2661 = vmatprep.subr.mxu0 0.0
    %2662 = vmatpush2.msra.mxu0 0.0
    %2663 = vmatprep.subr.mxu0 0.0
    %2664 = vmatpush2.msra.mxu0 0.0
    %2665 = vmatprep.mubr.f32.mxu0 0.0
    %2666 = vmatmul.mubr.f32.gmra.mxu0 %v2599
    %v2667 = vpop.f32.mrf.mxu0
    %v2668 = vadd.f32 0.0, %v2667
    %v2669 = vpop.f32.mrf.mxu0
    %2670 = vdwg.mxu0
    %v2672 = vrot.slane %v2668, 5
    %v2673 = vrot.slane %v2668, 6
    %v2676 = vadd.f32 %v1831, %v2672
    %v2677 = vadd.f32 %v1832, %v2673
    %v2678 = vxor.u32 %v2676, 2147483648
    %v2679 = vxor.u32 %v2677, 2147483648
    %v2680 = vmul.f32 %v2678, 1.442695
    %v2681 = vpow.pop %v2680
    %v2682 = vmul.f32 %v2679, 1.442695
    %v2683 = vpow.pop %v2682
    %v2684 = vadd.f32 %v2681, 1.0
    %v2685 = vadd.f32 %v2683, 1.0
    %v2686 = vrcp.pop %v2684
    %v2687 = vmul.f32 1.0, %v2686
    %v2688 = vrcp.pop %v2685
    %v2689 = vmul.f32 1.0, %v2688
    %v2690 = vtanh.pop %v2676
    %v2691 = vtanh.pop %v2677
    %v2694 = vrot.slane %v2462, 7
    %v2695 = vrot.slane %v2463, 7
    %v2698 = vmul.f32 %v2687, %v2694
    %v2699 = vmul.f32 %v2689, %v2695
    %2702 = vrot.lane.b32.xlu0 %v2690, 80
    %v2703 = vpop.permute.xlu0 %2702
    %2704 = vrot.lane.b32.xlu0 %v2691, 80
    %v2705 = vpop.permute.xlu0 %2704
    %v2708 = vmul.f32 %v2687, %v2703
    %v2709 = vmul.f32 %v2689, %v2705
    %2712 = vrot.lane.b32.xlu0 %v2708, 16
    %v2713 = vpop.permute.xlu0 %2712
    %2714 = vrot.lane.b32.xlu0 %v2709, 16
    %v2715 = vpop.permute.xlu0 %2714
    %v2718 = vadd.f32 %v2698, %v2713
    %v2719 = vadd.f32 %v2699, %v2715
    %v2720 = vtanh.pop %v2718
    %v2721 = vtanh.pop %v2719
    %2724 = vrot.lane.b32.xlu0 %v2720, 16
    %v2725 = vpop.permute.xlu0 %2724
    %2726 = vrot.lane.b32.xlu0 %v2721, 16
    %v2727 = vpop.permute.xlu0 %2726
    %v2730 = vmul.f32 %v2687, %v2725
    %v2731 = vmul.f32 %v2689, %v2727
    %v2734 = vrot.slane %v2731, 7
    %vm2735 = vcmask 1044484
    %v2736 = vsel %vm2735, %v2734, %v2730
    %2737 = vrot.lane.b32.xlu0 %v2736, 96
    %v2738 = vpop.permute.xlu0 %2737
    %vm2740 = vcmask 126979
    %2741 = vst.msk [vmem:[#allocation2 - $0x3] sm:$0x18] %vm2740, %v2738
    %2742 = vrot.lane.b32.xlu0 %v2588, 112
    %v2743 = vpop.permute.xlu0 %2742
    %2745 = vst.msk [vmem:[#allocation2] sm:$0x3] %vm1978, %v2743
    %v2746 = vld [vmem:[#allocation2] sm:$0x3]
    %v2748 = vsel %vm1981, %v2746, 0
    %2750 = vmatprep.subr.mxu0 0.0
    %2751 = vmatpush1.msra.mxu0 0.0
    %2752 = vmatprep.subr.mxu0 0.0
    %2753 = vmatpush1.msra.mxu0 0.0
    %2754 = vmatprep.subr.mxu0 0.0
    %2755 = vmatpush1.msra.mxu0 0.0
    %2756 = vmatprep.subr.mxu0 0.0
    %2757 = vmatpush1.msra.mxu0 0.0
    %2758 = vmatprep.subr.mxu0 0.0
    %2759 = vmatpush1.msra.mxu0 0.0
    %2760 = vmatprep.subr.mxu0 0.0
    %2761 = vmatpush1.msra.mxu0 0.0
    %2762 = vmatprep.subr.mxu0 0.0
    %2763 = vmatpush1.msra.mxu0 0.0
    %2764 = vmatprep.subr.mxu0 0.0
    %2765 = vmatpush1.msra.mxu0 0.0
    %2766 = vmatprep.subr.mxu0 0.0
    %2767 = vmatpush1.msra.mxu0 0.0
    %2768 = vmatprep.subr.mxu0 0.0
    %2769 = vmatpush1.msra.mxu0 0.0
    %2770 = vmatprep.subr.mxu0 0.0
    %2771 = vmatpush1.msra.mxu0 0.0
    %2772 = vmatprep.subr.mxu0 0.0
    %2773 = vmatpush1.msra.mxu0 0.0
    %2774 = vmatprep.subr.mxu0 0.0
    %2775 = vmatpush1.msra.mxu0 %v1838
    %2776 = vmatprep.subr.mxu0 0.0
    %2777 = vmatpush1.msra.mxu0 %v1837
    %2778 = vmatprep.subr.mxu0 0.0
    %2779 = vmatpush1.msra.mxu0 %v1836
    %2780 = vmatprep.subr.mxu0 0.0
    %2781 = vmatpush1.msra.mxu0 %v1835
    %2782 = vmatprep.subr.mxu0 0.0
    %2783 = vmatpush2.msra.mxu0 0.0
    %2784 = vmatprep.subr.mxu0 0.0
    %2785 = vmatpush2.msra.mxu0 0.0
    %2786 = vmatprep.subr.mxu0 0.0
    %2787 = vmatpush2.msra.mxu0 0.0
    %2788 = vmatprep.subr.mxu0 0.0
    %2789 = vmatpush2.msra.mxu0 0.0
    %2790 = vmatprep.subr.mxu0 0.0
    %2791 = vmatpush2.msra.mxu0 0.0
    %2792 = vmatprep.subr.mxu0 0.0
    %2793 = vmatpush2.msra.mxu0 0.0
    %2794 = vmatprep.subr.mxu0 0.0
    %2795 = vmatpush2.msra.mxu0 0.0
    %2796 = vmatprep.subr.mxu0 0.0
    %2797 = vmatpush2.msra.mxu0 0.0
    %2798 = vmatprep.subr.mxu0 0.0
    %2799 = vmatpush2.msra.mxu0 0.0
    %2800 = vmatprep.subr.mxu0 0.0
    %2801 = vmatpush2.msra.mxu0 0.0
    %2802 = vmatprep.subr.mxu0 0.0
    %2803 = vmatpush2.msra.mxu0 0.0
    %2804 = vmatprep.subr.mxu0 0.0
    %2805 = vmatpush2.msra.mxu0 0.0
    %2806 = vmatprep.subr.mxu0 0.0
    %2807 = vmatpush2.msra.mxu0 0.0
    %2808 = vmatprep.subr.mxu0 0.0
    %2809 = vmatpush2.msra.mxu0 0.0
    %2810 = vmatprep.subr.mxu0 0.0
    %2811 = vmatpush2.msra.mxu0 0.0
    %2812 = vmatprep.subr.mxu0 0.0
    %2813 = vmatpush2.msra.mxu0 0.0
    %2814 = vmatprep.mubr.f32.mxu0 0.0
    %2815 = vmatmul.mubr.f32.gmra.mxu0 %v2748
    %v2816 = vpop.f32.mrf.mxu0
    %v2817 = vadd.f32 0.0, %v2816
    %v2818 = vpop.f32.mrf.mxu0
    %2819 = vdwg.mxu0
    %v2820 = vadd.f32 %v2058, %v2817
    %v2821 = vxor.u32 %v2820, 2147483648
    %v2822 = vmul.f32 %v2821, 1.442695
    %v2823 = vpow.pop %v2822
    %v2824 = vadd.f32 %v2823, 1.0
    %v2825 = vrcp.pop %v2824
    %v2826 = vmul.f32 1.0, %v2825
    %v2827 = vtanh.pop %v2820
    %v2828 = vmul.f32 %v2826, %v2582
    %2830 = vrot.lane.b32.xlu0 %v2827, 80
    %v2831 = vpop.permute.xlu0 %2830
    %v2833 = vmul.f32 %v2826, %v2831
    %2835 = vrot.lane.b32.xlu0 %v2833, 16
    %v2836 = vpop.permute.xlu0 %2835
    %v2838 = vadd.f32 %v2828, %v2836
    %v2839 = vtanh.pop %v2838
    %2841 = vrot.lane.b32.xlu0 %v2839, 16
    %v2842 = vpop.permute.xlu0 %2841
    %v2844 = vmul.f32 %v2826, %v2842
    %2846 = vrot.lane.b32.xlu0 %v2844, 96
    %v2847 = vpop.permute.xlu0 %2846
    %2849 = vst.msk [vmem:[#allocation3 + $0x6] sm:$0x3] %vm1976, %v2847
    %v2850 = vrot.slane %v2730, 3
    %v2851 = vrot.slane %v2731, 2
    %v2852 = vsel %vm1971, %v2851, %v2850
    %2853 = vrot.lane.b32.xlu0 %v2852, 96
    %v2854 = vpop.permute.xlu0 %2853
    %v2855 = vsel %vm1840, %v2854, 0
    %2857 = vmatprep.subr.mxu0 0.0
    %2858 = vmatpush1.msra.mxu0 0.0
    %2859 = vmatprep.subr.mxu0 0.0
    %2860 = vmatpush1.msra.mxu0 0.0
    %2861 = vmatprep.subr.mxu0 0.0
    %2862 = vmatpush1.msra.mxu0 0.0
    %2863 = vmatprep.subr.mxu0 0.0
    %2864 = vmatpush1.msra.mxu0 0.0
    %2865 = vmatprep.subr.mxu0 0.0
    %2866 = vmatpush1.msra.mxu0 0.0
    %2867 = vmatprep.subr.mxu0 0.0
    %2868 = vmatpush1.msra.mxu0 0.0
    %2869 = vmatprep.subr.mxu0 0.0
    %2870 = vmatpush1.msra.mxu0 0.0
    %2871 = vmatprep.subr.mxu0 0.0
    %2872 = vmatpush1.msra.mxu0 0.0
    %2873 = vmatprep.subr.mxu0 0.0
    %2874 = vmatpush1.msra.mxu0 0.0
    %2875 = vmatprep.subr.mxu0 0.0
    %2876 = vmatpush1.msra.mxu0 0.0
    %2877 = vmatprep.subr.mxu0 0.0
    %2878 = vmatpush1.msra.mxu0 0.0
    %2879 = vmatprep.subr.mxu0 0.0
    %2880 = vmatpush1.msra.mxu0 0.0
    %2881 = vmatprep.subr.mxu0 0.0
    %2882 = vmatpush1.msra.mxu0 0.0
    %2883 = vmatprep.subr.mxu0 0.0
    %2884 = vmatpush1.msra.mxu0 0.0
    %2885 = vmatprep.subr.mxu0 0.0
    %2886 = vmatpush1.msra.mxu0 %v1834
    %2887 = vmatprep.subr.mxu0 0.0
    %2888 = vmatpush1.msra.mxu0 %v1833
    %2889 = vmatprep.subr.mxu0 0.0
    %2890 = vmatpush2.msra.mxu0 0.0
    %2891 = vmatprep.subr.mxu0 0.0
    %2892 = vmatpush2.msra.mxu0 0.0
    %2893 = vmatprep.subr.mxu0 0.0
    %2894 = vmatpush2.msra.mxu0 0.0
    %2895 = vmatprep.subr.mxu0 0.0
    %2896 = vmatpush2.msra.mxu0 0.0
    %2897 = vmatprep.subr.mxu0 0.0
    %2898 = vmatpush2.msra.mxu0 0.0
    %2899 = vmatprep.subr.mxu0 0.0
    %2900 = vmatpush2.msra.mxu0 0.0
    %2901 = vmatprep.subr.mxu0 0.0
    %2902 = vmatpush2.msra.mxu0 0.0
    %2903 = vmatprep.subr.mxu0 0.0
    %2904 = vmatpush2.msra.mxu0 0.0
    %2905 = vmatprep.subr.mxu0 0.0
    %2906 = vmatpush2.msra.mxu0 0.0
    %2907 = vmatprep.subr.mxu0 0.0
    %2908 = vmatpush2.msra.mxu0 0.0
    %2909 = vmatprep.subr.mxu0 0.0
    %2910 = vmatpush2.msra.mxu0 0.0
    %2911 = vmatprep.subr.mxu0 0.0
    %2912 = vmatpush2.msra.mxu0 0.0
    %2913 = vmatprep.subr.mxu0 0.0
    %2914 = vmatpush2.msra.mxu0 0.0
    %2915 = vmatprep.subr.mxu0 0.0
    %2916 = vmatpush2.msra.mxu0 0.0
    %2917 = vmatprep.subr.mxu0 0.0
    %2918 = vmatpush2.msra.mxu0 0.0
    %2919 = vmatprep.subr.mxu0 0.0
    %2920 = vmatpush2.msra.mxu0 0.0
    %2921 = vmatprep.mubr.f32.mxu0 0.0
    %2922 = vmatmul.mubr.f32.gmra.mxu0 %v2855
    %v2923 = vpop.f32.mrf.mxu0
    %v2924 = vadd.f32 0.0, %v2923
    %v2925 = vpop.f32.mrf.mxu0
    %2926 = vdwg.mxu0
    %v2928 = vrot.slane %v2924, 4
    %v2929 = vrot.slane %v2924, 5
    %v2932 = vadd.f32 %v1831, %v2928
    %v2933 = vadd.f32 %v1832, %v2929
    %v2934 = vxor.u32 %v2932, 2147483648
    %v2935 = vxor.u32 %v2933, 2147483648
    %v2936 = vmul.f32 %v2934, 1.442695
    %v2937 = vpow.pop %v2936
    %v2938 = vmul.f32 %v2935, 1.442695
    %v2939 = vpow.pop %v2938
    %v2940 = vadd.f32 %v2937, 1.0
    %v2941 = vadd.f32 %v2939, 1.0
    %v2942 = vrcp.pop %v2940
    %v2943 = vmul.f32 1.0, %v2942
    %v2944 = vrcp.pop %v2941
    %v2945 = vmul.f32 1.0, %v2944
    %v2946 = vtanh.pop %v2932
    %v2947 = vtanh.pop %v2933
    %v2950 = vrot.slane %v2718, 7
    %v2951 = vrot.slane %v2719, 7
    %v2954 = vmul.f32 %v2943, %v2950
    %v2955 = vmul.f32 %v2945, %v2951
    %2958 = vrot.lane.b32.xlu0 %v2946, 80
    %v2959 = vpop.permute.xlu0 %2958
    %2960 = vrot.lane.b32.xlu0 %v2947, 80
    %v2961 = vpop.permute.xlu0 %2960
    %v2964 = vmul.f32 %v2943, %v2959
    %v2965 = vmul.f32 %v2945, %v2961
    %2968 = vrot.lane.b32.xlu0 %v2964, 16
    %v2969 = vpop.permute.xlu0 %2968
    %2970 = vrot.lane.b32.xlu0 %v2965, 16
    %v2971 = vpop.permute.xlu0 %2970
    %v2974 = vadd.f32 %v2954, %v2969
    %v2975 = vadd.f32 %v2955, %v2971
    %v2976 = vtanh.pop %v2974
    %v2977 = vtanh.pop %v2975
    %2980 = vrot.lane.b32.xlu0 %v2976, 16
    %v2981 = vpop.permute.xlu0 %2980
    %2982 = vrot.lane.b32.xlu0 %v2977, 16
    %v2983 = vpop.permute.xlu0 %2982
    %v2986 = vmul.f32 %v2943, %v2981
    %v2987 = vmul.f32 %v2945, %v2983
    %v2990 = vrot.slane %v2987, 7
    %vm2991 = vcmask 1045509
    %v2992 = vsel %vm2991, %v2990, %v2986
    %2993 = vrot.lane.b32.xlu0 %v2992, 96
    %v2994 = vpop.permute.xlu0 %2993
    %vm2996 = vcmask 128004
    %2997 = vst.msk [vmem:[#allocation2 - $0x4] sm:$0x30] %vm2996, %v2994
    %2998 = vrot.lane.b32.xlu0 %v2844, 112
    %v2999 = vpop.permute.xlu0 %2998
    %3001 = vst.msk [vmem:[#allocation2] sm:$0x3] %vm1978, %v2999
    %v3002 = vld [vmem:[#allocation2] sm:$0x3]
    %v3004 = vsel %vm1981, %v3002, 0
    %3006 = vmatprep.subr.mxu0 0.0
    %3007 = vmatpush1.msra.mxu0 0.0
    %3008 = vmatprep.subr.mxu0 0.0
    %3009 = vmatpush1.msra.mxu0 0.0
    %3010 = vmatprep.subr.mxu0 0.0
    %3011 = vmatpush1.msra.mxu0 0.0
    %3012 = vmatprep.subr.mxu0 0.0
    %3013 = vmatpush1.msra.mxu0 0.0
    %3014 = vmatprep.subr.mxu0 0.0
    %3015 = vmatpush1.msra.mxu0 0.0
    %3016 = vmatprep.subr.mxu0 0.0
    %3017 = vmatpush1.msra.mxu0 0.0
    %3018 = vmatprep.subr.mxu0 0.0
    %3019 = vmatpush1.msra.mxu0 0.0
    %3020 = vmatprep.subr.mxu0 0.0
    %3021 = vmatpush1.msra.mxu0 0.0
    %3022 = vmatprep.subr.mxu0 0.0
    %3023 = vmatpush1.msra.mxu0 0.0
    %3024 = vmatprep.subr.mxu0 0.0
    %3025 = vmatpush1.msra.mxu0 0.0
    %3026 = vmatprep.subr.mxu0 0.0
    %3027 = vmatpush1.msra.mxu0 0.0
    %3028 = vmatprep.subr.mxu0 0.0
    %3029 = vmatpush1.msra.mxu0 0.0
    %3030 = vmatprep.subr.mxu0 0.0
    %3031 = vmatpush1.msra.mxu0 %v1838
    %3032 = vmatprep.subr.mxu0 0.0
    %3033 = vmatpush1.msra.mxu0 %v1837
    %3034 = vmatprep.subr.mxu0 0.0
    %3035 = vmatpush1.msra.mxu0 %v1836
    %3036 = vmatprep.subr.mxu0 0.0
    %3037 = vmatpush1.msra.mxu0 %v1835
    %3038 = vmatprep.subr.mxu0 0.0
    %3039 = vmatpush2.msra.mxu0 0.0
    %3040 = vmatprep.subr.mxu0 0.0
    %3041 = vmatpush2.msra.mxu0 0.0
    %3042 = vmatprep.subr.mxu0 0.0
    %3043 = vmatpush2.msra.mxu0 0.0
    %3044 = vmatprep.subr.mxu0 0.0
    %3045 = vmatpush2.msra.mxu0 0.0
    %3046 = vmatprep.subr.mxu0 0.0
    %3047 = vmatpush2.msra.mxu0 0.0
    %3048 = vmatprep.subr.mxu0 0.0
    %3049 = vmatpush2.msra.mxu0 0.0
    %3050 = vmatprep.subr.mxu0 0.0
    %3051 = vmatpush2.msra.mxu0 0.0
    %3052 = vmatprep.subr.mxu0 0.0
    %3053 = vmatpush2.msra.mxu0 0.0
    %3054 = vmatprep.subr.mxu0 0.0
    %3055 = vmatpush2.msra.mxu0 0.0
    %3056 = vmatprep.subr.mxu0 0.0
    %3057 = vmatpush2.msra.mxu0 0.0
    %3058 = vmatprep.subr.mxu0 0.0
    %3059 = vmatpush2.msra.mxu0 0.0
    %3060 = vmatprep.subr.mxu0 0.0
    %3061 = vmatpush2.msra.mxu0 0.0
    %3062 = vmatprep.subr.mxu0 0.0
    %3063 = vmatpush2.msra.mxu0 0.0
    %3064 = vmatprep.subr.mxu0 0.0
    %3065 = vmatpush2.msra.mxu0 0.0
    %3066 = vmatprep.subr.mxu0 0.0
    %3067 = vmatpush2.msra.mxu0 0.0
    %3068 = vmatprep.subr.mxu0 0.0
    %3069 = vmatpush2.msra.mxu0 0.0
    %3070 = vmatprep.mubr.f32.mxu0 0.0
    %3071 = vmatmul.mubr.f32.gmra.mxu0 %v3004
    %v3072 = vpop.f32.mrf.mxu0
    %v3073 = vadd.f32 0.0, %v3072
    %v3074 = vpop.f32.mrf.mxu0
    %3075 = vdwg.mxu0
    %v3076 = vadd.f32 %v2058, %v3073
    %v3077 = vxor.u32 %v3076, 2147483648
    %v3078 = vmul.f32 %v3077, 1.442695
    %v3079 = vpow.pop %v3078
    %v3080 = vadd.f32 %v3079, 1.0
    %v3081 = vrcp.pop %v3080
    %v3082 = vmul.f32 1.0, %v3081
    %v3083 = vtanh.pop %v3076
    %v3084 = vmul.f32 %v3082, %v2838
    %3086 = vrot.lane.b32.xlu0 %v3083, 80
    %v3087 = vpop.permute.xlu0 %3086
    %v3089 = vmul.f32 %v3082, %v3087
    %3091 = vrot.lane.b32.xlu0 %v3089, 16
    %v3092 = vpop.permute.xlu0 %3091
    %v3094 = vadd.f32 %v3084, %v3092
    %v3095 = vtanh.pop %v3094
    %3097 = vrot.lane.b32.xlu0 %v3095, 16
    %v3098 = vpop.permute.xlu0 %3097
    %v3100 = vmul.f32 %v3082, %v3098
    %3102 = vrot.lane.b32.xlu0 %v3100, 96
    %v3103 = vpop.permute.xlu0 %3102
    %3105 = vst.msk [vmem:[#allocation3 + $0x8] sm:$0x3] %vm1976, %v3103
    %v3106 = vrot.slane %v2986, 4
    %v3107 = vrot.slane %v2987, 3
    %v3108 = vsel %vm1971, %v3107, %v3106
    %3109 = vrot.lane.b32.xlu0 %v3108, 96
    %v3110 = vpop.permute.xlu0 %3109
    %v3111 = vsel %vm1840, %v3110, 0
    %3113 = vmatprep.subr.mxu0 0.0
    %3114 = vmatpush1.msra.mxu0 0.0
    %3115 = vmatprep.subr.mxu0 0.0
    %3116 = vmatpush1.msra.mxu0 0.0
    %3117 = vmatprep.subr.mxu0 0.0
    %3118 = vmatpush1.msra.mxu0 0.0
    %3119 = vmatprep.subr.mxu0 0.0
    %3120 = vmatpush1.msra.mxu0 0.0
    %3121 = vmatprep.subr.mxu0 0.0
    %3122 = vmatpush1.msra.mxu0 0.0
    %3123 = vmatprep.subr.mxu0 0.0
    %3124 = vmatpush1.msra.mxu0 0.0
    %3125 = vmatprep.subr.mxu0 0.0
    %3126 = vmatpush1.msra.mxu0 0.0
    %3127 = vmatprep.subr.mxu0 0.0
    %3128 = vmatpush1.msra.mxu0 0.0
    %3129 = vmatprep.subr.mxu0 0.0
    %3130 = vmatpush1.msra.mxu0 0.0
    %3131 = vmatprep.subr.mxu0 0.0
    %3132 = vmatpush1.msra.mxu0 0.0
    %3133 = vmatprep.subr.mxu0 0.0
    %3134 = vmatpush1.msra.mxu0 0.0
    %3135 = vmatprep.subr.mxu0 0.0
    %3136 = vmatpush1.msra.mxu0 0.0
    %3137 = vmatprep.subr.mxu0 0.0
    %3138 = vmatpush1.msra.mxu0 0.0
    %3139 = vmatprep.subr.mxu0 0.0
    %3140 = vmatpush1.msra.mxu0 0.0
    %3141 = vmatprep.subr.mxu0 0.0
    %3142 = vmatpush1.msra.mxu0 %v1834
    %3143 = vmatprep.subr.mxu0 0.0
    %3144 = vmatpush1.msra.mxu0 %v1833
    %3145 = vmatprep.subr.mxu0 0.0
    %3146 = vmatpush2.msra.mxu0 0.0
    %3147 = vmatprep.subr.mxu0 0.0
    %3148 = vmatpush2.msra.mxu0 0.0
    %3149 = vmatprep.subr.mxu0 0.0
    %3150 = vmatpush2.msra.mxu0 0.0
    %3151 = vmatprep.subr.mxu0 0.0
    %3152 = vmatpush2.msra.mxu0 0.0
    %3153 = vmatprep.subr.mxu0 0.0
    %3154 = vmatpush2.msra.mxu0 0.0
    %3155 = vmatprep.subr.mxu0 0.0
    %3156 = vmatpush2.msra.mxu0 0.0
    %3157 = vmatprep.subr.mxu0 0.0
    %3158 = vmatpush2.msra.mxu0 0.0
    %3159 = vmatprep.subr.mxu0 0.0
    %3160 = vmatpush2.msra.mxu0 0.0
    %3161 = vmatprep.subr.mxu0 0.0
    %3162 = vmatpush2.msra.mxu0 0.0
    %3163 = vmatprep.subr.mxu0 0.0
    %3164 = vmatpush2.msra.mxu0 0.0
    %3165 = vmatprep.subr.mxu0 0.0
    %3166 = vmatpush2.msra.mxu0 0.0
    %3167 = vmatprep.subr.mxu0 0.0
    %3168 = vmatpush2.msra.mxu0 0.0
    %3169 = vmatprep.subr.mxu0 0.0
    %3170 = vmatpush2.msra.mxu0 0.0
    %3171 = vmatprep.subr.mxu0 0.0
    %3172 = vmatpush2.msra.mxu0 0.0
    %3173 = vmatprep.subr.mxu0 0.0
    %3174 = vmatpush2.msra.mxu0 0.0
    %3175 = vmatprep.subr.mxu0 0.0
    %3176 = vmatpush2.msra.mxu0 0.0
    %3177 = vmatprep.mubr.f32.mxu0 0.0
    %3178 = vmatmul.mubr.f32.gmra.mxu0 %v3111
    %v3179 = vpop.f32.mrf.mxu0
    %v3180 = vadd.f32 0.0, %v3179
    %v3181 = vpop.f32.mrf.mxu0
    %3182 = vdwg.mxu0
    %v3184 = vrot.slane %v3180, 3
    %v3185 = vrot.slane %v3180, 4
    %v3188 = vadd.f32 %v1831, %v3184
    %v3189 = vadd.f32 %v1832, %v3185
    %v3190 = vxor.u32 %v3188, 2147483648
    %v3191 = vxor.u32 %v3189, 2147483648
    %v3192 = vmul.f32 %v3190, 1.442695
    %v3193 = vpow.pop %v3192
    %v3194 = vmul.f32 %v3191, 1.442695
    %v3195 = vpow.pop %v3194
    %v3196 = vadd.f32 %v3193, 1.0
    %v3197 = vadd.f32 %v3195, 1.0
    %v3198 = vrcp.pop %v3196
    %v3199 = vmul.f32 1.0, %v3198
    %v3200 = vrcp.pop %v3197
    %v3201 = vmul.f32 1.0, %v3200
    %v3202 = vtanh.pop %v3188
    %v3203 = vtanh.pop %v3189
    %v3206 = vrot.slane %v2974, 7
    %v3207 = vrot.slane %v2975, 7
    %v3210 = vmul.f32 %v3199, %v3206
    %v3211 = vmul.f32 %v3201, %v3207
    %3214 = vrot.lane.b32.xlu0 %v3202, 80
    %v3215 = vpop.permute.xlu0 %3214
    %3216 = vrot.lane.b32.xlu0 %v3203, 80
    %v3217 = vpop.permute.xlu0 %3216
    %v3220 = vmul.f32 %v3199, %v3215
    %v3221 = vmul.f32 %v3201, %v3217
    %3224 = vrot.lane.b32.xlu0 %v3220, 16
    %v3225 = vpop.permute.xlu0 %3224
    %3226 = vrot.lane.b32.xlu0 %v3221, 16
    %v3227 = vpop.permute.xlu0 %3226
    %v3230 = vadd.f32 %v3210, %v3225
    %v3231 = vadd.f32 %v3211, %v3227
    %v3232 = vtanh.pop %v3230
    %v3233 = vtanh.pop %v3231
    %3236 = vrot.lane.b32.xlu0 %v3232, 16
    %v3237 = vpop.permute.xlu0 %3236
    %3238 = vrot.lane.b32.xlu0 %v3233, 16
    %v3239 = vpop.permute.xlu0 %3238
    %v3242 = vmul.f32 %v3199, %v3237
    %v3243 = vmul.f32 %v3201, %v3239
    %v3246 = vrot.slane %v3243, 7
    %vm3247 = vcmask 1046534
    %v3248 = vsel %vm3247, %v3246, %v3242
    %3249 = vrot.lane.b32.xlu0 %v3248, 96
    %v3250 = vpop.permute.xlu0 %3249
    %vm3252 = vcmask 129029
    %3253 = vst.msk [vmem:[#allocation2 - $0x5] sm:$0x60] %vm3252, %v3250
    %3254 = vrot.lane.b32.xlu0 %v3100, 112
    %v3255 = vpop.permute.xlu0 %3254
    %3257 = vst.msk [vmem:[#allocation2] sm:$0x3] %vm1978, %v3255
    %v3258 = vld [vmem:[#allocation2] sm:$0x3]
    %v3260 = vsel %vm1981, %v3258, 0
    %3262 = vmatprep.subr.mxu0 0.0
    %3263 = vmatpush1.msra.mxu0 0.0
    %3264 = vmatprep.subr.mxu0 0.0
    %3265 = vmatpush1.msra.mxu0 0.0
    %3266 = vmatprep.subr.mxu0 0.0
    %3267 = vmatpush1.msra.mxu0 0.0
    %3268 = vmatprep.subr.mxu0 0.0
    %3269 = vmatpush1.msra.mxu0 0.0
    %3270 = vmatprep.subr.mxu0 0.0
    %3271 = vmatpush1.msra.mxu0 0.0
    %3272 = vmatprep.subr.mxu0 0.0
    %3273 = vmatpush1.msra.mxu0 0.0
    %3274 = vmatprep.subr.mxu0 0.0
    %3275 = vmatpush1.msra.mxu0 0.0
    %3276 = vmatprep.subr.mxu0 0.0
    %3277 = vmatpush1.msra.mxu0 0.0
    %3278 = vmatprep.subr.mxu0 0.0
    %3279 = vmatpush1.msra.mxu0 0.0
    %3280 = vmatprep.subr.mxu0 0.0
    %3281 = vmatpush1.msra.mxu0 0.0
    %3282 = vmatprep.subr.mxu0 0.0
    %3283 = vmatpush1.msra.mxu0 0.0
    %3284 = vmatprep.subr.mxu0 0.0
    %3285 = vmatpush1.msra.mxu0 0.0
    %3286 = vmatprep.subr.mxu0 0.0
    %3287 = vmatpush1.msra.mxu0 %v1838
    %3288 = vmatprep.subr.mxu0 0.0
    %3289 = vmatpush1.msra.mxu0 %v1837
    %3290 = vmatprep.subr.mxu0 0.0
    %3291 = vmatpush1.msra.mxu0 %v1836
    %3292 = vmatprep.subr.mxu0 0.0
    %3293 = vmatpush1.msra.mxu0 %v1835
    %3294 = vmatprep.subr.mxu0 0.0
    %3295 = vmatpush2.msra.mxu0 0.0
    %3296 = vmatprep.subr.mxu0 0.0
    %3297 = vmatpush2.msra.mxu0 0.0
    %3298 = vmatprep.subr.mxu0 0.0
    %3299 = vmatpush2.msra.mxu0 0.0
    %3300 = vmatprep.subr.mxu0 0.0
    %3301 = vmatpush2.msra.mxu0 0.0
    %3302 = vmatprep.subr.mxu0 0.0
    %3303 = vmatpush2.msra.mxu0 0.0
    %3304 = vmatprep.subr.mxu0 0.0
    %3305 = vmatpush2.msra.mxu0 0.0
    %3306 = vmatprep.subr.mxu0 0.0
    %3307 = vmatpush2.msra.mxu0 0.0
    %3308 = vmatprep.subr.mxu0 0.0
    %3309 = vmatpush2.msra.mxu0 0.0
    %3310 = vmatprep.subr.mxu0 0.0
    %3311 = vmatpush2.msra.mxu0 0.0
    %3312 = vmatprep.subr.mxu0 0.0
    %3313 = vmatpush2.msra.mxu0 0.0
    %3314 = vmatprep.subr.mxu0 0.0
    %3315 = vmatpush2.msra.mxu0 0.0
    %3316 = vmatprep.subr.mxu0 0.0
    %3317 = vmatpush2.msra.mxu0 0.0
    %3318 = vmatprep.subr.mxu0 0.0
    %3319 = vmatpush2.msra.mxu0 0.0
    %3320 = vmatprep.subr.mxu0 0.0
    %3321 = vmatpush2.msra.mxu0 0.0
    %3322 = vmatprep.subr.mxu0 0.0
    %3323 = vmatpush2.msra.mxu0 0.0
    %3324 = vmatprep.subr.mxu0 0.0
    %3325 = vmatpush2.msra.mxu0 0.0
    %3326 = vmatprep.mubr.f32.mxu0 0.0
    %3327 = vmatmul.mubr.f32.gmra.mxu0 %v3260
    %v3328 = vpop.f32.mrf.mxu0
    %v3329 = vadd.f32 0.0, %v3328
    %v3330 = vpop.f32.mrf.mxu0
    %3331 = vdwg.mxu0
    %v3332 = vadd.f32 %v2058, %v3329
    %v3333 = vxor.u32 %v3332, 2147483648
    %v3334 = vmul.f32 %v3333, 1.442695
    %v3335 = vpow.pop %v3334
    %v3336 = vadd.f32 %v3335, 1.0
    %v3337 = vrcp.pop %v3336
    %v3338 = vmul.f32 1.0, %v3337
    %v3339 = vtanh.pop %v3332
    %v3340 = vmul.f32 %v3338, %v3094
    %3342 = vrot.lane.b32.xlu0 %v3339, 80
    %v3343 = vpop.permute.xlu0 %3342
    %v3345 = vmul.f32 %v3338, %v3343
    %3347 = vrot.lane.b32.xlu0 %v3345, 16
    %v3348 = vpop.permute.xlu0 %3347
    %v3350 = vadd.f32 %v3340, %v3348
    %v3351 = vtanh.pop %v3350
    %3353 = vrot.lane.b32.xlu0 %v3351, 16
    %v3354 = vpop.permute.xlu0 %3353
    %v3356 = vmul.f32 %v3338, %v3354
    %3358 = vrot.lane.b32.xlu0 %v3356, 96
    %v3359 = vpop.permute.xlu0 %3358
    %3361 = vst.msk [vmem:[#allocation3 + $0xa] sm:$0x3] %vm1976, %v3359
    %v3362 = vrot.slane %v3242, 5
    %v3363 = vrot.slane %v3243, 4
    %v3364 = vsel %vm1971, %v3363, %v3362
    %3365 = vrot.lane.b32.xlu0 %v3364, 96
    %v3366 = vpop.permute.xlu0 %3365
    %v3367 = vsel %vm1840, %v3366, 0
    %3369 = vmatprep.subr.mxu0 0.0
    %3370 = vmatpush1.msra.mxu0 0.0
    %3371 = vmatprep.subr.mxu0 0.0
    %3372 = vmatpush1.msra.mxu0 0.0
    %3373 = vmatprep.subr.mxu0 0.0
    %3374 = vmatpush1.msra.mxu0 0.0
    %3375 = vmatprep.subr.mxu0 0.0
    %3376 = vmatpush1.msra.mxu0 0.0
    %3377 = vmatprep.subr.mxu0 0.0
    %3378 = vmatpush1.msra.mxu0 0.0
    %3379 = vmatprep.subr.mxu0 0.0
    %3380 = vmatpush1.msra.mxu0 0.0
    %3381 = vmatprep.subr.mxu0 0.0
    %3382 = vmatpush1.msra.mxu0 0.0
    %3383 = vmatprep.subr.mxu0 0.0
    %3384 = vmatpush1.msra.mxu0 0.0
    %3385 = vmatprep.subr.mxu0 0.0
    %3386 = vmatpush1.msra.mxu0 0.0
    %3387 = vmatprep.subr.mxu0 0.0
    %3388 = vmatpush1.msra.mxu0 0.0
    %3389 = vmatprep.subr.mxu0 0.0
    %3390 = vmatpush1.msra.mxu0 0.0
    %3391 = vmatprep.subr.mxu0 0.0
    %3392 = vmatpush1.msra.mxu0 0.0
    %3393 = vmatprep.subr.mxu0 0.0
    %3394 = vmatpush1.msra.mxu0 0.0
    %3395 = vmatprep.subr.mxu0 0.0
    %3396 = vmatpush1.msra.mxu0 0.0
    %3397 = vmatprep.subr.mxu0 0.0
    %3398 = vmatpush1.msra.mxu0 %v1834
    %3399 = vmatprep.subr.mxu0 0.0
    %3400 = vmatpush1.msra.mxu0 %v1833
    %3401 = vmatprep.subr.mxu0 0.0
    %3402 = vmatpush2.msra.mxu0 0.0
    %3403 = vmatprep.subr.mxu0 0.0
    %3404 = vmatpush2.msra.mxu0 0.0
    %3405 = vmatprep.subr.mxu0 0.0
    %3406 = vmatpush2.msra.mxu0 0.0
    %3407 = vmatprep.subr.mxu0 0.0
    %3408 = vmatpush2.msra.mxu0 0.0
    %3409 = vmatprep.subr.mxu0 0.0
    %3410 = vmatpush2.msra.mxu0 0.0
    %3411 = vmatprep.subr.mxu0 0.0
    %3412 = vmatpush2.msra.mxu0 0.0
    %3413 = vmatprep.subr.mxu0 0.0
    %3414 = vmatpush2.msra.mxu0 0.0
    %3415 = vmatprep.subr.mxu0 0.0
    %3416 = vmatpush2.msra.mxu0 0.0
    %3417 = vmatprep.subr.mxu0 0.0
    %3418 = vmatpush2.msra.mxu0 0.0
    %3419 = vmatprep.subr.mxu0 0.0
    %3420 = vmatpush2.msra.mxu0 0.0
    %3421 = vmatprep.subr.mxu0 0.0
    %3422 = vmatpush2.msra.mxu0 0.0
    %3423 = vmatprep.subr.mxu0 0.0
    %3424 = vmatpush2.msra.mxu0 0.0
    %3425 = vmatprep.subr.mxu0 0.0
    %3426 = vmatpush2.msra.mxu0 0.0
    %3427 = vmatprep.subr.mxu0 0.0
    %3428 = vmatpush2.msra.mxu0 0.0
    %3429 = vmatprep.subr.mxu0 0.0
    %3430 = vmatpush2.msra.mxu0 0.0
    %3431 = vmatprep.subr.mxu0 0.0
    %3432 = vmatpush2.msra.mxu0 0.0
    %3433 = vmatprep.mubr.f32.mxu0 0.0
    %3434 = vmatmul.mubr.f32.gmra.mxu0 %v3367
    %v3435 = vpop.f32.mrf.mxu0
    %v3436 = vadd.f32 0.0, %v3435
    %v3437 = vpop.f32.mrf.mxu0
    %3438 = vdwg.mxu0
    %v3440 = vrot.slane %v3436, 2
    %v3441 = vrot.slane %v3436, 3
    %v3444 = vadd.f32 %v1831, %v3440
    %v3445 = vadd.f32 %v1832, %v3441
    %v3446 = vxor.u32 %v3444, 2147483648
    %v3447 = vxor.u32 %v3445, 2147483648
    %v3448 = vmul.f32 %v3446, 1.442695
    %v3449 = vpow.pop %v3448
    %v3450 = vmul.f32 %v3447, 1.442695
    %v3451 = vpow.pop %v3450
    %v3452 = vadd.f32 %v3449, 1.0
    %v3453 = vadd.f32 %v3451, 1.0
    %v3454 = vrcp.pop %v3452
    %v3455 = vmul.f32 1.0, %v3454
    %v3456 = vrcp.pop %v3453
    %v3457 = vmul.f32 1.0, %v3456
    %v3458 = vtanh.pop %v3444
    %v3459 = vtanh.pop %v3445
    %v3462 = vrot.slane %v3230, 7
    %v3463 = vrot.slane %v3231, 7
    %v3466 = vmul.f32 %v3455, %v3462
    %v3467 = vmul.f32 %v3457, %v3463
    %3470 = vrot.lane.b32.xlu0 %v3458, 80
    %v3471 = vpop.permute.xlu0 %3470
    %3472 = vrot.lane.b32.xlu0 %v3459, 80
    %v3473 = vpop.permute.xlu0 %3472
    %v3476 = vmul.f32 %v3455, %v3471
    %v3477 = vmul.f32 %v3457, %v3473
    %3480 = vrot.lane.b32.xlu0 %v3476, 16
    %v3481 = vpop.permute.xlu0 %3480
    %3482 = vrot.lane.b32.xlu0 %v3477, 16
    %v3483 = vpop.permute.xlu0 %3482
    %v3486 = vadd.f32 %v3466, %v3481
    %v3487 = vadd.f32 %v3467, %v3483
    %v3488 = vtanh.pop %v3486
    %v3489 = vtanh.pop %v3487
    %3492 = vrot.lane.b32.xlu0 %v3488, 16
    %v3493 = vpop.permute.xlu0 %3492
    %3494 = vrot.lane.b32.xlu0 %v3489, 16
    %v3495 = vpop.permute.xlu0 %3494
    %v3498 = vmul.f32 %v3455, %v3493
    %v3499 = vmul.f32 %v3457, %v3495
    %v3502 = vrot.slane %v3499, 7
    %vm3503 = vcmask 1047559
    %v3504 = vsel %vm3503, %v3502, %v3498
    %3505 = vrot.lane.b32.xlu0 %v3504, 96
    %v3506 = vpop.permute.xlu0 %3505
    %vm3508 = vcmask 130054
    %3509 = vst.msk [vmem:[#allocation2 - $0x6] sm:$0xc0] %vm3508, %v3506
    %3510 = vrot.lane.b32.xlu0 %v3356, 112
    %v3511 = vpop.permute.xlu0 %3510
    %3513 = vst.msk [vmem:[#allocation2] sm:$0x3] %vm1978, %v3511
    %v3514 = vld [vmem:[#allocation2] sm:$0x3]
    %v3516 = vsel %vm1981, %v3514, 0
    %3518 = vmatprep.subr.mxu0 0.0
    %3519 = vmatpush1.msra.mxu0 0.0
    %3520 = vmatprep.subr.mxu0 0.0
    %3521 = vmatpush1.msra.mxu0 0.0
    %3522 = vmatprep.subr.mxu0 0.0
    %3523 = vmatpush1.msra.mxu0 0.0
    %3524 = vmatprep.subr.mxu0 0.0
    %3525 = vmatpush1.msra.mxu0 0.0
    %3526 = vmatprep.subr.mxu0 0.0
    %3527 = vmatpush1.msra.mxu0 0.0
    %3528 = vmatprep.subr.mxu0 0.0
    %3529 = vmatpush1.msra.mxu0 0.0
    %3530 = vmatprep.subr.mxu0 0.0
    %3531 = vmatpush1.msra.mxu0 0.0
    %3532 = vmatprep.subr.mxu0 0.0
    %3533 = vmatpush1.msra.mxu0 0.0
    %3534 = vmatprep.subr.mxu0 0.0
    %3535 = vmatpush1.msra.mxu0 0.0
    %3536 = vmatprep.subr.mxu0 0.0
    %3537 = vmatpush1.msra.mxu0 0.0
    %3538 = vmatprep.subr.mxu0 0.0
    %3539 = vmatpush1.msra.mxu0 0.0
    %3540 = vmatprep.subr.mxu0 0.0
    %3541 = vmatpush1.msra.mxu0 0.0
    %3542 = vmatprep.subr.mxu0 0.0
    %3543 = vmatpush1.msra.mxu0 %v1838
    %3544 = vmatprep.subr.mxu0 0.0
    %3545 = vmatpush1.msra.mxu0 %v1837
    %3546 = vmatprep.subr.mxu0 0.0
    %3547 = vmatpush1.msra.mxu0 %v1836
    %3548 = vmatprep.subr.mxu0 0.0
    %3549 = vmatpush1.msra.mxu0 %v1835
    %3550 = vmatprep.subr.mxu0 0.0
    %3551 = vmatpush2.msra.mxu0 0.0
    %3552 = vmatprep.subr.mxu0 0.0
    %3553 = vmatpush2.msra.mxu0 0.0
    %3554 = vmatprep.subr.mxu0 0.0
    %3555 = vmatpush2.msra.mxu0 0.0
    %3556 = vmatprep.subr.mxu0 0.0
    %3557 = vmatpush2.msra.mxu0 0.0
    %3558 = vmatprep.subr.mxu0 0.0
    %3559 = vmatpush2.msra.mxu0 0.0
    %3560 = vmatprep.subr.mxu0 0.0
    %3561 = vmatpush2.msra.mxu0 0.0
    %3562 = vmatprep.subr.mxu0 0.0
    %3563 = vmatpush2.msra.mxu0 0.0
    %3564 = vmatprep.subr.mxu0 0.0
    %3565 = vmatpush2.msra.mxu0 0.0
    %3566 = vmatprep.subr.mxu0 0.0
    %3567 = vmatpush2.msra.mxu0 0.0
    %3568 = vmatprep.subr.mxu0 0.0
    %3569 = vmatpush2.msra.mxu0 0.0
    %3570 = vmatprep.subr.mxu0 0.0
    %3571 = vmatpush2.msra.mxu0 0.0
    %3572 = vmatprep.subr.mxu0 0.0
    %3573 = vmatpush2.msra.mxu0 0.0
    %3574 = vmatprep.subr.mxu0 0.0
    %3575 = vmatpush2.msra.mxu0 0.0
    %3576 = vmatprep.subr.mxu0 0.0
    %3577 = vmatpush2.msra.mxu0 0.0
    %3578 = vmatprep.subr.mxu0 0.0
    %3579 = vmatpush2.msra.mxu0 0.0
    %3580 = vmatprep.subr.mxu0 0.0
    %3581 = vmatpush2.msra.mxu0 0.0
    %3582 = vmatprep.mubr.f32.mxu0 0.0
    %3583 = vmatmul.mubr.f32.gmra.mxu0 %v3516
    %v3584 = vpop.f32.mrf.mxu0
    %v3585 = vadd.f32 0.0, %v3584
    %v3586 = vpop.f32.mrf.mxu0
    %3587 = vdwg.mxu0
    %v3588 = vadd.f32 %v2058, %v3585
    %v3589 = vxor.u32 %v3588, 2147483648
    %v3590 = vmul.f32 %v3589, 1.442695
    %v3591 = vpow.pop %v3590
    %v3592 = vadd.f32 %v3591, 1.0
    %v3593 = vrcp.pop %v3592
    %v3594 = vmul.f32 1.0, %v3593
    %v3595 = vtanh.pop %v3588
    %v3596 = vmul.f32 %v3594, %v3350
    %3598 = vrot.lane.b32.xlu0 %v3595, 80
    %v3599 = vpop.permute.xlu0 %3598
    %v3601 = vmul.f32 %v3594, %v3599
    %3603 = vrot.lane.b32.xlu0 %v3601, 16
    %v3604 = vpop.permute.xlu0 %3603
    %v3606 = vadd.f32 %v3596, %v3604
    %v3607 = vtanh.pop %v3606
    %3609 = vrot.lane.b32.xlu0 %v3607, 16
    %v3610 = vpop.permute.xlu0 %3609
    %v3612 = vmul.f32 %v3594, %v3610
    %3614 = vrot.lane.b32.xlu0 %v3612, 96
    %v3615 = vpop.permute.xlu0 %3614
    %3617 = vst.msk [vmem:[#allocation3 + $0xc] sm:$0x3] %vm1976, %v3615
    %v3618 = vrot.slane %v3498, 6
    %v3619 = vrot.slane %v3499, 5
    %v3620 = vsel %vm1971, %v3619, %v3618
    %3621 = vrot.lane.b32.xlu0 %v3620, 96
    %v3622 = vpop.permute.xlu0 %3621
    %v3623 = vsel %vm1840, %v3622, 0
    %3625 = vmatprep.subr.mxu0 0.0
    %3626 = vmatpush1.msra.mxu0 0.0
    %3627 = vmatprep.subr.mxu0 0.0
    %3628 = vmatpush1.msra.mxu0 0.0
    %3629 = vmatprep.subr.mxu0 0.0
    %3630 = vmatpush1.msra.mxu0 0.0
    %3631 = vmatprep.subr.mxu0 0.0
    %3632 = vmatpush1.msra.mxu0 0.0
    %3633 = vmatprep.subr.mxu0 0.0
    %3634 = vmatpush1.msra.mxu0 0.0
    %3635 = vmatprep.subr.mxu0 0.0
    %3636 = vmatpush1.msra.mxu0 0.0
    %3637 = vmatprep.subr.mxu0 0.0
    %3638 = vmatpush1.msra.mxu0 0.0
    %3639 = vmatprep.subr.mxu0 0.0
    %3640 = vmatpush1.msra.mxu0 0.0
    %3641 = vmatprep.subr.mxu0 0.0
    %3642 = vmatpush1.msra.mxu0 0.0
    %3643 = vmatprep.subr.mxu0 0.0
    %3644 = vmatpush1.msra.mxu0 0.0
    %3645 = vmatprep.subr.mxu0 0.0
    %3646 = vmatpush1.msra.mxu0 0.0
    %3647 = vmatprep.subr.mxu0 0.0
    %3648 = vmatpush1.msra.mxu0 0.0
    %3649 = vmatprep.subr.mxu0 0.0
    %3650 = vmatpush1.msra.mxu0 0.0
    %3651 = vmatprep.subr.mxu0 0.0
    %3652 = vmatpush1.msra.mxu0 0.0
    %3653 = vmatprep.subr.mxu0 0.0
    %3654 = vmatpush1.msra.mxu0 %v1834
    %3655 = vmatprep.subr.mxu0 0.0
    %3656 = vmatpush1.msra.mxu0 %v1833
    %3657 = vmatprep.subr.mxu0 0.0
    %3658 = vmatpush2.msra.mxu0 0.0
    %3659 = vmatprep.subr.mxu0 0.0
    %3660 = vmatpush2.msra.mxu0 0.0
    %3661 = vmatprep.subr.mxu0 0.0
    %3662 = vmatpush2.msra.mxu0 0.0
    %3663 = vmatprep.subr.mxu0 0.0
    %3664 = vmatpush2.msra.mxu0 0.0
    %3665 = vmatprep.subr.mxu0 0.0
    %3666 = vmatpush2.msra.mxu0 0.0
    %3667 = vmatprep.subr.mxu0 0.0
    %3668 = vmatpush2.msra.mxu0 0.0
    %3669 = vmatprep.subr.mxu0 0.0
    %3670 = vmatpush2.msra.mxu0 0.0
    %3671 = vmatprep.subr.mxu0 0.0
    %3672 = vmatpush2.msra.mxu0 0.0
    %3673 = vmatprep.subr.mxu0 0.0
    %3674 = vmatpush2.msra.mxu0 0.0
    %3675 = vmatprep.subr.mxu0 0.0
    %3676 = vmatpush2.msra.mxu0 0.0
    %3677 = vmatprep.subr.mxu0 0.0
    %3678 = vmatpush2.msra.mxu0 0.0
    %3679 = vmatprep.subr.mxu0 0.0
    %3680 = vmatpush2.msra.mxu0 0.0
    %3681 = vmatprep.subr.mxu0 0.0
    %3682 = vmatpush2.msra.mxu0 0.0
    %3683 = vmatprep.subr.mxu0 0.0
    %3684 = vmatpush2.msra.mxu0 0.0
    %3685 = vmatprep.subr.mxu0 0.0
    %3686 = vmatpush2.msra.mxu0 0.0
    %3687 = vmatprep.subr.mxu0 0.0
    %3688 = vmatpush2.msra.mxu0 0.0
    %3689 = vmatprep.mubr.f32.mxu0 0.0
    %3690 = vmatmul.mubr.f32.gmra.mxu0 %v3623
    %v3691 = vpop.f32.mrf.mxu0
    %v3692 = vadd.f32 0.0, %v3691
    %v3693 = vpop.f32.mrf.mxu0
    %3694 = vdwg.mxu0
    %v3696 = vrot.slane %v3692, 1
    %v3697 = vrot.slane %v3692, 2
    %v3700 = vadd.f32 %v1831, %v3696
    %v3701 = vadd.f32 %v1832, %v3697
    %v3702 = vxor.u32 %v3700, 2147483648
    %v3703 = vxor.u32 %v3701, 2147483648
    %v3704 = vmul.f32 %v3702, 1.442695
    %v3705 = vpow.pop %v3704
    %v3706 = vmul.f32 %v3703, 1.442695
    %v3707 = vpow.pop %v3706
    %v3708 = vadd.f32 %v3705, 1.0
    %v3709 = vadd.f32 %v3707, 1.0
    %v3710 = vrcp.pop %v3708
    %v3711 = vmul.f32 1.0, %v3710
    %v3712 = vrcp.pop %v3709
    %v3713 = vmul.f32 1.0, %v3712
    %v3714 = vtanh.pop %v3700
    %v3715 = vtanh.pop %v3701
    %v3718 = vrot.slane %v3486, 7
    %v3719 = vrot.slane %v3487, 7
    %v3722 = vmul.f32 %v3711, %v3718
    %v3723 = vmul.f32 %v3713, %v3719
    %3726 = vrot.lane.b32.xlu0 %v3714, 80
    %v3727 = vpop.permute.xlu0 %3726
    %3728 = vrot.lane.b32.xlu0 %v3715, 80
    %v3729 = vpop.permute.xlu0 %3728
    %v3732 = vmul.f32 %v3711, %v3727
    %v3733 = vmul.f32 %v3713, %v3729
    %3736 = vrot.lane.b32.xlu0 %v3732, 16
    %v3737 = vpop.permute.xlu0 %3736
    %3738 = vrot.lane.b32.xlu0 %v3733, 16
    %v3739 = vpop.permute.xlu0 %3738
    %v3742 = vadd.f32 %v3722, %v3737
    %v3743 = vadd.f32 %v3723, %v3739
    %v3744 = vtanh.pop %v3742
    %v3745 = vtanh.pop %v3743
    %3748 = vrot.lane.b32.xlu0 %v3744, 16
    %v3749 = vpop.permute.xlu0 %3748
    %3750 = vrot.lane.b32.xlu0 %v3745, 16
    %v3751 = vpop.permute.xlu0 %3750
    %v3754 = vmul.f32 %v3711, %v3749
    %v3755 = vmul.f32 %v3713, %v3751
    %v3758 = vrot.slane %v3755, 7
    %3759 = vrot.lane.b32.xlu0 %v3754, 96
    %v3760 = vpop.permute.xlu0 %3759
    %3761 = vrot.lane.b32.xlu0 %v3758, 96
    %v3762 = vpop.permute.xlu0 %3761
    %vm3765 = vcmask 130055
    %3766 = vst.msk [vmem:[#allocation2 - $0x7] sm:$0x80] %vm3765, %v3760
    %vm3767 = vcmask 122880
    %3768 = vst.msk [vmem:[#allocation2 + $0x1] sm:$0x1] %vm3767, %v3762
    %3769 = vrot.lane.b32.xlu0 %v3612, 112
    %v3770 = vpop.permute.xlu0 %3769
    %3772 = vst.msk [vmem:[#allocation2] sm:$0x3] %vm1978, %v3770
    %v3773 = vld [vmem:[#allocation2] sm:$0x3]
    %v3775 = vsel %vm1981, %v3773, 0
    %3777 = vmatprep.subr.mxu0 0.0
    %3778 = vmatpush1.msra.mxu0 0.0
    %3779 = vmatprep.subr.mxu0 0.0
    %3780 = vmatpush1.msra.mxu0 0.0
    %3781 = vmatprep.subr.mxu0 0.0
    %3782 = vmatpush1.msra.mxu0 0.0
    %3783 = vmatprep.subr.mxu0 0.0
    %3784 = vmatpush1.msra.mxu0 0.0
    %3785 = vmatprep.subr.mxu0 0.0
    %3786 = vmatpush1.msra.mxu0 0.0
    %3787 = vmatprep.subr.mxu0 0.0
    %3788 = vmatpush1.msra.mxu0 0.0
    %3789 = vmatprep.subr.mxu0 0.0
    %3790 = vmatpush1.msra.mxu0 0.0
    %3791 = vmatprep.subr.mxu0 0.0
    %3792 = vmatpush1.msra.mxu0 0.0
    %3793 = vmatprep.subr.mxu0 0.0
    %3794 = vmatpush1.msra.mxu0 0.0
    %3795 = vmatprep.subr.mxu0 0.0
    %3796 = vmatpush1.msra.mxu0 0.0
    %3797 = vmatprep.subr.mxu0 0.0
    %3798 = vmatpush1.msra.mxu0 0.0
    %3799 = vmatprep.subr.mxu0 0.0
    %3800 = vmatpush1.msra.mxu0 0.0
    %3801 = vmatprep.subr.mxu0 0.0
    %3802 = vmatpush1.msra.mxu0 %v1838
    %3803 = vmatprep.subr.mxu0 0.0
    %3804 = vmatpush1.msra.mxu0 %v1837
    %3805 = vmatprep.subr.mxu0 0.0
    %3806 = vmatpush1.msra.mxu0 %v1836
    %3807 = vmatprep.subr.mxu0 0.0
    %3808 = vmatpush1.msra.mxu0 %v1835
    %3809 = vmatprep.subr.mxu0 0.0
    %3810 = vmatpush2.msra.mxu0 0.0
    %3811 = vmatprep.subr.mxu0 0.0
    %3812 = vmatpush2.msra.mxu0 0.0
    %3813 = vmatprep.subr.mxu0 0.0
    %3814 = vmatpush2.msra.mxu0 0.0
    %3815 = vmatprep.subr.mxu0 0.0
    %3816 = vmatpush2.msra.mxu0 0.0
    %3817 = vmatprep.subr.mxu0 0.0
    %3818 = vmatpush2.msra.mxu0 0.0
    %3819 = vmatprep.subr.mxu0 0.0
    %3820 = vmatpush2.msra.mxu0 0.0
    %3821 = vmatprep.subr.mxu0 0.0
    %3822 = vmatpush2.msra.mxu0 0.0
    %3823 = vmatprep.subr.mxu0 0.0
    %3824 = vmatpush2.msra.mxu0 0.0
    %3825 = vmatprep.subr.mxu0 0.0
    %3826 = vmatpush2.msra.mxu0 0.0
    %3827 = vmatprep.subr.mxu0 0.0
    %3828 = vmatpush2.msra.mxu0 0.0
    %3829 = vmatprep.subr.mxu0 0.0
    %3830 = vmatpush2.msra.mxu0 0.0
    %3831 = vmatprep.subr.mxu0 0.0
    %3832 = vmatpush2.msra.mxu0 0.0
    %3833 = vmatprep.subr.mxu0 0.0
    %3834 = vmatpush2.msra.mxu0 0.0
    %3835 = vmatprep.subr.mxu0 0.0
    %3836 = vmatpush2.msra.mxu0 0.0
    %3837 = vmatprep.subr.mxu0 0.0
    %3838 = vmatpush2.msra.mxu0 0.0
    %3839 = vmatprep.subr.mxu0 0.0
    %3840 = vmatpush2.msra.mxu0 0.0
    %3841 = vmatprep.mubr.f32.mxu0 0.0
    %3842 = vmatmul.mubr.f32.gmra.mxu0 %v3775
    %v3843 = vpop.f32.mrf.mxu0
    %v3844 = vadd.f32 0.0, %v3843
    %v3845 = vpop.f32.mrf.mxu0
    %3846 = vdwg.mxu0
    %v3847 = vadd.f32 %v2058, %v3844
    %v3848 = vxor.u32 %v3847, 2147483648
    %v3849 = vmul.f32 %v3848, 1.442695
    %v3850 = vpow.pop %v3849
    %v3851 = vadd.f32 %v3850, 1.0
    %v3852 = vrcp.pop %v3851
    %v3853 = vmul.f32 1.0, %v3852
    %v3854 = vtanh.pop %v3847
    %v3855 = vmul.f32 %v3853, %v3606
    %3857 = vrot.lane.b32.xlu0 %v3854, 80
    %v3858 = vpop.permute.xlu0 %3857
    %v3860 = vmul.f32 %v3853, %v3858
    %3862 = vrot.lane.b32.xlu0 %v3860, 16
    %v3863 = vpop.permute.xlu0 %3862
    %v3865 = vadd.f32 %v3855, %v3863
    %v3866 = vtanh.pop %v3865
    %3868 = vrot.lane.b32.xlu0 %v3866, 16
    %v3869 = vpop.permute.xlu0 %3868
    %v3871 = vmul.f32 %v3853, %v3869
    %3873 = vrot.lane.b32.xlu0 %v3871, 96
    %v3874 = vpop.permute.xlu0 %3873
    %3876 = vst.msk [vmem:[#allocation3 + $0xe] sm:$0x3] %vm1976, %v3874
    %v3877 = vld [vmem:[#allocation7 + $0x240] sm:$0xff]
    %v3878 = vld [vmem:[#allocation7 + $0x248] sm:$0xff]
    %v3879 = vld [vmem:[#allocation7 + $0x250] sm:$0x1]
    %v3880 = vld [vmem:[#allocation3] sm:$0xff]
    %v3881 = vld [vmem:[#allocation3 + $0x8] sm:$0xff]
    %v3882 = vlaneseq
    %v3883 = vshrl.u32 %v3882, 7
    %v3884 = vsub.s32 0, %v3883
    %v3885 = vrot.slane %v3879, %v3884
    %v3887 = vsel %vm1840, %v3880, 0
    %v3890 = vsel %vm1840, %v3881, 0
    %3892 = vmatprep.subr.mxu0 0.0
    %3893 = vmatpush1.msra.mxu0 0.0
    %3894 = vmatprep.subr.mxu0 0.0
    %3895 = vmatpush1.msra.mxu0 0.0
    %3896 = vmatprep.subr.mxu0 0.0
    %3897 = vmatpush1.msra.mxu0 0.0
    %3898 = vmatprep.subr.mxu0 0.0
    %3899 = vmatpush1.msra.mxu0 0.0
    %3900 = vmatprep.subr.mxu0 0.0
    %3901 = vmatpush1.msra.mxu0 0.0
    %3902 = vmatprep.subr.mxu0 0.0
    %3903 = vmatpush1.msra.mxu0 0.0
    %3904 = vmatprep.subr.mxu0 0.0
    %3905 = vmatpush1.msra.mxu0 0.0
    %3906 = vmatprep.subr.mxu0 0.0
    %3907 = vmatpush1.msra.mxu0 0.0
    %3908 = vmatprep.subr.mxu0 0.0
    %3909 = vmatpush1.msra.mxu0 0.0
    %3910 = vmatprep.subr.mxu0 0.0
    %3911 = vmatpush1.msra.mxu0 0.0
    %3912 = vmatprep.subr.mxu0 0.0
    %3913 = vmatpush1.msra.mxu0 0.0
    %3914 = vmatprep.subr.mxu0 0.0
    %3915 = vmatpush1.msra.mxu0 0.0
    %3916 = vmatprep.subr.mxu0 0.0
    %3917 = vmatpush1.msra.mxu0 0.0
    %3918 = vmatprep.subr.mxu0 0.0
    %3919 = vmatpush1.msra.mxu0 0.0
    %3920 = vmatprep.subr.mxu0 0.0
    %3921 = vmatpush1.msra.mxu0 %v3878
    %3922 = vmatprep.subr.mxu0 0.0
    %3923 = vmatpush1.msra.mxu0 %v3877
    %3924 = vmatprep.subr.mxu0 0.0
    %3925 = vmatpush2.msra.mxu0 0.0
    %3926 = vmatprep.subr.mxu0 0.0
    %3927 = vmatpush2.msra.mxu0 0.0
    %3928 = vmatprep.subr.mxu0 0.0
    %3929 = vmatpush2.msra.mxu0 0.0
    %3930 = vmatprep.subr.mxu0 0.0
    %3931 = vmatpush2.msra.mxu0 0.0
    %3932 = vmatprep.subr.mxu0 0.0
    %3933 = vmatpush2.msra.mxu0 0.0
    %3934 = vmatprep.subr.mxu0 0.0
    %3935 = vmatpush2.msra.mxu0 0.0
    %3936 = vmatprep.subr.mxu0 0.0
    %3937 = vmatpush2.msra.mxu0 0.0
    %3938 = vmatprep.subr.mxu0 0.0
    %3939 = vmatpush2.msra.mxu0 0.0
    %3940 = vmatprep.subr.mxu0 0.0
    %3941 = vmatpush2.msra.mxu0 0.0
    %3942 = vmatprep.subr.mxu0 0.0
    %3943 = vmatpush2.msra.mxu0 0.0
    %3944 = vmatprep.subr.mxu0 0.0
    %3945 = vmatpush2.msra.mxu0 0.0
    %3946 = vmatprep.subr.mxu0 0.0
    %3947 = vmatpush2.msra.mxu0 0.0
    %3948 = vmatprep.subr.mxu0 0.0
    %3949 = vmatpush2.msra.mxu0 0.0
    %3950 = vmatprep.subr.mxu0 0.0
    %3951 = vmatpush2.msra.mxu0 0.0
    %3952 = vmatprep.subr.mxu0 0.0
    %3953 = vmatpush2.msra.mxu0 0.0
    %3954 = vmatprep.subr.mxu0 0.0
    %3955 = vmatpush2.msra.mxu0 0.0
    %3956 = vmatprep.mubr.f32.mxu0 0.0
    %3957 = vmatmul.mubr.f32.gmra.mxu0 %v3887
    %v3958 = vpop.f32.mrf.mxu0
    %v3959 = vadd.f32 %v3885, %v3958
    %v3960 = vpop.f32.mrf.mxu0
    %3961 = vmatprep.mubr.f32.mxu0 0.0
    %3962 = vmatmul.mubr.f32.gmra.mxu0 %v3890
    %v3963 = vpop.f32.mrf.mxu0
    %v3964 = vadd.f32 %v3885, %v3963
    %v3965 = vpop.f32.mrf.mxu0
    %3966 = vdwg.mxu0
    %3967 = vst [vmem:[%s3] sm:$0xff] %v3959
    %3968 = vst [vmem:[%s3 + $0x8] sm:$0xff] %v3964
    // Predicated region
    $region22: #{net_forward.1} parent=1 // pred_check
      _
    $region23: #{net_forward.1} parent=1 // pred_check_branch
      %3970 = sbr.rel (0) target = $region25
    $region24: #{net_forward.1} parent=1 // pred_region
      _
    $region25: #{net_forward.1} parent=1 // pred_fallthru
      _
    // Predicated region
    $region26: #{net_forward.1} parent=1 // pred_check
      _
    $region27: #{net_forward.1} parent=1 // pred_check_branch
      %3972 = sbr.rel (0) target = $region29
    $region28: #{net_forward.1} parent=1 // pred_region
      _
    $region29: #{net_forward.1} parent=1 // pred_fallthru
      _
    %3973 = vsyncpa [#allocation5], 1
    %3974 = vsyncpa [#allocation6], 1

</llo_original>
